<compile_context>
chip_gen: v7x
topology: tpu7x:2x2x1
jax: 0.10.0
libtpu: 0.0.40
codegen_flags: <defaults>
</compile_context>

<pallas_src>
import functools

import jax
import jax.numpy as jnp
import numpy as np
from jax.experimental import pallas as pl
from jax.experimental.pallas import tpu as pltpu

BN_EPS = 1e-5
LANE = 128


def _conv_stats_kernel(x_ref, w_ref, y_ref, sum_ref, sq_ref, acc_ref, *,
                       K, stride, V, tile_m, C_out):
    """Phase 1: temporal conv (K accumulated MXU dots into a VMEM scratch) + BN partials.

    x_ref:   (1, s, T_max*V, C_in) bf16  whole padded sample, resident across row tiles
    w_ref:   (K, C_in, C_pad)      bf16  conv weight, out-channels padded to 128 lanes
    y_ref:   (1, C_out, tile_m)    bf16  conv output tile, channel-major (NCHW-flat)
    sum_ref: (1, 1, 1, C_pad)      f32   per-(sample,tile) per-channel sum of y
    sq_ref:  (1, 1, 1, C_pad)      f32   per-(sample,tile) per-channel sum of y^2
    acc_ref: (tile_m, C_pad)       f32   VMEM accumulator scratch
    """
    m = pl.program_id(1)
    row0 = m * tile_m
    if tile_m % 8 == 0 and V % 8 == 0:
        row0 = pl.multiple_of(row0, 8)

    # K is small and static -> Python-unrolled taps over the resident sample.
    # Each tap is a static (phase, temporal-offset) slice of the flattened rows.
    for k in range(K):
        r = k % stride            # stride-phase of the padded input
        q = k // stride           # temporal offset (in rows of V) within that phase
        xk = x_ref[0, r, pl.ds(row0 + q * V, tile_m), :]            # (tile_m, C_in) bf16
        contrib = jnp.dot(xk, w_ref[k], preferred_element_type=jnp.float32)
        if k == 0:
            acc_ref[...] = contrib
        else:
            acc_ref[...] += contrib

    acc = acc_ref[...]                                              # (tile_m, C_pad) f32
    # BN partial sums from the f32 accumulator (before the bf16 cast).
    # TODO(synk): switch to a shifted (per-tile mean offset) accumulation if activations
    # are far from zero-mean; single-pass E[x^2]-E[x]^2 can cancel catastrophically.
    sum_ref[...] = jnp.sum(acc, axis=0, keepdims=True).reshape(1, 1, 1, -1)
    sq_ref[...] = jnp.sum(acc * acc, axis=0, keepdims=True).reshape(1, 1, 1, -1)
    # Transpose in-VMEM (XLU) and store channel-major, lane-dense (rows minor).
    y_ref[0] = acc.T[:C_out].astype(y_ref.dtype)                    # (C_out, tile_m) bf16


def _bn_apply_kernel(y_ref, scale_ref, shift_ref, o_ref):
    """Phase 2: o = y*scale + shift (BN affine folded per channel), f32 math, dense store."""
    o_ref[0] = y_ref[0].astype(jnp.float32) * scale_ref[...] + shift_ref[...]


def _choose_tile_rows(T_out, V, target_rows):
    """Largest tile_m = tile_t*V with tile_t | T_out, tile_m % 128 == 0, tile_m <= target.

    Falls back to a whole sample (block == full row extent, always a legal BlockSpec)."""
    best, ok = T_out * V, False
    for tile_t in range(1, T_out + 1):
        if T_out % tile_t:
            continue
        tm = tile_t * V
        if tm % LANE == 0 and tm <= max(target_rows, LANE):
            best, ok = tm, True
    return best if ok else T_out * V


def unit_tcn_skip_forward(x_nchw, weight, bias, gamma, beta, *, kernel_size=9, stride=1,
                          target_tile_rows=1024, compute_dtype=jnp.bfloat16):
    """x_nchw: (N, C_in, T, V); weight: (K, C_in, C_out); returns (N, C_out, T_out, V).

    `bias` is accepted for API parity but not applied: training-mode BatchNorm subtracts
    the per-channel batch mean, which cancels a constant per-channel bias exactly.
    """
    del bias  # exact no-op under training-mode BN (batch-mean subtraction cancels it)

    N, C_in, T, V = x_nchw.shape
    K, _, C_out = weight.shape
    assert K == kernel_size
    pad = (kernel_size - 1) // 2
    s = int(stride)
    T_pad_len = T + 2 * pad
    T_out = (T_pad_len - K) // s + 1
    MV = T_out * V
    C_pad = ((C_out + LANE - 1) // LANE) * LANE     # VMEM/matmul lanes only; never hits HBM

    tile_m = _choose_tile_rows(T_out, V, target_tile_rows)
    num_tiles = MV // tile_m

    # ---- plain-JAX glue: channels-last bf16, temporal zero-pad, stride-phase split -----
    # TODO(synk): consider allow_input_fusion / in-kernel NCHW->NHWC when C_in >= 128 to
    # avoid these standalone HBM passes over the (small) input.
    x = jnp.transpose(x_nchw.astype(compute_dtype), (0, 2, 3, 1))        # (N, T, V, C_in)
    x = jnp.pad(x, ((0, 0), (pad, pad), (0, 0), (0, 0)))                 # (N, T_pad, V, C_in)
    T_max = -(-T_pad_len // s)                                           # ceil(T_pad / s)
    if s == 1:
        xp = x[:, None]                                                  # free reshape
    else:
        # Tap k at stride s reads phase r = k % s at temporal offset k // s, so the s
        # strided phase views (total ~1x input, no Kx im2col blow-up) suffice.
        phases = []
        for r in range(s):
            xr = x[:, r::s]
            if xr.shape[1] < T_max:
                xr = jnp.pad(xr, ((0, 0), (0, T_max - xr.shape[1]), (0, 0), (0, 0)))
            phases.append(xr)
        xp = jnp.stack(phases, axis=1)                                   # (N, s, T_max, V, C_in)
    xp = xp.reshape(N, s, T_max * V, C_in)

    w = weight.astype(compute_dtype)
    if C_pad != C_out:
        w = jnp.pad(w, ((0, 0), (0, 0), (0, C_pad - C_out)))             # (K, C_in, C_pad)

    # ---- VMEM budget (per grid step; x2 for double buffering) --------------------------
    x_blk = s * T_max * V * C_in * 2
    w_blk = K * C_in * C_pad * 2
    y_blk = C_out * tile_m * 2
    st_blk = 2 * C_pad * 4
    acc_blk = tile_m * C_pad * 4
    est1 = 2 * (x_blk + w_blk + y_blk + st_blk) + acc_blk
    # >= default 32 MiB, <= 48 MiB so it also fits v7x's 64 MiB/TC with headroom.
    vmem1 = int(min(max(2 * est1, 32 * 2**20), 48 * 2**20))

    # ---- Pallas phase 1: conv + per-tile BN partials (grid over batch x row-tiles) -----
    kern1 = functools.partial(_conv_stats_kernel, K=K, stride=s, V=V,
                              tile_m=tile_m, C_out=C_out)
    cost1 = pl.CostEstimate(
        flops=2 * N * MV * K * C_in * C_out,
        transcendentals=0,
        bytes_accessed=int(xp.size * xp.dtype.itemsize + w.size * w.dtype.itemsize
                           + N * C_out * MV * 2 + 2 * N * num_tiles * C_pad * 4))
    y, psum, psq = pl.pallas_call(
        kern1,
        out_shape=(jax.ShapeDtypeStruct((N, C_out, MV), jnp.bfloat16),
                   jax.ShapeDtypeStruct((N, num_tiles, 1, C_pad), jnp.float32),
                   jax.ShapeDtypeStruct((N, num_tiles, 1, C_pad), jnp.float32)),
        grid=(N, num_tiles),
        in_specs=[pl.BlockSpec((1, s, T_max * V, C_in), lambda n, m: (n, 0, 0, 0)),
                  pl.BlockSpec((K, C_in, C_pad), lambda n, m: (0, 0, 0))],
        out_specs=(pl.BlockSpec((1, C_out, tile_m), lambda n, m: (n, 0, m)),
                   pl.BlockSpec((1, 1, 1, C_pad), lambda n, m: (n, m, 0, 0)),
                   pl.BlockSpec((1, 1, 1, C_pad), lambda n, m: (n, m, 0, 0))),
        scratch_shapes=[pltpu.VMEM((tile_m, C_pad), jnp.float32)],
        compiler_params=pltpu.CompilerParams(
            dimension_semantics=("parallel", "parallel"),
            vmem_limit_bytes=vmem1),
        cost_estimate=cost1,
    )(xp, w)

    # ---- tiny JAX glue: finalize batch statistics -> folded per-channel scale/shift ----
    cnt = float(N * MV)
    tot = jnp.sum(psum, axis=(0, 1, 2))[:C_out]
    tot2 = jnp.sum(psq, axis=(0, 1, 2))[:C_out]
    mean = tot / cnt
    var = jnp.maximum(tot2 / cnt - mean * mean, 0.0)                    # biased variance
    scale = gamma.astype(jnp.float32) * jax.lax.rsqrt(var + BN_EPS)
    shift = beta.astype(jnp.float32) - mean * scale
    scale = scale.reshape(C_out, 1)
    shift = shift.reshape(C_out, 1)

    # ---- Pallas phase 2: lane-dense normalize, output already in NCHW-flat layout ------
    est2 = 2 * (C_out * tile_m * 2 + C_out * tile_m * 4 + 2 * C_out * 4)
    vmem2 = int(min(max(2 * est2, 32 * 2**20), 48 * 2**20))
    cost2 = pl.CostEstimate(
        flops=2 * N * C_out * MV, transcendentals=0,
        bytes_accessed=int(N * C_out * MV * (2 + 4) + 2 * C_out * 4))
    out = pl.pallas_call(
        _bn_apply_kernel,
        out_shape=jax.ShapeDtypeStruct((N, C_out, MV), jnp.float32),
        grid=(N, num_tiles),
        in_specs=[pl.BlockSpec((1, C_out, tile_m), lambda n, m: (n, 0, m)),
                  pl.BlockSpec((C_out, 1), lambda n, m: (0, 0)),
                  pl.BlockSpec((C_out, 1), lambda n, m: (0, 0))],
        out_specs=pl.BlockSpec((1, C_out, tile_m), lambda n, m: (n, 0, m)),
        compiler_params=pltpu.CompilerParams(
            dimension_semantics=("parallel", "parallel"),
            vmem_limit_bytes=vmem2),
        cost_estimate=cost2,
    )(y, scale, shift)

    # Already channel-major: reshape to NCHW is metadata-only (no transpose pass).
    return out.reshape(N, C_out, T_out, V)


def _reference(x_nchw, weight, bias, gamma, beta, *, kernel_size=9, stride=1,
               compute_dtype=jnp.bfloat16):
    """Pure-JAX reference (conv + bias + training-mode BN).

    Operands are rounded to bf16 and the conv output is rounded to bf16 before the
    normalization apply, mirroring the kernel's mixed-precision activation storage
    (statistics themselves are computed from the f32 conv output on both sides)."""
    N, C_in, T, V = x_nchw.shape
    K, _, C_out = weight.shape
    pad = (kernel_size - 1) // 2
    xq = x_nchw.astype(compute_dtype).astype(jnp.float32)
    wq = weight.astype(compute_dtype).astype(jnp.float32)
    w_oihw = jnp.transpose(wq, (2, 1, 0))[..., None]                    # (C_out, C_in, K, 1)
    y = jax.lax.conv_general_dilated(
        xq, w_oihw, window_strides=(stride, 1), padding=((pad, pad), (0, 0)),
        dimension_numbers=("NCHW", "OIHW", "NCHW"),
        precision=jax.lax.Precision.HIGHEST)
    y = y + bias.reshape(1, C_out, 1, 1)
    mean = jnp.mean(y, axis=(0, 2, 3), keepdims=True)
    var = jnp.mean((y - mean) ** 2, axis=(0, 2, 3), keepdims=True)
    y16 = y.astype(compute_dtype).astype(jnp.float32)
    return ((y16 - mean) * (gamma.reshape(1, C_out, 1, 1) * jax.lax.rsqrt(var + BN_EPS))
            + beta.reshape(1, C_out, 1, 1))


if __name__ == "__main__":
    def run_case(N, C_in, C_out, T, V, K, stride, key, bias_scale, affine_random,
                 target_tile_rows):
        kx, kw, kb, kg, kbe = jax.random.split(key, 5)
        x = jax.random.normal(kx, (N, C_in, T, V), dtype=jnp.float32)
        # Deterministic init mirroring the module: kaiming_normal_ fan_out for conv.
        fan_out = C_out * K * 1
        weight = (jax.random.normal(kw, (K, C_in, C_out), dtype=jnp.float32)
                  * np.sqrt(2.0 / fan_out))
        bias = (bias_scale * jax.random.normal(kb, (C_out,), dtype=jnp.float32)
                if bias_scale else jnp.zeros((C_out,), jnp.float32))
        if affine_random:
            gamma = 0.5 + jax.random.uniform(kg, (C_out,), dtype=jnp.float32)
            beta = 0.1 * jax.random.normal(kbe, (C_out,), dtype=jnp.float32)
        else:
            gamma = jnp.ones((C_out,), jnp.float32)
            beta = jnp.zeros((C_out,), jnp.float32)
        fwd = jax.jit(functools.partial(unit_tcn_skip_forward, kernel_size=K,
                                        stride=stride,
                                        target_tile_rows=target_tile_rows))
        out = jax.block_until_ready(fwd(x, weight, bias, gamma, beta))
        ref = _reference(x, weight, bias, gamma, beta, kernel_size=K, stride=stride)
        np.testing.assert_allclose(np.asarray(out), np.asarray(ref), rtol=1e-2, atol=1e-2)

    key = jax.random.PRNGKey(0)
    k1, k2 = jax.random.split(key)
    # stride=1, module-default params; small row-tile target so the tiled path (grid
    # (N, 2), tile_m=128) is actually exercised.
    run_case(2, 4, 8, 16, 16, 9, 1, k1, bias_scale=0.0, affine_random=False,
             target_tile_rows=128)
    # stride=2 (phase decomposition) + nonzero conv bias + non-trivial BN affine:
    # verifies the phase indexing and that the dropped bias cancels under training BN.
    run_case(2, 4, 8, 16, 16, 9, 2, k2, bias_scale=0.5, affine_random=True,
             target_tile_rows=1024)
    print("KERNEL_OK")
</pallas_src>

<mosaic_0001>
module attributes {stable_mosaic.version = 11 : i64} {
  func.func @_bn_apply_kernel(%arg0: i32, %arg1: i32, %arg2: memref<1x8x128xbf16, #tpu.memory_space<vmem>>, %arg3: memref<8x1xf32, #tpu.memory_space<vmem>>, %arg4: memref<8x1xf32, #tpu.memory_space<vmem>>, %arg5: memref<1x8x128xf32, #tpu.memory_space<vmem>>) attributes {dimension_semantics = [#tpu.dimension_semantics<parallel>, #tpu.dimension_semantics<parallel>], iteration_bounds = array<i64: 2, 2>, scalar_prefetch = 0 : i64, scratch_operands = 0 : i64, tpu.core_type = #tpu.core_type<tc>, window_params = [{transform_indices = @transform_0, window_bounds = array<i64: 1, 8, 128>}, {pipeline_mode = #tpu.pipeline_mode<synchronous>, transform_indices = @transform_1, window_bounds = array<i64: 8, 1>}, {pipeline_mode = #tpu.pipeline_mode<synchronous>, transform_indices = @transform_2, window_bounds = array<i64: 8, 1>}, {transform_indices = @transform_3, window_bounds = array<i64: 1, 8, 128>}]} {
    %c0 = arith.constant 0 : index
    %c0_0 = arith.constant 0 : index
    %c0_1 = arith.constant 0 : index
    %0 = vector.load %arg2[%c0, %c0_0, %c0_1] : memref<1x8x128xbf16, #tpu.memory_space<vmem>>, vector<1x8x128xbf16>
    %1 = vector.shape_cast %0 : vector<1x8x128xbf16> to vector<8x128xbf16>
    %2 = arith.extf %1 : vector<8x128xbf16> to vector<8x128xf32>
    %c0_2 = arith.constant 0 : index
    %c0_3 = arith.constant 0 : index
    %3 = vector.load %arg3[%c0_2, %c0_3] : memref<8x1xf32, #tpu.memory_space<vmem>>, vector<8x1xf32>
    %4 = vector.broadcast %3 : vector<8x1xf32> to vector<8x128xf32>
    %5 = arith.mulf %2, %4 : vector<8x128xf32>
    %c0_4 = arith.constant 0 : index
    %c0_5 = arith.constant 0 : index
    %6 = vector.load %arg4[%c0_4, %c0_5] : memref<8x1xf32, #tpu.memory_space<vmem>>, vector<8x1xf32>
    %7 = vector.broadcast %6 : vector<8x1xf32> to vector<8x128xf32>
    %8 = arith.addf %5, %7 : vector<8x128xf32>
    %c0_6 = arith.constant 0 : index
    %c0_7 = arith.constant 0 : index
    %c0_8 = arith.constant 0 : index
    %9 = vector.load %arg5[%c0_6, %c0_7, %c0_8] : memref<1x8x128xf32, #tpu.memory_space<vmem>>, vector<1x8x128xf32>
    %10 = vector.shape_cast %9 : vector<1x8x128xf32> to vector<8x128xf32>
    %11 = vector.shape_cast %8 : vector<8x128xf32> to vector<1x8x128xf32>
    tpu.vector_store %arg5[%c0_6, %c0_7, %c0_8], %11 {strides = array<i32>} : memref<1x8x128xf32, #tpu.memory_space<vmem>>, vector<1x8x128xf32>,
    return
  }
  func.func @transform_0(%arg0: i32, %arg1: i32) -> (i32, i32, i32) {
    %c0_i32 = arith.constant 0 : i32
    %c0_i32_0 = arith.constant 0 : i32
    return %arg0, %c0_i32, %arg1 : i32, i32, i32
  }
  func.func @transform_1(%arg0: i32, %arg1: i32) -> (i32, i32) {
    %c0_i32 = arith.constant 0 : i32
    %c0_i32_0 = arith.constant 0 : i32
    %c0_i32_1 = arith.constant 0 : i32
    return %c0_i32, %c0_i32_0 : i32, i32
  }
  func.func @transform_2(%arg0: i32, %arg1: i32) -> (i32, i32) {
    %c0_i32 = arith.constant 0 : i32
    %c0_i32_0 = arith.constant 0 : i32
    %c0_i32_1 = arith.constant 0 : i32
    return %c0_i32, %c0_i32_0 : i32, i32
  }
  func.func @transform_3(%arg0: i32, %arg1: i32) -> (i32, i32, i32) {
    %c0_i32 = arith.constant 0 : i32
    %c0_i32_0 = arith.constant 0 : i32
    return %arg0, %c0_i32, %arg1 : i32, i32, i32
  }
}

module attributes {stable_mosaic.version = 11 : i64} {
  func.func @_conv_stats_kernel(%arg0: i32, %arg1: i32, %arg2: memref<1x1x384x4xbf16, #tpu.memory_space<vmem>>, %arg3: memref<9x4x128xbf16, #tpu.memory_space<vmem>>, %arg4: memref<1x8x128xbf16, #tpu.memory_space<vmem>>, %arg5: memref<1x1x1x128xf32, #tpu.memory_space<vmem>>, %arg6: memref<1x1x1x128xf32, #tpu.memory_space<vmem>>, %arg7: memref<128x128xf32, #tpu.memory_space<vmem>>) attributes {dimension_semantics = [#tpu.dimension_semantics<parallel>, #tpu.dimension_semantics<parallel>], iteration_bounds = array<i64: 2, 2>, scalar_prefetch = 0 : i64, scratch_operands = 1 : i64, tpu.core_type = #tpu.core_type<tc>, window_params = [{transform_indices = @transform_0, window_bounds = array<i64: 1, 1, 384, 4>}, {pipeline_mode = #tpu.pipeline_mode<synchronous>, transform_indices = @transform_1, window_bounds = array<i64: 9, 4, 128>}, {transform_indices = @transform_2, window_bounds = array<i64: 1, 8, 128>}, {transform_indices = @transform_3, window_bounds = array<i64: 1, 1, 1, 128>}, {transform_indices = @transform_4, window_bounds = array<i64: 1, 1, 1, 128>}]} {
    %c128_i32 = arith.constant 128 : i32
    %0 = arith.muli %arg1, %c128_i32 : i32
    %1 = tpu.assume_multiple %0, 8 : i32
    %c0_i32 = arith.constant 0 : i32
    %2 = arith.addi %1, %c0_i32 : i32
    %c0 = arith.constant 0 : index
    %c0_0 = arith.constant 0 : index
    %3 = arith.index_cast %2 : i32 to index
    %c0_1 = arith.constant 0 : index
    %4 = vector.load %arg2[%c0, %c0_0, %3, %c0_1] : memref<1x1x384x4xbf16, #tpu.memory_space<vmem>>, vector<1x1x128x4xbf16>
    %5 = vector.shape_cast %4 : vector<1x1x128x4xbf16> to vector<128x4xbf16>
    %c0_2 = arith.constant 0 : index
    %c0_3 = arith.constant 0 : index
    %c0_4 = arith.constant 0 : index
    %6 = vector.load %arg3[%c0_2, %c0_3, %c0_4] : memref<9x4x128xbf16, #tpu.memory_space<vmem>>, vector<1x4x128xbf16>
    %7 = vector.shape_cast %6 : vector<1x4x128xbf16> to vector<4x128xbf16>
    %cst = arith.constant dense<0.000000e+00> : vector<128x128xf32>
    %8 = tpu.matmul %5, %7, %cst {dimension_numbers = #tpu.dot_dimension_numbers<[1], [0], [0], [1], [0, 0, 1, 1], [], []>} : vector<128x4xbf16>, vector<4x128xbf16>, vector<128x128xf32> -> vector<128x128xf32>
    %c0_5 = arith.constant 0 : index
    %c0_6 = arith.constant 0 : index
    %9 = vector.load %arg7[%c0_5, %c0_6] : memref<128x128xf32, #tpu.memory_space<vmem>>, vector<128x128xf32>
    tpu.vector_store %arg7[%c0_5, %c0_6], %8 {strides = array<i32>} : memref<128x128xf32, #tpu.memory_space<vmem>>, vector<128x128xf32>,
    %c16_i32 = arith.constant 16 : i32
    %10 = arith.addi %1, %c16_i32 : i32
    %c0_7 = arith.constant 0 : index
    %c0_8 = arith.constant 0 : index
    %11 = arith.index_cast %10 : i32 to index
    %c0_9 = arith.constant 0 : index
    %12 = vector.load %arg2[%c0_7, %c0_8, %11, %c0_9] : memref<1x1x384x4xbf16, #tpu.memory_space<vmem>>, vector<1x1x128x4xbf16>
    %13 = vector.shape_cast %12 : vector<1x1x128x4xbf16> to vector<128x4xbf16>
    %c1 = arith.constant 1 : index
    %c0_10 = arith.constant 0 : index
    %c0_11 = arith.constant 0 : index
    %14 = vector.load %arg3[%c1, %c0_10, %c0_11] : memref<9x4x128xbf16, #tpu.memory_space<vmem>>, vector<1x4x128xbf16>
    %15 = vector.shape_cast %14 : vector<1x4x128xbf16> to vector<4x128xbf16>
    %cst_12 = arith.constant dense<0.000000e+00> : vector<128x128xf32>
    %16 = tpu.matmul %13, %15, %cst_12 {dimension_numbers = #tpu.dot_dimension_numbers<[1], [0], [0], [1], [0, 0, 1, 1], [], []>} : vector<128x4xbf16>, vector<4x128xbf16>, vector<128x128xf32> -> vector<128x128xf32>
    %c0_13 = arith.constant 0 : index
    %c0_14 = arith.constant 0 : index
    %17 = vector.load %arg7[%c0_13, %c0_14] : memref<128x128xf32, #tpu.memory_space<vmem>>, vector<128x128xf32>
    %18 = arith.addf %17, %16 : vector<128x128xf32>
    %c0_15 = arith.constant 0 : index
    %c0_16 = arith.constant 0 : index
    %19 = vector.load %arg7[%c0_15, %c0_16] : memref<128x128xf32, #tpu.memory_space<vmem>>, vector<128x128xf32>
    tpu.vector_store %arg7[%c0_15, %c0_16], %18 {strides = array<i32>} : memref<128x128xf32, #tpu.memory_space<vmem>>, vector<128x128xf32>,
    %c32_i32 = arith.constant 32 : i32
    %20 = arith.addi %1, %c32_i32 : i32
    %c0_17 = arith.constant 0 : index
    %c0_18 = arith.constant 0 : index
    %21 = arith.index_cast %20 : i32 to index
    %c0_19 = arith.constant 0 : index
    %22 = vector.load %arg2[%c0_17, %c0_18, %21, %c0_19] : memref<1x1x384x4xbf16, #tpu.memory_space<vmem>>, vector<1x1x128x4xbf16>
    %23 = vector.shape_cast %22 : vector<1x1x128x4xbf16> to vector<128x4xbf16>
    %c2 = arith.constant 2 : index
    %c0_20 = arith.constant 0 : index
    %c0_21 = arith.constant 0 : index
    %24 = vector.load %arg3[%c2, %c0_20, %c0_21] : memref<9x4x128xbf16, #tpu.memory_space<vmem>>, vector<1x4x128xbf16>
    %25 = vector.shape_cast %24 : vector<1x4x128xbf16> to vector<4x128xbf16>
    %cst_22 = arith.constant dense<0.000000e+00> : vector<128x128xf32>
    %26 = tpu.matmul %23, %25, %cst_22 {dimension_numbers = #tpu.dot_dimension_numbers<[1], [0], [0], [1], [0, 0, 1, 1], [], []>} : vector<128x4xbf16>, vector<4x128xbf16>, vector<128x128xf32> -> vector<128x128xf32>
    %c0_23 = arith.constant 0 : index
    %c0_24 = arith.constant 0 : index
    %27 = vector.load %arg7[%c0_23, %c0_24] : memref<128x128xf32, #tpu.memory_space<vmem>>, vector<128x128xf32>
    %28 = arith.addf %27, %26 : vector<128x128xf32>
    %c0_25 = arith.constant 0 : index
    %c0_26 = arith.constant 0 : index
    %29 = vector.load %arg7[%c0_25, %c0_26] : memref<128x128xf32, #tpu.memory_space<vmem>>, vector<128x128xf32>
    tpu.vector_store %arg7[%c0_25, %c0_26], %28 {strides = array<i32>} : memref<128x128xf32, #tpu.memory_space<vmem>>, vector<128x128xf32>,
    %c48_i32 = arith.constant 48 : i32
    %30 = arith.addi %1, %c48_i32 : i32
    %c0_27 = arith.constant 0 : index
    %c0_28 = arith.constant 0 : index
    %31 = arith.index_cast %30 : i32 to index
    %c0_29 = arith.constant 0 : index
    %32 = vector.load %arg2[%c0_27, %c0_28, %31, %c0_29] : memref<1x1x384x4xbf16, #tpu.memory_space<vmem>>, vector<1x1x128x4xbf16>
    %33 = vector.shape_cast %32 : vector<1x1x128x4xbf16> to vector<128x4xbf16>
    %c3 = arith.constant 3 : index
    %c0_30 = arith.constant 0 : index
    %c0_31 = arith.constant 0 : index
    %34 = vector.load %arg3[%c3, %c0_30, %c0_31] : memref<9x4x128xbf16, #tpu.memory_space<vmem>>, vector<1x4x128xbf16>
    %35 = vector.shape_cast %34 : vector<1x4x128xbf16> to vector<4x128xbf16>
    %cst_32 = arith.constant dense<0.000000e+00> : vector<128x128xf32>
    %36 = tpu.matmul %33, %35, %cst_32 {dimension_numbers = #tpu.dot_dimension_numbers<[1], [0], [0], [1], [0, 0, 1, 1], [], []>} : vector<128x4xbf16>, vector<4x128xbf16>, vector<128x128xf32> -> vector<128x128xf32>
    %c0_33 = arith.constant 0 : index
    %c0_34 = arith.constant 0 : index
    %37 = vector.load %arg7[%c0_33, %c0_34] : memref<128x128xf32, #tpu.memory_space<vmem>>, vector<128x128xf32>
    %38 = arith.addf %37, %36 : vector<128x128xf32>
    %c0_35 = arith.constant 0 : index
    %c0_36 = arith.constant 0 : index
    %39 = vector.load %arg7[%c0_35, %c0_36] : memref<128x128xf32, #tpu.memory_space<vmem>>, vector<128x128xf32>
    tpu.vector_store %arg7[%c0_35, %c0_36], %38 {strides = array<i32>} : memref<128x128xf32, #tpu.memory_space<vmem>>, vector<128x128xf32>,
    %c64_i32 = arith.constant 64 : i32
    %40 = arith.addi %1, %c64_i32 : i32
    %c0_37 = arith.constant 0 : index
    %c0_38 = arith.constant 0 : index
    %41 = arith.index_cast %40 : i32 to index
    %c0_39 = arith.constant 0 : index
    %42 = vector.load %arg2[%c0_37, %c0_38, %41, %c0_39] : memref<1x1x384x4xbf16, #tpu.memory_space<vmem>>, vector<1x1x128x4xbf16>
    %43 = vector.shape_cast %42 : vector<1x1x128x4xbf16> to vector<128x4xbf16>
    %c4 = arith.constant 4 : index
    %c0_40 = arith.constant 0 : index
    %c0_41 = arith.constant 0 : index
    %44 = vector.load %arg3[%c4, %c0_40, %c0_41] : memref<9x4x128xbf16, #tpu.memory_space<vmem>>, vector<1x4x128xbf16>
    %45 = vector.shape_cast %44 : vector<1x4x128xbf16> to vector<4x128xbf16>
    %cst_42 = arith.constant dense<0.000000e+00> : vector<128x128xf32>
    %46 = tpu.matmul %43, %45, %cst_42 {dimension_numbers = #tpu.dot_dimension_numbers<[1], [0], [0], [1], [0, 0, 1, 1], [], []>} : vector<128x4xbf16>, vector<4x128xbf16>, vector<128x128xf32> -> vector<128x128xf32>
    %c0_43 = arith.constant 0 : index
    %c0_44 = arith.constant 0 : index
    %47 = vector.load %arg7[%c0_43, %c0_44] : memref<128x128xf32, #tpu.memory_space<vmem>>, vector<128x128xf32>
    %48 = arith.addf %47, %46 : vector<128x128xf32>
    %c0_45 = arith.constant 0 : index
    %c0_46 = arith.constant 0 : index
    %49 = vector.load %arg7[%c0_45, %c0_46] : memref<128x128xf32, #tpu.memory_space<vmem>>, vector<128x128xf32>
    tpu.vector_store %arg7[%c0_45, %c0_46], %48 {strides = array<i32>} : memref<128x128xf32, #tpu.memory_space<vmem>>, vector<128x128xf32>,
    %c80_i32 = arith.constant 80 : i32
    %50 = arith.addi %1, %c80_i32 : i32
    %c0_47 = arith.constant 0 : index
    %c0_48 = arith.constant 0 : index
    %51 = arith.index_cast %50 : i32 to index
    %c0_49 = arith.constant 0 : index
    %52 = vector.load %arg2[%c0_47, %c0_48, %51, %c0_49] : memref<1x1x384x4xbf16, #tpu.memory_space<vmem>>, vector<1x1x128x4xbf16>
    %53 = vector.shape_cast %52 : vector<1x1x128x4xbf16> to vector<128x4xbf16>
    %c5 = arith.constant 5 : index
    %c0_50 = arith.constant 0 : index
    %c0_51 = arith.constant 0 : index
    %54 = vector.load %arg3[%c5, %c0_50, %c0_51] : memref<9x4x128xbf16, #tpu.memory_space<vmem>>, vector<1x4x128xbf16>
    %55 = vector.shape_cast %54 : vector<1x4x128xbf16> to vector<4x128xbf16>
    %cst_52 = arith.constant dense<0.000000e+00> : vector<128x128xf32>
    %56 = tpu.matmul %53, %55, %cst_52 {dimension_numbers = #tpu.dot_dimension_numbers<[1], [0], [0], [1], [0, 0, 1, 1], [], []>} : vector<128x4xbf16>, vector<4x128xbf16>, vector<128x128xf32> -> vector<128x128xf32>
    %c0_53 = arith.constant 0 : index
    %c0_54 = arith.constant 0 : index
    %57 = vector.load %arg7[%c0_53, %c0_54] : memref<128x128xf32, #tpu.memory_space<vmem>>, vector<128x128xf32>
    %58 = arith.addf %57, %56 : vector<128x128xf32>
    %c0_55 = arith.constant 0 : index
    %c0_56 = arith.constant 0 : index
    %59 = vector.load %arg7[%c0_55, %c0_56] : memref<128x128xf32, #tpu.memory_space<vmem>>, vector<128x128xf32>
    tpu.vector_store %arg7[%c0_55, %c0_56], %58 {strides = array<i32>} : memref<128x128xf32, #tpu.memory_space<vmem>>, vector<128x128xf32>,
    %c96_i32 = arith.constant 96 : i32
    %60 = arith.addi %1, %c96_i32 : i32
    %c0_57 = arith.constant 0 : index
    %c0_58 = arith.constant 0 : index
    %61 = arith.index_cast %60 : i32 to index
    %c0_59 = arith.constant 0 : index
    %62 = vector.load %arg2[%c0_57, %c0_58, %61, %c0_59] : memref<1x1x384x4xbf16, #tpu.memory_space<vmem>>, vector<1x1x128x4xbf16>
    %63 = vector.shape_cast %62 : vector<1x1x128x4xbf16> to vector<128x4xbf16>
    %c6 = arith.constant 6 : index
    %c0_60 = arith.constant 0 : index
    %c0_61 = arith.constant 0 : index
    %64 = vector.load %arg3[%c6, %c0_60, %c0_61] : memref<9x4x128xbf16, #tpu.memory_space<vmem>>, vector<1x4x128xbf16>
    %65 = vector.shape_cast %64 : vector<1x4x128xbf16> to vector<4x128xbf16>
    %cst_62 = arith.constant dense<0.000000e+00> : vector<128x128xf32>
    %66 = tpu.matmul %63, %65, %cst_62 {dimension_numbers = #tpu.dot_dimension_numbers<[1], [0], [0], [1], [0, 0, 1, 1], [], []>} : vector<128x4xbf16>, vector<4x128xbf16>, vector<128x128xf32> -> vector<128x128xf32>
    %c0_63 = arith.constant 0 : index
    %c0_64 = arith.constant 0 : index
    %67 = vector.load %arg7[%c0_63, %c0_64] : memref<128x128xf32, #tpu.memory_space<vmem>>, vector<128x128xf32>
    %68 = arith.addf %67, %66 : vector<128x128xf32>
    %c0_65 = arith.constant 0 : index
    %c0_66 = arith.constant 0 : index
    %69 = vector.load %arg7[%c0_65, %c0_66] : memref<128x128xf32, #tpu.memory_space<vmem>>, vector<128x128xf32>
    tpu.vector_store %arg7[%c0_65, %c0_66], %68 {strides = array<i32>} : memref<128x128xf32, #tpu.memory_space<vmem>>, vector<128x128xf32>,
    %c112_i32 = arith.constant 112 : i32
    %70 = arith.addi %1, %c112_i32 : i32
    %c0_67 = arith.constant 0 : index
    %c0_68 = arith.constant 0 : index
    %71 = arith.index_cast %70 : i32 to index
    %c0_69 = arith.constant 0 : index
    %72 = vector.load %arg2[%c0_67, %c0_68, %71, %c0_69] : memref<1x1x384x4xbf16, #tpu.memory_space<vmem>>, vector<1x1x128x4xbf16>
    %73 = vector.shape_cast %72 : vector<1x1x128x4xbf16> to vector<128x4xbf16>
    %c7 = arith.constant 7 : index
    %c0_70 = arith.constant 0 : index
    %c0_71 = arith.constant 0 : index
    %74 = vector.load %arg3[%c7, %c0_70, %c0_71] : memref<9x4x128xbf16, #tpu.memory_space<vmem>>, vector<1x4x128xbf16>
    %75 = vector.shape_cast %74 : vector<1x4x128xbf16> to vector<4x128xbf16>
    %cst_72 = arith.constant dense<0.000000e+00> : vector<128x128xf32>
    %76 = tpu.matmul %73, %75, %cst_72 {dimension_numbers = #tpu.dot_dimension_numbers<[1], [0], [0], [1], [0, 0, 1, 1], [], []>} : vector<128x4xbf16>, vector<4x128xbf16>, vector<128x128xf32> -> vector<128x128xf32>
    %c0_73 = arith.constant 0 : index
    %c0_74 = arith.constant 0 : index
    %77 = vector.load %arg7[%c0_73, %c0_74] : memref<128x128xf32, #tpu.memory_space<vmem>>, vector<128x128xf32>
    %78 = arith.addf %77, %76 : vector<128x128xf32>
    %c0_75 = arith.constant 0 : index
    %c0_76 = arith.constant 0 : index
    %79 = vector.load %arg7[%c0_75, %c0_76] : memref<128x128xf32, #tpu.memory_space<vmem>>, vector<128x128xf32>
    tpu.vector_store %arg7[%c0_75, %c0_76], %78 {strides = array<i32>} : memref<128x128xf32, #tpu.memory_space<vmem>>, vector<128x128xf32>,
    %c128_i32_77 = arith.constant 128 : i32
    %80 = arith.addi %1, %c128_i32_77 : i32
    %c0_78 = arith.constant 0 : index
    %c0_79 = arith.constant 0 : index
    %81 = arith.index_cast %80 : i32 to index
    %c0_80 = arith.constant 0 : index
    %82 = vector.load %arg2[%c0_78, %c0_79, %81, %c0_80] : memref<1x1x384x4xbf16, #tpu.memory_space<vmem>>, vector<1x1x128x4xbf16>
    %83 = vector.shape_cast %82 : vector<1x1x128x4xbf16> to vector<128x4xbf16>
    %c8 = arith.constant 8 : index
    %c0_81 = arith.constant 0 : index
    %c0_82 = arith.constant 0 : index
    %84 = vector.load %arg3[%c8, %c0_81, %c0_82] : memref<9x4x128xbf16, #tpu.memory_space<vmem>>, vector<1x4x128xbf16>
    %85 = vector.shape_cast %84 : vector<1x4x128xbf16> to vector<4x128xbf16>
    %cst_83 = arith.constant dense<0.000000e+00> : vector<128x128xf32>
    %86 = tpu.matmul %83, %85, %cst_83 {dimension_numbers = #tpu.dot_dimension_numbers<[1], [0], [0], [1], [0, 0, 1, 1], [], []>} : vector<128x4xbf16>, vector<4x128xbf16>, vector<128x128xf32> -> vector<128x128xf32>
    %c0_84 = arith.constant 0 : index
    %c0_85 = arith.constant 0 : index
    %87 = vector.load %arg7[%c0_84, %c0_85] : memref<128x128xf32, #tpu.memory_space<vmem>>, vector<128x128xf32>
    %88 = arith.addf %87, %86 : vector<128x128xf32>
    %c0_86 = arith.constant 0 : index
    %c0_87 = arith.constant 0 : index
    %89 = vector.load %arg7[%c0_86, %c0_87] : memref<128x128xf32, #tpu.memory_space<vmem>>, vector<128x128xf32>
    tpu.vector_store %arg7[%c0_86, %c0_87], %88 {strides = array<i32>} : memref<128x128xf32, #tpu.memory_space<vmem>>, vector<128x128xf32>,
    %c0_88 = arith.constant 0 : index
    %c0_89 = arith.constant 0 : index
    %90 = vector.load %arg7[%c0_88, %c0_89] : memref<128x128xf32, #tpu.memory_space<vmem>>, vector<128x128xf32>
    %cst_90 = arith.constant dense<0.000000e+00> : vector<128xf32>
    %91 = vector.multi_reduction <add>, %90, %cst_90 [0] : vector<128x128xf32> to vector<128xf32>
    %92 = vector.shape_cast %91 : vector<128xf32> to vector<1x128xf32>
    %93 = vector.shape_cast %92 : vector<1x128xf32> to vector<1x1x1x128xf32>
    %c0_91 = arith.constant 0 : index
    %c0_92 = arith.constant 0 : index
    %c0_93 = arith.constant 0 : index
    %c0_94 = arith.constant 0 : index
    %94 = vector.load %arg5[%c0_91, %c0_92, %c0_93, %c0_94] : memref<1x1x1x128xf32, #tpu.memory_space<vmem>>, vector<1x1x1x128xf32>
    tpu.vector_store %arg5[%c0_91, %c0_92, %c0_93, %c0_94], %93 {strides = array<i32>} : memref<1x1x1x128xf32, #tpu.memory_space<vmem>>, vector<1x1x1x128xf32>,
    %95 = arith.mulf %90, %90 : vector<128x128xf32>
    %cst_95 = arith.constant dense<0.000000e+00> : vector<128xf32>
    %96 = vector.multi_reduction <add>, %95, %cst_95 [0] : vector<128x128xf32> to vector<128xf32>
    %97 = vector.shape_cast %96 : vector<128xf32> to vector<1x128xf32>
    %98 = vector.shape_cast %97 : vector<1x128xf32> to vector<1x1x1x128xf32>
    %c0_96 = arith.constant 0 : index
    %c0_97 = arith.constant 0 : index
    %c0_98 = arith.constant 0 : index
    %c0_99 = arith.constant 0 : index
    %99 = vector.load %arg6[%c0_96, %c0_97, %c0_98, %c0_99] : memref<1x1x1x128xf32, #tpu.memory_space<vmem>>, vector<1x1x1x128xf32>
    tpu.vector_store %arg6[%c0_96, %c0_97, %c0_98, %c0_99], %98 {strides = array<i32>} : memref<1x1x1x128xf32, #tpu.memory_space<vmem>>, vector<1x1x1x128xf32>,
    %100 = tpu.transpose %90, [1, 0] : vector<128x128xf32> -> vector<128x128xf32>
    %101 = vector.extract_strided_slice %100 {offsets = [0, 0], sizes = [8, 128], strides = [1, 1]} : vector<128x128xf32> to vector<8x128xf32>
    %102 = arith.truncf %101 : vector<8x128xf32> to vector<8x128xbf16>
    %c0_100 = arith.constant 0 : index
    %c0_101 = arith.constant 0 : index
    %c0_102 = arith.constant 0 : index
    %103 = vector.load %arg4[%c0_100, %c0_101, %c0_102] : memref<1x8x128xbf16, #tpu.memory_space<vmem>>, vector<1x8x128xbf16>
    %104 = vector.shape_cast %103 : vector<1x8x128xbf16> to vector<8x128xbf16>
    %105 = vector.shape_cast %102 : vector<8x128xbf16> to vector<1x8x128xbf16>
    tpu.vector_store %arg4[%c0_100, %c0_101, %c0_102], %105 {strides = array<i32>} : memref<1x8x128xbf16, #tpu.memory_space<vmem>>, vector<1x8x128xbf16>,
    return
  }
  func.func @transform_0(%arg0: i32, %arg1: i32) -> (i32, i32, i32, i32) {
    %c0_i32 = arith.constant 0 : i32
    %c0_i32_0 = arith.constant 0 : i32
    %c0_i32_1 = arith.constant 0 : i32
    %c0_i32_2 = arith.constant 0 : i32
    return %arg0, %c0_i32, %c0_i32_0, %c0_i32_1 : i32, i32, i32, i32
  }
  func.func @transform_1(%arg0: i32, %arg1: i32) -> (i32, i32, i32) {
    %c0_i32 = arith.constant 0 : i32
    %c0_i32_0 = arith.constant 0 : i32
    %c0_i32_1 = arith.constant 0 : i32
    %c0_i32_2 = arith.constant 0 : i32
    return %c0_i32, %c0_i32_0, %c0_i32_1 : i32, i32, i32
  }
  func.func @transform_2(%arg0: i32, %arg1: i32) -> (i32, i32, i32) {
    %c0_i32 = arith.constant 0 : i32
    %c0_i32_0 = arith.constant 0 : i32
    return %arg0, %c0_i32, %arg1 : i32, i32, i32
  }
  func.func @transform_3(%arg0: i32, %arg1: i32) -> (i32, i32, i32, i32) {
    %c0_i32 = arith.constant 0 : i32
    %c0_i32_0 = arith.constant 0 : i32
    %c0_i32_1 = arith.constant 0 : i32
    return %arg0, %arg1, %c0_i32, %c0_i32_0 : i32, i32, i32, i32
  }
  func.func @transform_4(%arg0: i32, %arg1: i32) -> (i32, i32, i32, i32) {
    %c0_i32 = arith.constant 0 : i32
    %c0_i32_0 = arith.constant 0 : i32
    %c0_i32_1 = arith.constant 0 : i32
    return %arg0, %arg1, %c0_i32, %c0_i32_0 : i32, i32, i32, i32
  }
}

</mosaic_0001>

<llo_original>
// kernel: unit_tcn_skip_forward.3
$region0: #{unit_tcn_skip_forward.3}
  #allocation0 [shape = 'u32[]', space=smem, size = 0x4, offset = 0x4, fixed_abs, tag = 'smem constant byte address 0x4 - core index']
  #allocation1 [shape = 'u32[144,128]{1,0:T(1,128)}', space=vmem, size = 0x12000, scoped, tag = 'internal scratch']
  %s0 = inlined_call_operand.vmem [shape: bf16[2,8,256], index: 0, kind: input, shape index: {}]
  %s1 = inlined_call_operand.vmem [shape: f32[8,1], index: 1, kind: input, shape index: {}]
  %s2 = inlined_call_operand.vmem [shape: f32[8,1], index: 2, kind: input, shape index: {}]
  %s3 = inlined_call_operand.vmem [shape: f32[2,8,256], index: 3, kind: output, shape index: {}]
  %s4 = sld [smem:[#allocation0]]
  $region45: #{unit_tcn_skip_forward.3} parent=0
    _
  %s6 = ssub.s32 1, %s4
  %s7 = scalar_select 0, %s6, %s4
  loop: start=0, step=1, limit=6
  $region2: #{unit_tcn_skip_forward.3} parent=0 // loop_pre_header
    _
  $region3: #{unit_tcn_skip_forward.3} parent=0 // loop_header
    %s9 = sphi 0, %s13
    %p10 = scmp.ge.s32.totalorder %s9, 6
    %s16 = sphi 0, %s28
    %s17 = sphi 0, %s24
    %s18 = sphi 0, %s16
    %s19 = sphi 0, %s17
    %s20 = sphi 0, %s18
    %s21 = sphi 0, %s19
    %s33 = sphi 0, %s35
    %s36 = sphi 0, %s33
    %s37 = sphi 0, %s36
    %s53 = sphi 0, %s37
    %s57 = sphi 0, %s57
    %s59 = sphi 0, %s57
    %s60 = sphi 0, %s59
    %s74 = sphi 0, %s60
    %s78 = sphi 0, %s78
    %s80 = sphi 0, %s78
    %s81 = sphi 0, %s80
    %s95 = sphi 0, %s81
    %s103 = sphi 0, %s105
    %s106 = sphi 0, %s103
    %s107 = sphi 0, %s106
    %s123 = sphi 0, %s107
  $region4: #{unit_tcn_skip_forward.3} parent=0 // loop_header_branch
    %12 = sbr.rel (%p10) target = $region8
  $region5: #{unit_tcn_skip_forward.3} parent=0 // loop_body
    %s14 = ssub.s32 %s9, 1
    %s15 = ssub.s32 %s9, 2
    %s22 = sadd.s32 1, %s17
    %p23 = scmp.ge.s32.totalorder %s22, 2
    %s24 = scalar_select %p23, 0, %s22
    %s25 = sadd.s32 1, %s16
    %s26 = scalar_select %p23, %s25, %s16
    %p27 = scmp.ge.s32.totalorder %s26, 2
    %s28 = scalar_select %p27, 0, %s26
    %s29 = ssub.s32 %s16, %s28
    %s30 = ssub.s32 %s17, %s24
    %s31 = sor.u32 %s29, %s30
    %p32 = scmp.eq.s32.totalorder %s31, 0
    %s34 = sadd.s32 %s33, 1
    %s35 = scalar_select %p32, %s33, %s34
    %p38 = pneg %p32
    %p39 = scmp.eq.s32.totalorder %s9, 3
    %p40 = por %p38, %p39
    %p41 = scmp.ne.s32.totalorder %s33, %s36
    %p42 = scmp.eq.s32.totalorder %s9, 0
    %p43 = por %p41, %p42
    %p44 = scmp.ne.s32.totalorder %s33, %s36
    %p45 = scmp.eq.s32.totalorder %s14, 3
    %p46 = por %p44, %p45
    %p47 = scmp.ne.s32.totalorder %s36, %s37
    %p48 = scmp.eq.s32.totalorder %s14, 0
    %p49 = por %p47, %p48
    %p50 = scmp.ne.s32.totalorder %s36, %s37
    %p51 = scmp.eq.s32.totalorder %s15, 3
    %p52 = por %p50, %p51
    %p54 = scmp.ne.s32.totalorder %s37, %s53
    %p55 = scmp.eq.s32.totalorder %s15, 0
    %p56 = por %p54, %p55
    %s58 = sadd.s32 %s57, 1
    %p61 = scmp.eq.s32.totalorder %s9, 3
    %p62 = scmp.ne.s32.totalorder %s57, %s59
    %p63 = scmp.eq.s32.totalorder %s9, 0
    %p64 = por %p62, %p63
    %p65 = scmp.ne.s32.totalorder %s57, %s59
    %p66 = scmp.eq.s32.totalorder %s14, 3
    %p67 = por %p65, %p66
    %p68 = scmp.ne.s32.totalorder %s59, %s60
    %p69 = scmp.eq.s32.totalorder %s14, 0
    %p70 = por %p68, %p69
    %p71 = scmp.ne.s32.totalorder %s59, %s60
    %p72 = scmp.eq.s32.totalorder %s15, 3
    %p73 = por %p71, %p72
    %p75 = scmp.ne.s32.totalorder %s60, %s74
    %p76 = scmp.eq.s32.totalorder %s15, 0
    %p77 = por %p75, %p76
    %s79 = sadd.s32 %s78, 1
    %p82 = scmp.eq.s32.totalorder %s9, 3
    %p83 = scmp.ne.s32.totalorder %s78, %s80
    %p84 = scmp.eq.s32.totalorder %s9, 0
    %p85 = por %p83, %p84
    %p86 = scmp.ne.s32.totalorder %s78, %s80
    %p87 = scmp.eq.s32.totalorder %s14, 3
    %p88 = por %p86, %p87
    %p89 = scmp.ne.s32.totalorder %s80, %s81
    %p90 = scmp.eq.s32.totalorder %s14, 0
    %p91 = por %p89, %p90
    %p92 = scmp.ne.s32.totalorder %s80, %s81
    %p93 = scmp.eq.s32.totalorder %s15, 3
    %p94 = por %p92, %p93
    %p96 = scmp.ne.s32.totalorder %s81, %s95
    %p97 = scmp.eq.s32.totalorder %s15, 0
    %p98 = por %p96, %p97
    %s99 = ssub.s32 %s16, %s28
    %s100 = ssub.s32 %s17, %s24
    %s101 = sor.u32 %s99, %s100
    %p102 = scmp.eq.s32.totalorder %s101, 0
    %s104 = sadd.s32 %s103, 1
    %s105 = scalar_select %p102, %s103, %s104
    %p108 = pneg %p102
    %p109 = scmp.eq.s32.totalorder %s9, 3
    %p110 = por %p108, %p109
    %p111 = scmp.ne.s32.totalorder %s103, %s106
    %p112 = scmp.eq.s32.totalorder %s9, 0
    %p113 = por %p111, %p112
    %p114 = scmp.ne.s32.totalorder %s103, %s106
    %p115 = scmp.eq.s32.totalorder %s14, 3
    %p116 = por %p114, %p115
    %p117 = scmp.ne.s32.totalorder %s106, %s107
    %p118 = scmp.eq.s32.totalorder %s14, 0
    %p119 = por %p117, %p118
    %p120 = scmp.ne.s32.totalorder %s106, %s107
    %p121 = scmp.eq.s32.totalorder %s15, 3
    %p122 = por %p120, %p121
    %p124 = scmp.ne.s32.totalorder %s107, %s123
    %p125 = scmp.eq.s32.totalorder %s15, 0
    %p126 = por %p124, %p125
    %p127 = scmp.le.s32.totalorder 1, %s9
    %p128 = scmp.lt.s32.totalorder %s9, 5
    %p129 = pnand %p127, %p128
    %p130 = pneg %p129
    // Predicated region
    $region9: #{unit_tcn_skip_forward.3} parent=5 // pred_check
      _
    $region10: #{unit_tcn_skip_forward.3} parent=5 // pred_check_branch
      %132 = sbr.rel (%p129) target = $region12
    $region11: #{unit_tcn_skip_forward.3} parent=5 // pred_region
      %s133 = ssub.s32 %s9, 1
      // Predicated region
      $region13: #{unit_tcn_skip_forward.3} parent=11 // pred_check
        %p134 = pneg %p70
      $region14: #{unit_tcn_skip_forward.3} parent=11 // pred_check_branch
        %136 = sbr.rel (%p134) target = $region16
      $region15: #{unit_tcn_skip_forward.3} parent=11 // pred_region
        _
      $region16: #{unit_tcn_skip_forward.3} parent=11 // pred_fallthru
        _
      // Predicated region
      $region17: #{unit_tcn_skip_forward.3} parent=11 // pred_check
        %p137 = pneg %p91
      $region18: #{unit_tcn_skip_forward.3} parent=11 // pred_check_branch
        %139 = sbr.rel (%p137) target = $region20
      $region19: #{unit_tcn_skip_forward.3} parent=11 // pred_region
        _
      $region20: #{unit_tcn_skip_forward.3} parent=11 // pred_fallthru
        _
    $region12: #{unit_tcn_skip_forward.3} parent=5 // pred_fallthru
      _
    %p140 = scmp.lt.s32.totalorder %s9, 4
    // Predicated region
    $region21: #{unit_tcn_skip_forward.3} parent=5 // pred_check
      %p141 = pneg %p140
    $region22: #{unit_tcn_skip_forward.3} parent=5 // pred_check_branch
      %143 = sbr.rel (%p141) target = $region24
    $region23: #{unit_tcn_skip_forward.3} parent=5 // pred_region
      // Predicated region
      $region25: #{unit_tcn_skip_forward.3} parent=23 // pred_check
        %p144 = pneg %p43
      $region26: #{unit_tcn_skip_forward.3} parent=23 // pred_check_branch
        %146 = sbr.rel (%p144) target = $region28
      $region27: #{unit_tcn_skip_forward.3} parent=23 // pred_region
        %p147 = scmp.lt.s32.totalorder %s16, 1
        %s148 = scalar_select %p147, %s16, 1
        %p149 = scmp.lt.s32.totalorder %s17, 1
        %s150 = scalar_select %p149, %s17, 1
        %s151 = smul.addr %s148, 2
        %s152 = sadd.s32 %s150, %s151
        %s153 = smul.addr %s152, 4
        %s154 = scalar_lea.vmem %s0, %s153
      $region28: #{unit_tcn_skip_forward.3} parent=23 // pred_fallthru
        _
    $region24: #{unit_tcn_skip_forward.3} parent=5 // pred_fallthru
      _
    %p155 = scmp.le.s32.totalorder 1, %s9
    %p156 = scmp.lt.s32.totalorder %s9, 5
    %p157 = pnand %p155, %p156
    %p158 = pneg %p157
    // Predicated region
    $region29: #{unit_tcn_skip_forward.3} parent=5 // pred_check
      _
    $region30: #{unit_tcn_skip_forward.3} parent=5 // pred_check_branch
      %160 = sbr.rel (%p157) target = $region32
    $region31: #{unit_tcn_skip_forward.3} parent=5 // pred_region
      %s161 = ssub.s32 %s9, 1
      %p162 = scmp.lt.s32.totalorder %s18, 1
      %s163 = scalar_select %p162, %s18, 1
      %p164 = scmp.lt.s32.totalorder %s19, 1
      %s165 = scalar_select %p164, %s19, 1
      %s166 = smul.addr %s163, 2
      %s167 = sadd.s32 %s165, %s166
      %s168 = smul.addr %s167, 4
      %s169 = scalar_lea.vmem %s0, %s168
      %p170 = pneg %p49
      %p171 = pneg %p46
      %p172 = pneg %p70
      %p173 = pneg %p67
      %p174 = pneg %p91
      %p175 = pneg %p88
      %p176 = pneg %p119
      %p177 = pneg %p116
      %p178 = scmp.lt.s32.totalorder %s18, 1
      %s179 = scalar_select %p178, %s18, 1
      %p180 = scmp.lt.s32.totalorder %s19, 1
      %s181 = scalar_select %p180, %s19, 1
      %s182 = smul.addr %s179, 2
      %s183 = sadd.s32 %s181, %s182
      %s184 = smul.addr %s183, 8
      %s185 = scalar_lea.vmem %s3, %s184
      %p186 = scmp.lt.s32.totalorder %s18, 1
      %s187 = scalar_select %p186, %s18, 1
      %p188 = scmp.lt.s32.totalorder %s19, 1
      %s189 = scalar_select %p188, %s19, 1
      %s190 = smul.addr %s187, 2
      %s191 = sadd.s32 %s189, %s190
      %s192 = smul.addr %s191, 4
      %s193 = scalar_lea.vmem %s0, %s192
      %p194 = scmp.lt.s32.totalorder %s18, 1
      %s195 = scalar_select %p194, %s18, 1
      %p196 = scmp.lt.s32.totalorder %s19, 1
      %s197 = scalar_select %p196, %s19, 1
      %s198 = smul.addr %s195, 2
      %s199 = sadd.s32 %s197, %s198
      %s200 = smul.addr %s199, 8
      %s201 = scalar_lea.vmem %s3, %s200
      %v202 = vld [vmem:[%s193] sm:$0xf]
      %v203 = vunpack.c.l.bf16 %v202
      %v204 = vld [vmem:[%s1] sm:$0xff]
      %206 = vset.pattern.permute.xlu0 0
      %207 = vperm.xlu0 %206, %v204
      %v208 = vpop.permute.xlu0 %207
      %v210 = vmul.f32 %v203, %v208
      %v211 = vld [vmem:[%s2] sm:$0xff]
      %213 = vset.pattern.permute.xlu0 0
      %214 = vperm.xlu0 %213, %v211
      %v215 = vpop.permute.xlu0 %214
      %v217 = vadd.f32 %v210, %v215
      %218 = vst [vmem:[%s201] sm:$0xff] %v217
      %p219 = scmp.lt.s32.totalorder %s18, 1
      %s220 = scalar_select %p219, %s18, 1
      %p221 = scmp.lt.s32.totalorder %s19, 1
      %s222 = scalar_select %p221, %s19, 1
      %s223 = smul.addr %s220, 2
      %s224 = sadd.s32 %s222, %s223
      %s225 = smul.addr %s224, 8
      %s226 = scalar_lea.vmem %s3, %s225
      // Predicated region
      $region33: #{unit_tcn_skip_forward.3} parent=31 // pred_check
        %p227 = pneg %p116
      $region34: #{unit_tcn_skip_forward.3} parent=31 // pred_check_branch
        %229 = sbr.rel (%p227) target = $region36
      $region35: #{unit_tcn_skip_forward.3} parent=31 // pred_region
        _
      $region36: #{unit_tcn_skip_forward.3} parent=31 // pred_fallthru
        _
    $region32: #{unit_tcn_skip_forward.3} parent=5 // pred_fallthru
      _
    %p230 = scmp.le.s32.totalorder 2, %s9
    // Predicated region
    $region37: #{unit_tcn_skip_forward.3} parent=5 // pred_check
      %p231 = pneg %p230
    $region38: #{unit_tcn_skip_forward.3} parent=5 // pred_check_branch
      %233 = sbr.rel (%p231) target = $region40
    $region39: #{unit_tcn_skip_forward.3} parent=5 // pred_region
      %s234 = ssub.s32 %s9, 2
      // Predicated region
      $region41: #{unit_tcn_skip_forward.3} parent=39 // pred_check
        %p235 = pneg %p122
      $region42: #{unit_tcn_skip_forward.3} parent=39 // pred_check_branch
        %237 = sbr.rel (%p235) target = $region44
      $region43: #{unit_tcn_skip_forward.3} parent=39 // pred_region
        %p238 = scmp.lt.s32.totalorder %s20, 1
        %s239 = scalar_select %p238, %s20, 1
        %p240 = scmp.lt.s32.totalorder %s21, 1
        %s241 = scalar_select %p240, %s21, 1
        %s242 = smul.addr %s239, 2
        %s243 = sadd.s32 %s241, %s242
        %s244 = smul.addr %s243, 8
        %s245 = scalar_lea.vmem %s3, %s244
      $region44: #{unit_tcn_skip_forward.3} parent=39 // pred_fallthru
        _
    $region40: #{unit_tcn_skip_forward.3} parent=5 // pred_fallthru
      _
  $region6: #{unit_tcn_skip_forward.3} parent=0 // loop_footer
    %s13 = sadd.s32 1, %s9
  $region7: #{unit_tcn_skip_forward.3} parent=0 // loop_footer_branch
    %8 = sbr.rel target = $region3
  $region8: #{unit_tcn_skip_forward.3} parent=0 // loop_exit
    _

// kernel: unit_tcn_skip_forward.2
$region0: #{unit_tcn_skip_forward.2}
  #allocation0 [shape = 'u32[]', space=smem, size = 0x4, offset = 0x4, fixed_abs, tag = 'smem constant byte address 0x4 - core index']
  #allocation1 [shape = 'u32[144,128]{1,0:T(1,128)}', space=vmem, size = 0x12000, scoped, tag = 'internal scratch']
  #allocation2 [shape = 'f32[128,128]{1,0:T(8,128)}', space=vmem, size = 0x10000, scoped, tag = 'scratch operand']
  %s0 = inlined_call_operand.vmem [shape: bf16[2,1,384,4], index: 0, kind: input, shape index: {}]
  %s1 = inlined_call_operand.vmem [shape: bf16[9,4,128], index: 1, kind: input, shape index: {}]
  %s2 = inlined_call_operand.vmem [shape: bf16[2,8,256], index: 2, kind: output, shape index: {0}]
  %s3 = inlined_call_operand.vmem [shape: f32[2,2,1,128], index: 3, kind: output, shape index: {1}]
  %s4 = inlined_call_operand.vmem [shape: f32[2,2,1,128], index: 4, kind: output, shape index: {2}]
  %5 = xla_tuple %s2, %s3, %s4
  %s6 = sld [smem:[#allocation0]]
  $region57: #{unit_tcn_skip_forward.2} parent=0
    _
  %s8 = ssub.s32 1, %s6
  %s9 = scalar_select 0, %s8, %s6
  loop: start=0, step=1, limit=6
  $region2: #{unit_tcn_skip_forward.2} parent=0 // loop_pre_header
    _
  $region3: #{unit_tcn_skip_forward.2} parent=0 // loop_header
    %s11 = sphi 0, %s15
    %p12 = scmp.ge.s32.totalorder %s11, 6
    %s18 = sphi 0, %s30
    %s19 = sphi 0, %s26
    %s20 = sphi 0, %s18
    %s21 = sphi 0, %s19
    %s22 = sphi 0, %s20
    %s23 = sphi 0, %s21
    %s33 = sphi 0, %s35
    %s36 = sphi 0, %s33
    %s37 = sphi 0, %s36
    %s53 = sphi 0, %s37
    %s57 = sphi 0, %s57
    %s59 = sphi 0, %s57
    %s60 = sphi 0, %s59
    %s74 = sphi 0, %s60
    %s82 = sphi 0, %s84
    %s85 = sphi 0, %s82
    %s86 = sphi 0, %s85
    %s102 = sphi 0, %s86
    %s110 = sphi 0, %s112
    %s113 = sphi 0, %s110
    %s114 = sphi 0, %s113
    %s130 = sphi 0, %s114
    %s138 = sphi 0, %s140
    %s141 = sphi 0, %s138
    %s142 = sphi 0, %s141
    %s158 = sphi 0, %s142
  $region4: #{unit_tcn_skip_forward.2} parent=0 // loop_header_branch
    %14 = sbr.rel (%p12) target = $region8
  $region5: #{unit_tcn_skip_forward.2} parent=0 // loop_body
    %s16 = ssub.s32 %s11, 1
    %s17 = ssub.s32 %s11, 2
    %s24 = sadd.s32 1, %s19
    %p25 = scmp.ge.s32.totalorder %s24, 2
    %s26 = scalar_select %p25, 0, %s24
    %s27 = sadd.s32 1, %s18
    %s28 = scalar_select %p25, %s27, %s18
    %p29 = scmp.ge.s32.totalorder %s28, 2
    %s30 = scalar_select %p29, 0, %s28
    %s31 = ssub.s32 %s18, %s30
    %p32 = scmp.eq.s32.totalorder %s31, 0
    %s34 = sadd.s32 %s33, 1
    %s35 = scalar_select %p32, %s33, %s34
    %p38 = pneg %p32
    %p39 = scmp.eq.s32.totalorder %s11, 3
    %p40 = por %p38, %p39
    %p41 = scmp.ne.s32.totalorder %s33, %s36
    %p42 = scmp.eq.s32.totalorder %s11, 0
    %p43 = por %p41, %p42
    %p44 = scmp.ne.s32.totalorder %s33, %s36
    %p45 = scmp.eq.s32.totalorder %s16, 3
    %p46 = por %p44, %p45
    %p47 = scmp.ne.s32.totalorder %s36, %s37
    %p48 = scmp.eq.s32.totalorder %s16, 0
    %p49 = por %p47, %p48
    %p50 = scmp.ne.s32.totalorder %s36, %s37
    %p51 = scmp.eq.s32.totalorder %s17, 3
    %p52 = por %p50, %p51
    %p54 = scmp.ne.s32.totalorder %s37, %s53
    %p55 = scmp.eq.s32.totalorder %s17, 0
    %p56 = por %p54, %p55
    %s58 = sadd.s32 %s57, 1
    %p61 = scmp.eq.s32.totalorder %s11, 3
    %p62 = scmp.ne.s32.totalorder %s57, %s59
    %p63 = scmp.eq.s32.totalorder %s11, 0
    %p64 = por %p62, %p63
    %p65 = scmp.ne.s32.totalorder %s57, %s59
    %p66 = scmp.eq.s32.totalorder %s16, 3
    %p67 = por %p65, %p66
    %p68 = scmp.ne.s32.totalorder %s59, %s60
    %p69 = scmp.eq.s32.totalorder %s16, 0
    %p70 = por %p68, %p69
    %p71 = scmp.ne.s32.totalorder %s59, %s60
    %p72 = scmp.eq.s32.totalorder %s17, 3
    %p73 = por %p71, %p72
    %p75 = scmp.ne.s32.totalorder %s60, %s74
    %p76 = scmp.eq.s32.totalorder %s17, 0
    %p77 = por %p75, %p76
    %s78 = ssub.s32 %s18, %s30
    %s79 = ssub.s32 %s19, %s26
    %s80 = sor.u32 %s78, %s79
    %p81 = scmp.eq.s32.totalorder %s80, 0
    %s83 = sadd.s32 %s82, 1
    %s84 = scalar_select %p81, %s82, %s83
    %p87 = pneg %p81
    %p88 = scmp.eq.s32.totalorder %s11, 3
    %p89 = por %p87, %p88
    %p90 = scmp.ne.s32.totalorder %s82, %s85
    %p91 = scmp.eq.s32.totalorder %s11, 0
    %p92 = por %p90, %p91
    %p93 = scmp.ne.s32.totalorder %s82, %s85
    %p94 = scmp.eq.s32.totalorder %s16, 3
    %p95 = por %p93, %p94
    %p96 = scmp.ne.s32.totalorder %s85, %s86
    %p97 = scmp.eq.s32.totalorder %s16, 0
    %p98 = por %p96, %p97
    %p99 = scmp.ne.s32.totalorder %s85, %s86
    %p100 = scmp.eq.s32.totalorder %s17, 3
    %p101 = por %p99, %p100
    %p103 = scmp.ne.s32.totalorder %s86, %s102
    %p104 = scmp.eq.s32.totalorder %s17, 0
    %p105 = por %p103, %p104
    %s106 = ssub.s32 %s18, %s30
    %s107 = ssub.s32 %s19, %s26
    %s108 = sor.u32 %s106, %s107
    %p109 = scmp.eq.s32.totalorder %s108, 0
    %s111 = sadd.s32 %s110, 1
    %s112 = scalar_select %p109, %s110, %s111
    %p115 = pneg %p109
    %p116 = scmp.eq.s32.totalorder %s11, 3
    %p117 = por %p115, %p116
    %p118 = scmp.ne.s32.totalorder %s110, %s113
    %p119 = scmp.eq.s32.totalorder %s11, 0
    %p120 = por %p118, %p119
    %p121 = scmp.ne.s32.totalorder %s110, %s113
    %p122 = scmp.eq.s32.totalorder %s16, 3
    %p123 = por %p121, %p122
    %p124 = scmp.ne.s32.totalorder %s113, %s114
    %p125 = scmp.eq.s32.totalorder %s16, 0
    %p126 = por %p124, %p125
    %p127 = scmp.ne.s32.totalorder %s113, %s114
    %p128 = scmp.eq.s32.totalorder %s17, 3
    %p129 = por %p127, %p128
    %p131 = scmp.ne.s32.totalorder %s114, %s130
    %p132 = scmp.eq.s32.totalorder %s17, 0
    %p133 = por %p131, %p132
    %s134 = ssub.s32 %s18, %s30
    %s135 = ssub.s32 %s19, %s26
    %s136 = sor.u32 %s134, %s135
    %p137 = scmp.eq.s32.totalorder %s136, 0
    %s139 = sadd.s32 %s138, 1
    %s140 = scalar_select %p137, %s138, %s139
    %p143 = pneg %p137
    %p144 = scmp.eq.s32.totalorder %s11, 3
    %p145 = por %p143, %p144
    %p146 = scmp.ne.s32.totalorder %s138, %s141
    %p147 = scmp.eq.s32.totalorder %s11, 0
    %p148 = por %p146, %p147
    %p149 = scmp.ne.s32.totalorder %s138, %s141
    %p150 = scmp.eq.s32.totalorder %s16, 3
    %p151 = por %p149, %p150
    %p152 = scmp.ne.s32.totalorder %s141, %s142
    %p153 = scmp.eq.s32.totalorder %s16, 0
    %p154 = por %p152, %p153
    %p155 = scmp.ne.s32.totalorder %s141, %s142
    %p156 = scmp.eq.s32.totalorder %s17, 3
    %p157 = por %p155, %p156
    %p159 = scmp.ne.s32.totalorder %s142, %s158
    %p160 = scmp.eq.s32.totalorder %s17, 0
    %p161 = por %p159, %p160
    %p162 = scmp.le.s32.totalorder 1, %s11
    %p163 = scmp.lt.s32.totalorder %s11, 5
    %p164 = pnand %p162, %p163
    %p165 = pneg %p164
    // Predicated region
    $region9: #{unit_tcn_skip_forward.2} parent=5 // pred_check
      _
    $region10: #{unit_tcn_skip_forward.2} parent=5 // pred_check_branch
      %167 = sbr.rel (%p164) target = $region12
    $region11: #{unit_tcn_skip_forward.2} parent=5 // pred_region
      %s168 = ssub.s32 %s11, 1
      // Predicated region
      $region13: #{unit_tcn_skip_forward.2} parent=11 // pred_check
        %p169 = pneg %p70
      $region14: #{unit_tcn_skip_forward.2} parent=11 // pred_check_branch
        %171 = sbr.rel (%p169) target = $region16
      $region15: #{unit_tcn_skip_forward.2} parent=11 // pred_region
        _
      $region16: #{unit_tcn_skip_forward.2} parent=11 // pred_fallthru
        _
    $region12: #{unit_tcn_skip_forward.2} parent=5 // pred_fallthru
      _
    %p172 = scmp.lt.s32.totalorder %s11, 4
    // Predicated region
    $region17: #{unit_tcn_skip_forward.2} parent=5 // pred_check
      %p173 = pneg %p172
    $region18: #{unit_tcn_skip_forward.2} parent=5 // pred_check_branch
      %175 = sbr.rel (%p173) target = $region20
    $region19: #{unit_tcn_skip_forward.2} parent=5 // pred_region
      // Predicated region
      $region21: #{unit_tcn_skip_forward.2} parent=19 // pred_check
        %p176 = pneg %p43
      $region22: #{unit_tcn_skip_forward.2} parent=19 // pred_check_branch
        %178 = sbr.rel (%p176) target = $region24
      $region23: #{unit_tcn_skip_forward.2} parent=19 // pred_region
        %p179 = scmp.lt.s32.totalorder %s18, 1
        %s180 = scalar_select %p179, %s18, 1
        %s181 = smul.addr %s180, 48
        %s182 = smul.addr %s181, 4
        %s183 = scalar_lea.vmem %s0, %s182
      $region24: #{unit_tcn_skip_forward.2} parent=19 // pred_fallthru
        _
    $region20: #{unit_tcn_skip_forward.2} parent=5 // pred_fallthru
      _
    %p184 = scmp.le.s32.totalorder 1, %s11
    %p185 = scmp.lt.s32.totalorder %s11, 5
    %p186 = pnand %p184, %p185
    %p187 = pneg %p186
    // Predicated region
    $region25: #{unit_tcn_skip_forward.2} parent=5 // pred_check
      _
    $region26: #{unit_tcn_skip_forward.2} parent=5 // pred_check_branch
      %189 = sbr.rel (%p186) target = $region28
    $region27: #{unit_tcn_skip_forward.2} parent=5 // pred_region
      %s190 = ssub.s32 %s11, 1
      %p191 = scmp.lt.s32.totalorder %s20, 1
      %s192 = scalar_select %p191, %s20, 1
      %s193 = smul.addr %s192, 48
      %s194 = smul.addr %s193, 4
      %s195 = scalar_lea.vmem %s0, %s194
      %p196 = pneg %p49
      %p197 = pneg %p46
      %p198 = pneg %p70
      %p199 = pneg %p67
      %p200 = pneg %p98
      %p201 = pneg %p95
      %p202 = scmp.lt.s32.totalorder %s20, 1
      %s203 = scalar_select %p202, %s20, 1
      %p204 = scmp.lt.s32.totalorder %s21, 1
      %s205 = scalar_select %p204, %s21, 1
      %s206 = smul.addr %s203, 2
      %s207 = sadd.s32 %s205, %s206
      %s208 = smul.addr %s207, 4
      %s209 = scalar_lea.vmem %s2, %s208
      %p210 = pneg %p126
      %p211 = pneg %p123
      %p212 = scmp.lt.s32.totalorder %s20, 1
      %s213 = scalar_select %p212, %s20, 1
      %p214 = scmp.lt.s32.totalorder %s21, 1
      %s215 = scalar_select %p214, %s21, 1
      %s216 = smul.addr %s213, 2
      %s217 = sadd.s32 %s215, %s216
      %s218 = scalar_lea.vmem %s3, %s217
      %p219 = pneg %p154
      %p220 = pneg %p151
      %p221 = scmp.lt.s32.totalorder %s20, 1
      %s222 = scalar_select %p221, %s20, 1
      %p223 = scmp.lt.s32.totalorder %s21, 1
      %s224 = scalar_select %p223, %s21, 1
      %s225 = smul.addr %s222, 2
      %s226 = sadd.s32 %s224, %s225
      %s227 = scalar_lea.vmem %s4, %s226
      %p228 = scmp.lt.s32.totalorder %s20, 1
      %s229 = scalar_select %p228, %s20, 1
      %s230 = smul.addr %s229, 48
      %s231 = smul.addr %s230, 4
      %s232 = scalar_lea.vmem %s0, %s231
      %p233 = scmp.lt.s32.totalorder %s20, 1
      %s234 = scalar_select %p233, %s20, 1
      %p235 = scmp.lt.s32.totalorder %s21, 1
      %s236 = scalar_select %p235, %s21, 1
      %s237 = smul.addr %s234, 2
      %s238 = sadd.s32 %s236, %s237
      %s239 = smul.addr %s238, 4
      %s240 = scalar_lea.vmem %s2, %s239
      %p241 = scmp.lt.s32.totalorder %s20, 1
      %s242 = scalar_select %p241, %s20, 1
      %p243 = scmp.lt.s32.totalorder %s21, 1
      %s244 = scalar_select %p243, %s21, 1
      %s245 = smul.addr %s242, 2
      %s246 = sadd.s32 %s244, %s245
      %s247 = scalar_lea.vmem %s3, %s246
      %p248 = scmp.lt.s32.totalorder %s20, 1
      %s249 = scalar_select %p248, %s20, 1
      %p250 = scmp.lt.s32.totalorder %s21, 1
      %s251 = scalar_select %p250, %s21, 1
      %s252 = smul.addr %s249, 2
      %s253 = sadd.s32 %s251, %s252
      %s254 = scalar_lea.vmem %s4, %s253
      %s256 = smul.u32 %s21, 128
      %s257 = sshra.s32 %s256, 3
      %s258 = sand.u32 %s256, 7
      %s259 = smul.addr %s257, 4
      %s260 = scalar_lea.vmem %s232, %s259
      %v261 = vld [vmem:[%s260] sm:$0xf]
      %v262 = vld [vmem:[%s260 + $0x4] sm:$0xf]
      %v263 = vld [vmem:[%s260 + $0x8] sm:$0xf]
      %v264 = vld [vmem:[%s260 + $0xc] sm:$0xf]
      %v265 = vld [vmem:[%s260 + $0x10] sm:$0xf]
      %v266 = vld [vmem:[%s260 + $0x14] sm:$0xf]
      %v267 = vld [vmem:[%s260 + $0x18] sm:$0xf]
      %v268 = vld [vmem:[%s260 + $0x1c] sm:$0xf]
      %v269 = vld [vmem:[%s260 + $0x20] sm:$0xf]
      %v270 = vld [vmem:[%s260 + $0x24] sm:$0xf]
      %v271 = vld [vmem:[%s260 + $0x28] sm:$0xf]
      %v272 = vld [vmem:[%s260 + $0x2c] sm:$0xf]
      %v273 = vld [vmem:[%s260 + $0x30] sm:$0xf]
      %v274 = vld [vmem:[%s260 + $0x34] sm:$0xf]
      %v275 = vld [vmem:[%s260 + $0x38] sm:$0xf]
      %v276 = vld [vmem:[%s260 + $0x3c] sm:$0xf]
      %v277 = vld [vmem:[%s1] sm:$0x3]
      %v294 = vunpack.c.l.b16 %v261
      %v295 = vunpack.c.l.b16 %v262
      %v296 = vunpack.c.l.b16 %v263
      %v297 = vunpack.c.l.b16 %v264
      %v298 = vunpack.c.l.b16 %v265
      %v299 = vunpack.c.l.b16 %v266
      %v300 = vunpack.c.l.b16 %v267
      %v301 = vunpack.c.l.b16 %v268
      %v302 = vunpack.c.l.b16 %v269
      %v303 = vunpack.c.l.b16 %v270
      %v304 = vunpack.c.l.b16 %v271
      %v305 = vunpack.c.l.b16 %v272
      %v306 = vunpack.c.l.b16 %v273
      %v307 = vunpack.c.l.b16 %v274
      %v308 = vunpack.c.l.b16 %v275
      %v309 = vunpack.c.l.b16 %v276
      %v310 = vpack.c.b16 %v295, %v294
      %v311 = vpack.c.b16 %v297, %v296
      %v312 = vpack.c.b16 %v299, %v298
      %v313 = vpack.c.b16 %v301, %v300
      %v314 = vpack.c.b16 %v303, %v302
      %v315 = vpack.c.b16 %v305, %v304
      %v316 = vpack.c.b16 %v307, %v306
      %v317 = vpack.c.b16 %v309, %v308
      %vm318 = vcmask 31744
      %v320 = vsel %vm318, %v310, 0
      %v323 = vsel %vm318, %v311, 0
      %v326 = vsel %vm318, %v312, 0
      %v329 = vsel %vm318, %v313, 0
      %v332 = vsel %vm318, %v314, 0
      %v335 = vsel %vm318, %v315, 0
      %v338 = vsel %vm318, %v316, 0
      %v341 = vsel %vm318, %v317, 0
      %vm343 = vcmask 1041408
      %v345 = vsel %vm343, %v277, 0
      %347 = vmatprep.subr.bf16.mxu0 0
      %348 = vmatpush1.bf16.msra.mxu0 %v345
      %349 = vmatprep.subr.bf16.mxu0 0
      %350 = vmatpush1.bf16.msra.mxu0 0
      %351 = vmatprep.subr.bf16.mxu0 0
      %352 = vmatpush1.bf16.msra.mxu0 0
      %353 = vmatprep.subr.bf16.mxu0 0
      %354 = vmatpush1.bf16.msra.mxu0 0
      %355 = vmatprep.subr.bf16.mxu0 0
      %356 = vmatpush1.bf16.msra.mxu0 0
      %357 = vmatprep.subr.bf16.mxu0 0
      %358 = vmatpush1.bf16.msra.mxu0 0
      %359 = vmatprep.subr.bf16.mxu0 0
      %360 = vmatpush1.bf16.msra.mxu0 0
      %361 = vmatprep.subr.bf16.mxu0 0
      %362 = vmatpush1.bf16.msra.mxu0 0
      %363 = vmatprep.subr.bf16.mxu0 0
      %364 = vmatpush1.bf16.msra.mxu0 0
      %365 = vmatprep.subr.bf16.mxu0 0
      %366 = vmatpush1.bf16.msra.mxu0 0
      %367 = vmatprep.subr.bf16.mxu0 0
      %368 = vmatpush1.bf16.msra.mxu0 0
      %369 = vmatprep.subr.bf16.mxu0 0
      %370 = vmatpush1.bf16.msra.mxu0 0
      %371 = vmatprep.subr.bf16.mxu0 0
      %372 = vmatpush1.bf16.msra.mxu0 0
      %373 = vmatprep.subr.bf16.mxu0 0
      %374 = vmatpush1.bf16.msra.mxu0 0
      %375 = vmatprep.subr.bf16.mxu0 0
      %376 = vmatpush1.bf16.msra.mxu0 0
      %377 = vmatprep.subr.bf16.mxu0 0
      %378 = vmatpush1.bf16.msra.mxu0 0
      %379 = vmatprep.mubr.bf16.mxu0 0
      %380 = vmatmul.mubr.bf16.gmra.mrb[0].mxu0 %v320
      %v381 = vpop.f32.mrb[0].mxu0
      %v382 = vadd.f32 0.0, %v381
      %v383 = vpop.f32.mrb[0].mxu0
      %v384 = vpop.f32.mrb[0].mxu0
      %v385 = vadd.f32 0.0, %v384
      %v386 = vpop.f32.mrb[0].mxu0
      %387 = vmatprep.mubr.bf16.mxu0 0
      %388 = vmatmul.mubr.bf16.gmra.mrb[0].mxu0 %v323
      %v389 = vpop.f32.mrb[0].mxu0
      %v390 = vadd.f32 0.0, %v389
      %v391 = vpop.f32.mrb[0].mxu0
      %v392 = vpop.f32.mrb[0].mxu0
      %v393 = vadd.f32 0.0, %v392
      %v394 = vpop.f32.mrb[0].mxu0
      %395 = vmatprep.mubr.bf16.mxu0 0
      %396 = vmatmul.mubr.bf16.gmra.mrb[0].mxu0 %v326
      %v397 = vpop.f32.mrb[0].mxu0
      %v398 = vadd.f32 0.0, %v397
      %v399 = vpop.f32.mrb[0].mxu0
      %v400 = vpop.f32.mrb[0].mxu0
      %v401 = vadd.f32 0.0, %v400
      %v402 = vpop.f32.mrb[0].mxu0
      %403 = vmatprep.mubr.bf16.mxu0 0
      %404 = vmatmul.mubr.bf16.gmra.mrb[0].mxu0 %v329
      %v405 = vpop.f32.mrb[0].mxu0
      %v406 = vadd.f32 0.0, %v405
      %v407 = vpop.f32.mrb[0].mxu0
      %v408 = vpop.f32.mrb[0].mxu0
      %v409 = vadd.f32 0.0, %v408
      %v410 = vpop.f32.mrb[0].mxu0
      %411 = vmatprep.mubr.bf16.mxu0 0
      %412 = vmatmul.mubr.bf16.gmra.mrb[0].mxu0 %v332
      %v413 = vpop.f32.mrb[0].mxu0
      %v414 = vadd.f32 0.0, %v413
      %v415 = vpop.f32.mrb[0].mxu0
      %v416 = vpop.f32.mrb[0].mxu0
      %v417 = vadd.f32 0.0, %v416
      %v418 = vpop.f32.mrb[0].mxu0
      %419 = vmatprep.mubr.bf16.mxu0 0
      %420 = vmatmul.mubr.bf16.gmra.mrb[0].mxu0 %v335
      %v421 = vpop.f32.mrb[0].mxu0
      %v422 = vadd.f32 0.0, %v421
      %v423 = vpop.f32.mrb[0].mxu0
      %v424 = vpop.f32.mrb[0].mxu0
      %v425 = vadd.f32 0.0, %v424
      %v426 = vpop.f32.mrb[0].mxu0
      %427 = vmatprep.mubr.bf16.mxu0 0
      %428 = vmatmul.mubr.bf16.gmra.mrb[0].mxu0 %v338
      %v429 = vpop.f32.mrb[0].mxu0
      %v430 = vadd.f32 0.0, %v429
      %v431 = vpop.f32.mrb[0].mxu0
      %v432 = vpop.f32.mrb[0].mxu0
      %v433 = vadd.f32 0.0, %v432
      %v434 = vpop.f32.mrb[0].mxu0
      %435 = vmatprep.mubr.bf16.mxu0 0
      %436 = vmatmul.mubr.bf16.gmra.mrb[0].mxu0 %v341
      %v437 = vpop.f32.mrb[0].mxu0
      %v438 = vadd.f32 0.0, %v437
      %v439 = vpop.f32.mrb[0].mxu0
      %v440 = vpop.f32.mrb[0].mxu0
      %v441 = vadd.f32 0.0, %v440
      %v442 = vpop.f32.mrb[0].mxu0
      %443 = vdwg.mxu0
      %444 = vst [vmem:[#allocation2] sm:$0xff] %v382
      %445 = vst [vmem:[#allocation2 + $0x8] sm:$0xff] %v385
      %446 = vst [vmem:[#allocation2 + $0x10] sm:$0xff] %v390
      %447 = vst [vmem:[#allocation2 + $0x18] sm:$0xff] %v393
      %448 = vst [vmem:[#allocation2 + $0x20] sm:$0xff] %v398
      %449 = vst [vmem:[#allocation2 + $0x28] sm:$0xff] %v401
      %450 = vst [vmem:[#allocation2 + $0x30] sm:$0xff] %v406
      %451 = vst [vmem:[#allocation2 + $0x38] sm:$0xff] %v409
      %452 = vst [vmem:[#allocation2 + $0x40] sm:$0xff] %v414
      %453 = vst [vmem:[#allocation2 + $0x48] sm:$0xff] %v417
      %454 = vst [vmem:[#allocation2 + $0x50] sm:$0xff] %v422
      %455 = vst [vmem:[#allocation2 + $0x58] sm:$0xff] %v425
      %456 = vst [vmem:[#allocation2 + $0x60] sm:$0xff] %v430
      %457 = vst [vmem:[#allocation2 + $0x68] sm:$0xff] %v433
      %458 = vst [vmem:[#allocation2 + $0x70] sm:$0xff] %v438
      %459 = vst [vmem:[#allocation2 + $0x78] sm:$0xff] %v441
      %s460 = sadd.s32 %s256, 16
      %s461 = sshra.s32 %s460, 3
      %s462 = sand.u32 %s460, 7
      %s463 = smul.addr %s461, 4
      %s464 = scalar_lea.vmem %s232, %s463
      %v465 = vld [vmem:[%s464] sm:$0xf]
      %v466 = vld [vmem:[%s464 + $0x4] sm:$0xf]
      %v467 = vld [vmem:[%s464 + $0x8] sm:$0xf]
      %v468 = vld [vmem:[%s464 + $0xc] sm:$0xf]
      %v469 = vld [vmem:[%s464 + $0x10] sm:$0xf]
      %v470 = vld [vmem:[%s464 + $0x14] sm:$0xf]
      %v471 = vld [vmem:[%s464 + $0x18] sm:$0xf]
      %v472 = vld [vmem:[%s464 + $0x1c] sm:$0xf]
      %v473 = vld [vmem:[%s464 + $0x20] sm:$0xf]
      %v474 = vld [vmem:[%s464 + $0x24] sm:$0xf]
      %v475 = vld [vmem:[%s464 + $0x28] sm:$0xf]
      %v476 = vld [vmem:[%s464 + $0x2c] sm:$0xf]
      %v477 = vld [vmem:[%s464 + $0x30] sm:$0xf]
      %v478 = vld [vmem:[%s464 + $0x34] sm:$0xf]
      %v479 = vld [vmem:[%s464 + $0x38] sm:$0xf]
      %v480 = vld [vmem:[%s464 + $0x3c] sm:$0xf]
      %s481 = scalar_lea.vmem %s1, 2
      %v482 = vld [vmem:[%s481] sm:$0x3]
      %v499 = vunpack.c.l.b16 %v465
      %v500 = vunpack.c.l.b16 %v466
      %v501 = vunpack.c.l.b16 %v467
      %v502 = vunpack.c.l.b16 %v468
      %v503 = vunpack.c.l.b16 %v469
      %v504 = vunpack.c.l.b16 %v470
      %v505 = vunpack.c.l.b16 %v471
      %v506 = vunpack.c.l.b16 %v472
      %v507 = vunpack.c.l.b16 %v473
      %v508 = vunpack.c.l.b16 %v474
      %v509 = vunpack.c.l.b16 %v475
      %v510 = vunpack.c.l.b16 %v476
      %v511 = vunpack.c.l.b16 %v477
      %v512 = vunpack.c.l.b16 %v478
      %v513 = vunpack.c.l.b16 %v479
      %v514 = vunpack.c.l.b16 %v480
      %v515 = vpack.c.b16 %v500, %v499
      %v516 = vpack.c.b16 %v502, %v501
      %v517 = vpack.c.b16 %v504, %v503
      %v518 = vpack.c.b16 %v506, %v505
      %v519 = vpack.c.b16 %v508, %v507
      %v520 = vpack.c.b16 %v510, %v509
      %v521 = vpack.c.b16 %v512, %v511
      %v522 = vpack.c.b16 %v514, %v513
      %v524 = vsel %vm318, %v515, 0
      %v527 = vsel %vm318, %v516, 0
      %v530 = vsel %vm318, %v517, 0
      %v533 = vsel %vm318, %v518, 0
      %v536 = vsel %vm318, %v519, 0
      %v539 = vsel %vm318, %v520, 0
      %v542 = vsel %vm318, %v521, 0
      %v545 = vsel %vm318, %v522, 0
      %v548 = vsel %vm343, %v482, 0
      %550 = vmatprep.subr.bf16.mxu0 0
      %551 = vmatpush1.bf16.msra.mxu0 %v548
      %552 = vmatprep.subr.bf16.mxu0 0
      %553 = vmatpush1.bf16.msra.mxu0 0
      %554 = vmatprep.subr.bf16.mxu0 0
      %555 = vmatpush1.bf16.msra.mxu0 0
      %556 = vmatprep.subr.bf16.mxu0 0
      %557 = vmatpush1.bf16.msra.mxu0 0
      %558 = vmatprep.subr.bf16.mxu0 0
      %559 = vmatpush1.bf16.msra.mxu0 0
      %560 = vmatprep.subr.bf16.mxu0 0
      %561 = vmatpush1.bf16.msra.mxu0 0
      %562 = vmatprep.subr.bf16.mxu0 0
      %563 = vmatpush1.bf16.msra.mxu0 0
      %564 = vmatprep.subr.bf16.mxu0 0
      %565 = vmatpush1.bf16.msra.mxu0 0
      %566 = vmatprep.subr.bf16.mxu0 0
      %567 = vmatpush1.bf16.msra.mxu0 0
      %568 = vmatprep.subr.bf16.mxu0 0
      %569 = vmatpush1.bf16.msra.mxu0 0
      %570 = vmatprep.subr.bf16.mxu0 0
      %571 = vmatpush1.bf16.msra.mxu0 0
      %572 = vmatprep.subr.bf16.mxu0 0
      %573 = vmatpush1.bf16.msra.mxu0 0
      %574 = vmatprep.subr.bf16.mxu0 0
      %575 = vmatpush1.bf16.msra.mxu0 0
      %576 = vmatprep.subr.bf16.mxu0 0
      %577 = vmatpush1.bf16.msra.mxu0 0
      %578 = vmatprep.subr.bf16.mxu0 0
      %579 = vmatpush1.bf16.msra.mxu0 0
      %580 = vmatprep.subr.bf16.mxu0 0
      %581 = vmatpush1.bf16.msra.mxu0 0
      %582 = vmatprep.mubr.bf16.mxu0 0
      %583 = vmatmul.mubr.bf16.gmra.mrb[0].mxu0 %v524
      %v584 = vpop.f32.mrb[0].mxu0
      %v585 = vadd.f32 0.0, %v584
      %v586 = vpop.f32.mrb[0].mxu0
      %v587 = vpop.f32.mrb[0].mxu0
      %v588 = vadd.f32 0.0, %v587
      %v589 = vpop.f32.mrb[0].mxu0
      %590 = vmatprep.mubr.bf16.mxu0 0
      %591 = vmatmul.mubr.bf16.gmra.mrb[0].mxu0 %v527
      %v592 = vpop.f32.mrb[0].mxu0
      %v593 = vadd.f32 0.0, %v592
      %v594 = vpop.f32.mrb[0].mxu0
      %v595 = vpop.f32.mrb[0].mxu0
      %v596 = vadd.f32 0.0, %v595
      %v597 = vpop.f32.mrb[0].mxu0
      %598 = vmatprep.mubr.bf16.mxu0 0
      %599 = vmatmul.mubr.bf16.gmra.mrb[0].mxu0 %v530
      %v600 = vpop.f32.mrb[0].mxu0
      %v601 = vadd.f32 0.0, %v600
      %v602 = vpop.f32.mrb[0].mxu0
      %v603 = vpop.f32.mrb[0].mxu0
      %v604 = vadd.f32 0.0, %v603
      %v605 = vpop.f32.mrb[0].mxu0
      %606 = vmatprep.mubr.bf16.mxu0 0
      %607 = vmatmul.mubr.bf16.gmra.mrb[0].mxu0 %v533
      %v608 = vpop.f32.mrb[0].mxu0
      %v609 = vadd.f32 0.0, %v608
      %v610 = vpop.f32.mrb[0].mxu0
      %v611 = vpop.f32.mrb[0].mxu0
      %v612 = vadd.f32 0.0, %v611
      %v613 = vpop.f32.mrb[0].mxu0
      %614 = vmatprep.mubr.bf16.mxu0 0
      %615 = vmatmul.mubr.bf16.gmra.mrb[0].mxu0 %v536
      %v616 = vpop.f32.mrb[0].mxu0
      %v617 = vadd.f32 0.0, %v616
      %v618 = vpop.f32.mrb[0].mxu0
      %v619 = vpop.f32.mrb[0].mxu0
      %v620 = vadd.f32 0.0, %v619
      %v621 = vpop.f32.mrb[0].mxu0
      %622 = vmatprep.mubr.bf16.mxu0 0
      %623 = vmatmul.mubr.bf16.gmra.mrb[0].mxu0 %v539
      %v624 = vpop.f32.mrb[0].mxu0
      %v625 = vadd.f32 0.0, %v624
      %v626 = vpop.f32.mrb[0].mxu0
      %v627 = vpop.f32.mrb[0].mxu0
      %v628 = vadd.f32 0.0, %v627
      %v629 = vpop.f32.mrb[0].mxu0
      %630 = vmatprep.mubr.bf16.mxu0 0
      %631 = vmatmul.mubr.bf16.gmra.mrb[0].mxu0 %v542
      %v632 = vpop.f32.mrb[0].mxu0
      %v633 = vadd.f32 0.0, %v632
      %v634 = vpop.f32.mrb[0].mxu0
      %v635 = vpop.f32.mrb[0].mxu0
      %v636 = vadd.f32 0.0, %v635
      %v637 = vpop.f32.mrb[0].mxu0
      %638 = vmatprep.mubr.bf16.mxu0 0
      %639 = vmatmul.mubr.bf16.gmra.mrb[0].mxu0 %v545
      %v640 = vpop.f32.mrb[0].mxu0
      %v641 = vadd.f32 0.0, %v640
      %v642 = vpop.f32.mrb[0].mxu0
      %v643 = vpop.f32.mrb[0].mxu0
      %v644 = vadd.f32 0.0, %v643
      %v645 = vpop.f32.mrb[0].mxu0
      %646 = vdwg.mxu0
      %v647 = vld [vmem:[#allocation2] sm:$0xff]
      %v648 = vld [vmem:[#allocation2 + $0x8] sm:$0xff]
      %v649 = vld [vmem:[#allocation2 + $0x10] sm:$0xff]
      %v650 = vld [vmem:[#allocation2 + $0x18] sm:$0xff]
      %v651 = vld [vmem:[#allocation2 + $0x20] sm:$0xff]
      %v652 = vld [vmem:[#allocation2 + $0x28] sm:$0xff]
      %v653 = vld [vmem:[#allocation2 + $0x30] sm:$0xff]
      %v654 = vld [vmem:[#allocation2 + $0x38] sm:$0xff]
      %v655 = vld [vmem:[#allocation2 + $0x40] sm:$0xff]
      %v656 = vld [vmem:[#allocation2 + $0x48] sm:$0xff]
      %v657 = vld [vmem:[#allocation2 + $0x50] sm:$0xff]
      %v658 = vld [vmem:[#allocation2 + $0x58] sm:$0xff]
      %v659 = vld [vmem:[#allocation2 + $0x60] sm:$0xff]
      %v660 = vld [vmem:[#allocation2 + $0x68] sm:$0xff]
      %v661 = vld [vmem:[#allocation2 + $0x70] sm:$0xff]
      %v662 = vld [vmem:[#allocation2 + $0x78] sm:$0xff]
      %v663 = vadd.f32 %v647, %v585
      %v664 = vadd.f32 %v648, %v588
      %v665 = vadd.f32 %v649, %v593
      %v666 = vadd.f32 %v650, %v596
      %v667 = vadd.f32 %v651, %v601
      %v668 = vadd.f32 %v652, %v604
      %v669 = vadd.f32 %v653, %v609
      %v670 = vadd.f32 %v654, %v612
      %v671 = vadd.f32 %v655, %v617
      %v672 = vadd.f32 %v656, %v620
      %v673 = vadd.f32 %v657, %v625
      %v674 = vadd.f32 %v658, %v628
      %v675 = vadd.f32 %v659, %v633
      %v676 = vadd.f32 %v660, %v636
      %v677 = vadd.f32 %v661, %v641
      %v678 = vadd.f32 %v662, %v644
      %679 = vst [vmem:[#allocation2] sm:$0xff] %v663
      %680 = vst [vmem:[#allocation2 + $0x8] sm:$0xff] %v664
      %681 = vst [vmem:[#allocation2 + $0x10] sm:$0xff] %v665
      %682 = vst [vmem:[#allocation2 + $0x18] sm:$0xff] %v666
      %683 = vst [vmem:[#allocation2 + $0x20] sm:$0xff] %v667
      %684 = vst [vmem:[#allocation2 + $0x28] sm:$0xff] %v668
      %685 = vst [vmem:[#allocation2 + $0x30] sm:$0xff] %v669
      %686 = vst [vmem:[#allocation2 + $0x38] sm:$0xff] %v670
      %687 = vst [vmem:[#allocation2 + $0x40] sm:$0xff] %v671
      %688 = vst [vmem:[#allocation2 + $0x48] sm:$0xff] %v672
      %689 = vst [vmem:[#allocation2 + $0x50] sm:$0xff] %v673
      %690 = vst [vmem:[#allocation2 + $0x58] sm:$0xff] %v674
      %691 = vst [vmem:[#allocation2 + $0x60] sm:$0xff] %v675
      %692 = vst [vmem:[#allocation2 + $0x68] sm:$0xff] %v676
      %693 = vst [vmem:[#allocation2 + $0x70] sm:$0xff] %v677
      %694 = vst [vmem:[#allocation2 + $0x78] sm:$0xff] %v678
      %s695 = sadd.s32 %s256, 32
      %s696 = sshra.s32 %s695, 3
      %s697 = sand.u32 %s695, 7
      %s698 = smul.addr %s696, 4
      %s699 = scalar_lea.vmem %s232, %s698
      %v700 = vld [vmem:[%s699] sm:$0xf]
      %v701 = vld [vmem:[%s699 + $0x4] sm:$0xf]
      %v702 = vld [vmem:[%s699 + $0x8] sm:$0xf]
      %v703 = vld [vmem:[%s699 + $0xc] sm:$0xf]
      %v704 = vld [vmem:[%s699 + $0x10] sm:$0xf]
      %v705 = vld [vmem:[%s699 + $0x14] sm:$0xf]
      %v706 = vld [vmem:[%s699 + $0x18] sm:$0xf]
      %v707 = vld [vmem:[%s699 + $0x1c] sm:$0xf]
      %v708 = vld [vmem:[%s699 + $0x20] sm:$0xf]
      %v709 = vld [vmem:[%s699 + $0x24] sm:$0xf]
      %v710 = vld [vmem:[%s699 + $0x28] sm:$0xf]
      %v711 = vld [vmem:[%s699 + $0x2c] sm:$0xf]
      %v712 = vld [vmem:[%s699 + $0x30] sm:$0xf]
      %v713 = vld [vmem:[%s699 + $0x34] sm:$0xf]
      %v714 = vld [vmem:[%s699 + $0x38] sm:$0xf]
      %v715 = vld [vmem:[%s699 + $0x3c] sm:$0xf]
      %s716 = scalar_lea.vmem %s1, 4
      %v717 = vld [vmem:[%s716] sm:$0x3]
      %v734 = vunpack.c.l.b16 %v700
      %v735 = vunpack.c.l.b16 %v701
      %v736 = vunpack.c.l.b16 %v702
      %v737 = vunpack.c.l.b16 %v703
      %v738 = vunpack.c.l.b16 %v704
      %v739 = vunpack.c.l.b16 %v705
      %v740 = vunpack.c.l.b16 %v706
      %v741 = vunpack.c.l.b16 %v707
      %v742 = vunpack.c.l.b16 %v708
      %v743 = vunpack.c.l.b16 %v709
      %v744 = vunpack.c.l.b16 %v710
      %v745 = vunpack.c.l.b16 %v711
      %v746 = vunpack.c.l.b16 %v712
      %v747 = vunpack.c.l.b16 %v713
      %v748 = vunpack.c.l.b16 %v714
      %v749 = vunpack.c.l.b16 %v715
      %v750 = vpack.c.b16 %v735, %v734
      %v751 = vpack.c.b16 %v737, %v736
      %v752 = vpack.c.b16 %v739, %v738
      %v753 = vpack.c.b16 %v741, %v740
      %v754 = vpack.c.b16 %v743, %v742
      %v755 = vpack.c.b16 %v745, %v744
      %v756 = vpack.c.b16 %v747, %v746
      %v757 = vpack.c.b16 %v749, %v748
      %v759 = vsel %vm318, %v750, 0
      %v762 = vsel %vm318, %v751, 0
      %v765 = vsel %vm318, %v752, 0
      %v768 = vsel %vm318, %v753, 0
      %v771 = vsel %vm318, %v754, 0
      %v774 = vsel %vm318, %v755, 0
      %v777 = vsel %vm318, %v756, 0
      %v780 = vsel %vm318, %v757, 0
      %v783 = vsel %vm343, %v717, 0
      %785 = vmatprep.subr.bf16.mxu0 0
      %786 = vmatpush1.bf16.msra.mxu0 %v783
      %787 = vmatprep.subr.bf16.mxu0 0
      %788 = vmatpush1.bf16.msra.mxu0 0
      %789 = vmatprep.subr.bf16.mxu0 0
      %790 = vmatpush1.bf16.msra.mxu0 0
      %791 = vmatprep.subr.bf16.mxu0 0
      %792 = vmatpush1.bf16.msra.mxu0 0
      %793 = vmatprep.subr.bf16.mxu0 0
      %794 = vmatpush1.bf16.msra.mxu0 0
      %795 = vmatprep.subr.bf16.mxu0 0
      %796 = vmatpush1.bf16.msra.mxu0 0
      %797 = vmatprep.subr.bf16.mxu0 0
      %798 = vmatpush1.bf16.msra.mxu0 0
      %799 = vmatprep.subr.bf16.mxu0 0
      %800 = vmatpush1.bf16.msra.mxu0 0
      %801 = vmatprep.subr.bf16.mxu0 0
      %802 = vmatpush1.bf16.msra.mxu0 0
      %803 = vmatprep.subr.bf16.mxu0 0
      %804 = vmatpush1.bf16.msra.mxu0 0
      %805 = vmatprep.subr.bf16.mxu0 0
      %806 = vmatpush1.bf16.msra.mxu0 0
      %807 = vmatprep.subr.bf16.mxu0 0
      %808 = vmatpush1.bf16.msra.mxu0 0
      %809 = vmatprep.subr.bf16.mxu0 0
      %810 = vmatpush1.bf16.msra.mxu0 0
      %811 = vmatprep.subr.bf16.mxu0 0
      %812 = vmatpush1.bf16.msra.mxu0 0
      %813 = vmatprep.subr.bf16.mxu0 0
      %814 = vmatpush1.bf16.msra.mxu0 0
      %815 = vmatprep.subr.bf16.mxu0 0
      %816 = vmatpush1.bf16.msra.mxu0 0
      %817 = vmatprep.mubr.bf16.mxu0 0
      %818 = vmatmul.mubr.bf16.gmra.mrb[0].mxu0 %v759
      %v819 = vpop.f32.mrb[0].mxu0
      %v820 = vadd.f32 0.0, %v819
      %v821 = vpop.f32.mrb[0].mxu0
      %v822 = vpop.f32.mrb[0].mxu0
      %v823 = vadd.f32 0.0, %v822
      %v824 = vpop.f32.mrb[0].mxu0
      %825 = vmatprep.mubr.bf16.mxu0 0
      %826 = vmatmul.mubr.bf16.gmra.mrb[0].mxu0 %v762
      %v827 = vpop.f32.mrb[0].mxu0
      %v828 = vadd.f32 0.0, %v827
      %v829 = vpop.f32.mrb[0].mxu0
      %v830 = vpop.f32.mrb[0].mxu0
      %v831 = vadd.f32 0.0, %v830
      %v832 = vpop.f32.mrb[0].mxu0
      %833 = vmatprep.mubr.bf16.mxu0 0
      %834 = vmatmul.mubr.bf16.gmra.mrb[0].mxu0 %v765
      %v835 = vpop.f32.mrb[0].mxu0
      %v836 = vadd.f32 0.0, %v835
      %v837 = vpop.f32.mrb[0].mxu0
      %v838 = vpop.f32.mrb[0].mxu0
      %v839 = vadd.f32 0.0, %v838
      %v840 = vpop.f32.mrb[0].mxu0
      %841 = vmatprep.mubr.bf16.mxu0 0
      %842 = vmatmul.mubr.bf16.gmra.mrb[0].mxu0 %v768
      %v843 = vpop.f32.mrb[0].mxu0
      %v844 = vadd.f32 0.0, %v843
      %v845 = vpop.f32.mrb[0].mxu0
      %v846 = vpop.f32.mrb[0].mxu0
      %v847 = vadd.f32 0.0, %v846
      %v848 = vpop.f32.mrb[0].mxu0
      %849 = vmatprep.mubr.bf16.mxu0 0
      %850 = vmatmul.mubr.bf16.gmra.mrb[0].mxu0 %v771
      %v851 = vpop.f32.mrb[0].mxu0
      %v852 = vadd.f32 0.0, %v851
      %v853 = vpop.f32.mrb[0].mxu0
      %v854 = vpop.f32.mrb[0].mxu0
      %v855 = vadd.f32 0.0, %v854
      %v856 = vpop.f32.mrb[0].mxu0
      %857 = vmatprep.mubr.bf16.mxu0 0
      %858 = vmatmul.mubr.bf16.gmra.mrb[0].mxu0 %v774
      %v859 = vpop.f32.mrb[0].mxu0
      %v860 = vadd.f32 0.0, %v859
      %v861 = vpop.f32.mrb[0].mxu0
      %v862 = vpop.f32.mrb[0].mxu0
      %v863 = vadd.f32 0.0, %v862
      %v864 = vpop.f32.mrb[0].mxu0
      %865 = vmatprep.mubr.bf16.mxu0 0
      %866 = vmatmul.mubr.bf16.gmra.mrb[0].mxu0 %v777
      %v867 = vpop.f32.mrb[0].mxu0
      %v868 = vadd.f32 0.0, %v867
      %v869 = vpop.f32.mrb[0].mxu0
      %v870 = vpop.f32.mrb[0].mxu0
      %v871 = vadd.f32 0.0, %v870
      %v872 = vpop.f32.mrb[0].mxu0
      %873 = vmatprep.mubr.bf16.mxu0 0
      %874 = vmatmul.mubr.bf16.gmra.mrb[0].mxu0 %v780
      %v875 = vpop.f32.mrb[0].mxu0
      %v876 = vadd.f32 0.0, %v875
      %v877 = vpop.f32.mrb[0].mxu0
      %v878 = vpop.f32.mrb[0].mxu0
      %v879 = vadd.f32 0.0, %v878
      %v880 = vpop.f32.mrb[0].mxu0
      %881 = vdwg.mxu0
      %v882 = vld [vmem:[#allocation2] sm:$0xff]
      %v883 = vld [vmem:[#allocation2 + $0x8] sm:$0xff]
      %v884 = vld [vmem:[#allocation2 + $0x10] sm:$0xff]
      %v885 = vld [vmem:[#allocation2 + $0x18] sm:$0xff]
      %v886 = vld [vmem:[#allocation2 + $0x20] sm:$0xff]
      %v887 = vld [vmem:[#allocation2 + $0x28] sm:$0xff]
      %v888 = vld [vmem:[#allocation2 + $0x30] sm:$0xff]
      %v889 = vld [vmem:[#allocation2 + $0x38] sm:$0xff]
      %v890 = vld [vmem:[#allocation2 + $0x40] sm:$0xff]
      %v891 = vld [vmem:[#allocation2 + $0x48] sm:$0xff]
      %v892 = vld [vmem:[#allocation2 + $0x50] sm:$0xff]
      %v893 = vld [vmem:[#allocation2 + $0x58] sm:$0xff]
      %v894 = vld [vmem:[#allocation2 + $0x60] sm:$0xff]
      %v895 = vld [vmem:[#allocation2 + $0x68] sm:$0xff]
      %v896 = vld [vmem:[#allocation2 + $0x70] sm:$0xff]
      %v897 = vld [vmem:[#allocation2 + $0x78] sm:$0xff]
      %v898 = vadd.f32 %v882, %v820
      %v899 = vadd.f32 %v883, %v823
      %v900 = vadd.f32 %v884, %v828
      %v901 = vadd.f32 %v885, %v831
      %v902 = vadd.f32 %v886, %v836
      %v903 = vadd.f32 %v887, %v839
      %v904 = vadd.f32 %v888, %v844
      %v905 = vadd.f32 %v889, %v847
      %v906 = vadd.f32 %v890, %v852
      %v907 = vadd.f32 %v891, %v855
      %v908 = vadd.f32 %v892, %v860
      %v909 = vadd.f32 %v893, %v863
      %v910 = vadd.f32 %v894, %v868
      %v911 = vadd.f32 %v895, %v871
      %v912 = vadd.f32 %v896, %v876
      %v913 = vadd.f32 %v897, %v879
      %914 = vst [vmem:[#allocation2] sm:$0xff] %v898
      %915 = vst [vmem:[#allocation2 + $0x8] sm:$0xff] %v899
      %916 = vst [vmem:[#allocation2 + $0x10] sm:$0xff] %v900
      %917 = vst [vmem:[#allocation2 + $0x18] sm:$0xff] %v901
      %918 = vst [vmem:[#allocation2 + $0x20] sm:$0xff] %v902
      %919 = vst [vmem:[#allocation2 + $0x28] sm:$0xff] %v903
      %920 = vst [vmem:[#allocation2 + $0x30] sm:$0xff] %v904
      %921 = vst [vmem:[#allocation2 + $0x38] sm:$0xff] %v905
      %922 = vst [vmem:[#allocation2 + $0x40] sm:$0xff] %v906
      %923 = vst [vmem:[#allocation2 + $0x48] sm:$0xff] %v907
      %924 = vst [vmem:[#allocation2 + $0x50] sm:$0xff] %v908
      %925 = vst [vmem:[#allocation2 + $0x58] sm:$0xff] %v909
      %926 = vst [vmem:[#allocation2 + $0x60] sm:$0xff] %v910
      %927 = vst [vmem:[#allocation2 + $0x68] sm:$0xff] %v911
      %928 = vst [vmem:[#allocation2 + $0x70] sm:$0xff] %v912
      %929 = vst [vmem:[#allocation2 + $0x78] sm:$0xff] %v913
      %s930 = sadd.s32 %s256, 48
      %s931 = sshra.s32 %s930, 3
      %s932 = sand.u32 %s930, 7
      %s933 = smul.addr %s931, 4
      %s934 = scalar_lea.vmem %s232, %s933
      %v935 = vld [vmem:[%s934] sm:$0xf]
      %v936 = vld [vmem:[%s934 + $0x4] sm:$0xf]
      %v937 = vld [vmem:[%s934 + $0x8] sm:$0xf]
      %v938 = vld [vmem:[%s934 + $0xc] sm:$0xf]
      %v939 = vld [vmem:[%s934 + $0x10] sm:$0xf]
      %v940 = vld [vmem:[%s934 + $0x14] sm:$0xf]
      %v941 = vld [vmem:[%s934 + $0x18] sm:$0xf]
      %v942 = vld [vmem:[%s934 + $0x1c] sm:$0xf]
      %v943 = vld [vmem:[%s934 + $0x20] sm:$0xf]
      %v944 = vld [vmem:[%s934 + $0x24] sm:$0xf]
      %v945 = vld [vmem:[%s934 + $0x28] sm:$0xf]
      %v946 = vld [vmem:[%s934 + $0x2c] sm:$0xf]
      %v947 = vld [vmem:[%s934 + $0x30] sm:$0xf]
      %v948 = vld [vmem:[%s934 + $0x34] sm:$0xf]
      %v949 = vld [vmem:[%s934 + $0x38] sm:$0xf]
      %v950 = vld [vmem:[%s934 + $0x3c] sm:$0xf]
      %s951 = scalar_lea.vmem %s1, 6
      %v952 = vld [vmem:[%s951] sm:$0x3]
      %v969 = vunpack.c.l.b16 %v935
      %v970 = vunpack.c.l.b16 %v936
      %v971 = vunpack.c.l.b16 %v937
      %v972 = vunpack.c.l.b16 %v938
      %v973 = vunpack.c.l.b16 %v939
      %v974 = vunpack.c.l.b16 %v940
      %v975 = vunpack.c.l.b16 %v941
      %v976 = vunpack.c.l.b16 %v942
      %v977 = vunpack.c.l.b16 %v943
      %v978 = vunpack.c.l.b16 %v944
      %v979 = vunpack.c.l.b16 %v945
      %v980 = vunpack.c.l.b16 %v946
      %v981 = vunpack.c.l.b16 %v947
      %v982 = vunpack.c.l.b16 %v948
      %v983 = vunpack.c.l.b16 %v949
      %v984 = vunpack.c.l.b16 %v950
      %v985 = vpack.c.b16 %v970, %v969
      %v986 = vpack.c.b16 %v972, %v971
      %v987 = vpack.c.b16 %v974, %v973
      %v988 = vpack.c.b16 %v976, %v975
      %v989 = vpack.c.b16 %v978, %v977
      %v990 = vpack.c.b16 %v980, %v979
      %v991 = vpack.c.b16 %v982, %v981
      %v992 = vpack.c.b16 %v984, %v983
      %v994 = vsel %vm318, %v985, 0
      %v997 = vsel %vm318, %v986, 0
      %v1000 = vsel %vm318, %v987, 0
      %v1003 = vsel %vm318, %v988, 0
      %v1006 = vsel %vm318, %v989, 0
      %v1009 = vsel %vm318, %v990, 0
      %v1012 = vsel %vm318, %v991, 0
      %v1015 = vsel %vm318, %v992, 0
      %v1018 = vsel %vm343, %v952, 0
      %1020 = vmatprep.subr.bf16.mxu0 0
      %1021 = vmatpush1.bf16.msra.mxu0 %v1018
      %1022 = vmatprep.subr.bf16.mxu0 0
      %1023 = vmatpush1.bf16.msra.mxu0 0
      %1024 = vmatprep.subr.bf16.mxu0 0
      %1025 = vmatpush1.bf16.msra.mxu0 0
      %1026 = vmatprep.subr.bf16.mxu0 0
      %1027 = vmatpush1.bf16.msra.mxu0 0
      %1028 = vmatprep.subr.bf16.mxu0 0
      %1029 = vmatpush1.bf16.msra.mxu0 0
      %1030 = vmatprep.subr.bf16.mxu0 0
      %1031 = vmatpush1.bf16.msra.mxu0 0
      %1032 = vmatprep.subr.bf16.mxu0 0
      %1033 = vmatpush1.bf16.msra.mxu0 0
      %1034 = vmatprep.subr.bf16.mxu0 0
      %1035 = vmatpush1.bf16.msra.mxu0 0
      %1036 = vmatprep.subr.bf16.mxu0 0
      %1037 = vmatpush1.bf16.msra.mxu0 0
      %1038 = vmatprep.subr.bf16.mxu0 0
      %1039 = vmatpush1.bf16.msra.mxu0 0
      %1040 = vmatprep.subr.bf16.mxu0 0
      %1041 = vmatpush1.bf16.msra.mxu0 0
      %1042 = vmatprep.subr.bf16.mxu0 0
      %1043 = vmatpush1.bf16.msra.mxu0 0
      %1044 = vmatprep.subr.bf16.mxu0 0
      %1045 = vmatpush1.bf16.msra.mxu0 0
      %1046 = vmatprep.subr.bf16.mxu0 0
      %1047 = vmatpush1.bf16.msra.mxu0 0
      %1048 = vmatprep.subr.bf16.mxu0 0
      %1049 = vmatpush1.bf16.msra.mxu0 0
      %1050 = vmatprep.subr.bf16.mxu0 0
      %1051 = vmatpush1.bf16.msra.mxu0 0
      %1052 = vmatprep.mubr.bf16.mxu0 0
      %1053 = vmatmul.mubr.bf16.gmra.mrb[0].mxu0 %v994
      %v1054 = vpop.f32.mrb[0].mxu0
      %v1055 = vadd.f32 0.0, %v1054
      %v1056 = vpop.f32.mrb[0].mxu0
      %v1057 = vpop.f32.mrb[0].mxu0
      %v1058 = vadd.f32 0.0, %v1057
      %v1059 = vpop.f32.mrb[0].mxu0
      %1060 = vmatprep.mubr.bf16.mxu0 0
      %1061 = vmatmul.mubr.bf16.gmra.mrb[0].mxu0 %v997
      %v1062 = vpop.f32.mrb[0].mxu0
      %v1063 = vadd.f32 0.0, %v1062
      %v1064 = vpop.f32.mrb[0].mxu0
      %v1065 = vpop.f32.mrb[0].mxu0
      %v1066 = vadd.f32 0.0, %v1065
      %v1067 = vpop.f32.mrb[0].mxu0
      %1068 = vmatprep.mubr.bf16.mxu0 0
      %1069 = vmatmul.mubr.bf16.gmra.mrb[0].mxu0 %v1000
      %v1070 = vpop.f32.mrb[0].mxu0
      %v1071 = vadd.f32 0.0, %v1070
      %v1072 = vpop.f32.mrb[0].mxu0
      %v1073 = vpop.f32.mrb[0].mxu0
      %v1074 = vadd.f32 0.0, %v1073
      %v1075 = vpop.f32.mrb[0].mxu0
      %1076 = vmatprep.mubr.bf16.mxu0 0
      %1077 = vmatmul.mubr.bf16.gmra.mrb[0].mxu0 %v1003
      %v1078 = vpop.f32.mrb[0].mxu0
      %v1079 = vadd.f32 0.0, %v1078
      %v1080 = vpop.f32.mrb[0].mxu0
      %v1081 = vpop.f32.mrb[0].mxu0
      %v1082 = vadd.f32 0.0, %v1081
      %v1083 = vpop.f32.mrb[0].mxu0
      %1084 = vmatprep.mubr.bf16.mxu0 0
      %1085 = vmatmul.mubr.bf16.gmra.mrb[0].mxu0 %v1006
      %v1086 = vpop.f32.mrb[0].mxu0
      %v1087 = vadd.f32 0.0, %v1086
      %v1088 = vpop.f32.mrb[0].mxu0
      %v1089 = vpop.f32.mrb[0].mxu0
      %v1090 = vadd.f32 0.0, %v1089
      %v1091 = vpop.f32.mrb[0].mxu0
      %1092 = vmatprep.mubr.bf16.mxu0 0
      %1093 = vmatmul.mubr.bf16.gmra.mrb[0].mxu0 %v1009
      %v1094 = vpop.f32.mrb[0].mxu0
      %v1095 = vadd.f32 0.0, %v1094
      %v1096 = vpop.f32.mrb[0].mxu0
      %v1097 = vpop.f32.mrb[0].mxu0
      %v1098 = vadd.f32 0.0, %v1097
      %v1099 = vpop.f32.mrb[0].mxu0
      %1100 = vmatprep.mubr.bf16.mxu0 0
      %1101 = vmatmul.mubr.bf16.gmra.mrb[0].mxu0 %v1012
      %v1102 = vpop.f32.mrb[0].mxu0
      %v1103 = vadd.f32 0.0, %v1102
      %v1104 = vpop.f32.mrb[0].mxu0
      %v1105 = vpop.f32.mrb[0].mxu0
      %v1106 = vadd.f32 0.0, %v1105
      %v1107 = vpop.f32.mrb[0].mxu0
      %1108 = vmatprep.mubr.bf16.mxu0 0
      %1109 = vmatmul.mubr.bf16.gmra.mrb[0].mxu0 %v1015
      %v1110 = vpop.f32.mrb[0].mxu0
      %v1111 = vadd.f32 0.0, %v1110
      %v1112 = vpop.f32.mrb[0].mxu0
      %v1113 = vpop.f32.mrb[0].mxu0
      %v1114 = vadd.f32 0.0, %v1113
      %v1115 = vpop.f32.mrb[0].mxu0
      %1116 = vdwg.mxu0
      %v1117 = vld [vmem:[#allocation2] sm:$0xff]
      %v1118 = vld [vmem:[#allocation2 + $0x8] sm:$0xff]
      %v1119 = vld [vmem:[#allocation2 + $0x10] sm:$0xff]
      %v1120 = vld [vmem:[#allocation2 + $0x18] sm:$0xff]
      %v1121 = vld [vmem:[#allocation2 + $0x20] sm:$0xff]
      %v1122 = vld [vmem:[#allocation2 + $0x28] sm:$0xff]
      %v1123 = vld [vmem:[#allocation2 + $0x30] sm:$0xff]
      %v1124 = vld [vmem:[#allocation2 + $0x38] sm:$0xff]
      %v1125 = vld [vmem:[#allocation2 + $0x40] sm:$0xff]
      %v1126 = vld [vmem:[#allocation2 + $0x48] sm:$0xff]
      %v1127 = vld [vmem:[#allocation2 + $0x50] sm:$0xff]
      %v1128 = vld [vmem:[#allocation2 + $0x58] sm:$0xff]
      %v1129 = vld [vmem:[#allocation2 + $0x60] sm:$0xff]
      %v1130 = vld [vmem:[#allocation2 + $0x68] sm:$0xff]
      %v1131 = vld [vmem:[#allocation2 + $0x70] sm:$0xff]
      %v1132 = vld [vmem:[#allocation2 + $0x78] sm:$0xff]
      %v1133 = vadd.f32 %v1117, %v1055
      %v1134 = vadd.f32 %v1118, %v1058
      %v1135 = vadd.f32 %v1119, %v1063
      %v1136 = vadd.f32 %v1120, %v1066
      %v1137 = vadd.f32 %v1121, %v1071
      %v1138 = vadd.f32 %v1122, %v1074
      %v1139 = vadd.f32 %v1123, %v1079
      %v1140 = vadd.f32 %v1124, %v1082
      %v1141 = vadd.f32 %v1125, %v1087
      %v1142 = vadd.f32 %v1126, %v1090
      %v1143 = vadd.f32 %v1127, %v1095
      %v1144 = vadd.f32 %v1128, %v1098
      %v1145 = vadd.f32 %v1129, %v1103
      %v1146 = vadd.f32 %v1130, %v1106
      %v1147 = vadd.f32 %v1131, %v1111
      %v1148 = vadd.f32 %v1132, %v1114
      %1149 = vst [vmem:[#allocation2] sm:$0xff] %v1133
      %1150 = vst [vmem:[#allocation2 + $0x8] sm:$0xff] %v1134
      %1151 = vst [vmem:[#allocation2 + $0x10] sm:$0xff] %v1135
      %1152 = vst [vmem:[#allocation2 + $0x18] sm:$0xff] %v1136
      %1153 = vst [vmem:[#allocation2 + $0x20] sm:$0xff] %v1137
      %1154 = vst [vmem:[#allocation2 + $0x28] sm:$0xff] %v1138
      %1155 = vst [vmem:[#allocation2 + $0x30] sm:$0xff] %v1139
      %1156 = vst [vmem:[#allocation2 + $0x38] sm:$0xff] %v1140
      %1157 = vst [vmem:[#allocation2 + $0x40] sm:$0xff] %v1141
      %1158 = vst [vmem:[#allocation2 + $0x48] sm:$0xff] %v1142
      %1159 = vst [vmem:[#allocation2 + $0x50] sm:$0xff] %v1143
      %1160 = vst [vmem:[#allocation2 + $0x58] sm:$0xff] %v1144
      %1161 = vst [vmem:[#allocation2 + $0x60] sm:$0xff] %v1145
      %1162 = vst [vmem:[#allocation2 + $0x68] sm:$0xff] %v1146
      %1163 = vst [vmem:[#allocation2 + $0x70] sm:$0xff] %v1147
      %1164 = vst [vmem:[#allocation2 + $0x78] sm:$0xff] %v1148
      %s1165 = sadd.s32 %s256, 64
      %s1166 = sshra.s32 %s1165, 3
      %s1167 = sand.u32 %s1165, 7
      %s1168 = smul.addr %s1166, 4
      %s1169 = scalar_lea.vmem %s232, %s1168
      %v1170 = vld [vmem:[%s1169] sm:$0xf]
      %v1171 = vld [vmem:[%s1169 + $0x4] sm:$0xf]
      %v1172 = vld [vmem:[%s1169 + $0x8] sm:$0xf]
      %v1173 = vld [vmem:[%s1169 + $0xc] sm:$0xf]
      %v1174 = vld [vmem:[%s1169 + $0x10] sm:$0xf]
      %v1175 = vld [vmem:[%s1169 + $0x14] sm:$0xf]
      %v1176 = vld [vmem:[%s1169 + $0x18] sm:$0xf]
      %v1177 = vld [vmem:[%s1169 + $0x1c] sm:$0xf]
      %v1178 = vld [vmem:[%s1169 + $0x20] sm:$0xf]
      %v1179 = vld [vmem:[%s1169 + $0x24] sm:$0xf]
      %v1180 = vld [vmem:[%s1169 + $0x28] sm:$0xf]
      %v1181 = vld [vmem:[%s1169 + $0x2c] sm:$0xf]
      %v1182 = vld [vmem:[%s1169 + $0x30] sm:$0xf]
      %v1183 = vld [vmem:[%s1169 + $0x34] sm:$0xf]
      %v1184 = vld [vmem:[%s1169 + $0x38] sm:$0xf]
      %v1185 = vld [vmem:[%s1169 + $0x3c] sm:$0xf]
      %s1186 = scalar_lea.vmem %s1, 8
      %v1187 = vld [vmem:[%s1186] sm:$0x3]
      %v1204 = vunpack.c.l.b16 %v1170
      %v1205 = vunpack.c.l.b16 %v1171
      %v1206 = vunpack.c.l.b16 %v1172
      %v1207 = vunpack.c.l.b16 %v1173
      %v1208 = vunpack.c.l.b16 %v1174
      %v1209 = vunpack.c.l.b16 %v1175
      %v1210 = vunpack.c.l.b16 %v1176
      %v1211 = vunpack.c.l.b16 %v1177
      %v1212 = vunpack.c.l.b16 %v1178
      %v1213 = vunpack.c.l.b16 %v1179
      %v1214 = vunpack.c.l.b16 %v1180
      %v1215 = vunpack.c.l.b16 %v1181
      %v1216 = vunpack.c.l.b16 %v1182
      %v1217 = vunpack.c.l.b16 %v1183
      %v1218 = vunpack.c.l.b16 %v1184
      %v1219 = vunpack.c.l.b16 %v1185
      %v1220 = vpack.c.b16 %v1205, %v1204
      %v1221 = vpack.c.b16 %v1207, %v1206
      %v1222 = vpack.c.b16 %v1209, %v1208
      %v1223 = vpack.c.b16 %v1211, %v1210
      %v1224 = vpack.c.b16 %v1213, %v1212
      %v1225 = vpack.c.b16 %v1215, %v1214
      %v1226 = vpack.c.b16 %v1217, %v1216
      %v1227 = vpack.c.b16 %v1219, %v1218
      %v1229 = vsel %vm318, %v1220, 0
      %v1232 = vsel %vm318, %v1221, 0
      %v1235 = vsel %vm318, %v1222, 0
      %v1238 = vsel %vm318, %v1223, 0
      %v1241 = vsel %vm318, %v1224, 0
      %v1244 = vsel %vm318, %v1225, 0
      %v1247 = vsel %vm318, %v1226, 0
      %v1250 = vsel %vm318, %v1227, 0
      %v1253 = vsel %vm343, %v1187, 0
      %1255 = vmatprep.subr.bf16.mxu0 0
      %1256 = vmatpush1.bf16.msra.mxu0 %v1253
      %1257 = vmatprep.subr.bf16.mxu0 0
      %1258 = vmatpush1.bf16.msra.mxu0 0
      %1259 = vmatprep.subr.bf16.mxu0 0
      %1260 = vmatpush1.bf16.msra.mxu0 0
      %1261 = vmatprep.subr.bf16.mxu0 0
      %1262 = vmatpush1.bf16.msra.mxu0 0
      %1263 = vmatprep.subr.bf16.mxu0 0
      %1264 = vmatpush1.bf16.msra.mxu0 0
      %1265 = vmatprep.subr.bf16.mxu0 0
      %1266 = vmatpush1.bf16.msra.mxu0 0
      %1267 = vmatprep.subr.bf16.mxu0 0
      %1268 = vmatpush1.bf16.msra.mxu0 0
      %1269 = vmatprep.subr.bf16.mxu0 0
      %1270 = vmatpush1.bf16.msra.mxu0 0
      %1271 = vmatprep.subr.bf16.mxu0 0
      %1272 = vmatpush1.bf16.msra.mxu0 0
      %1273 = vmatprep.subr.bf16.mxu0 0
      %1274 = vmatpush1.bf16.msra.mxu0 0
      %1275 = vmatprep.subr.bf16.mxu0 0
      %1276 = vmatpush1.bf16.msra.mxu0 0
      %1277 = vmatprep.subr.bf16.mxu0 0
      %1278 = vmatpush1.bf16.msra.mxu0 0
      %1279 = vmatprep.subr.bf16.mxu0 0
      %1280 = vmatpush1.bf16.msra.mxu0 0
      %1281 = vmatprep.subr.bf16.mxu0 0
      %1282 = vmatpush1.bf16.msra.mxu0 0
      %1283 = vmatprep.subr.bf16.mxu0 0
      %1284 = vmatpush1.bf16.msra.mxu0 0
      %1285 = vmatprep.subr.bf16.mxu0 0
      %1286 = vmatpush1.bf16.msra.mxu0 0
      %1287 = vmatprep.mubr.bf16.mxu0 0
      %1288 = vmatmul.mubr.bf16.gmra.mrb[0].mxu0 %v1229
      %v1289 = vpop.f32.mrb[0].mxu0
      %v1290 = vadd.f32 0.0, %v1289
      %v1291 = vpop.f32.mrb[0].mxu0
      %v1292 = vpop.f32.mrb[0].mxu0
      %v1293 = vadd.f32 0.0, %v1292
      %v1294 = vpop.f32.mrb[0].mxu0
      %1295 = vmatprep.mubr.bf16.mxu0 0
      %1296 = vmatmul.mubr.bf16.gmra.mrb[0].mxu0 %v1232
      %v1297 = vpop.f32.mrb[0].mxu0
      %v1298 = vadd.f32 0.0, %v1297
      %v1299 = vpop.f32.mrb[0].mxu0
      %v1300 = vpop.f32.mrb[0].mxu0
      %v1301 = vadd.f32 0.0, %v1300
      %v1302 = vpop.f32.mrb[0].mxu0
      %1303 = vmatprep.mubr.bf16.mxu0 0
      %1304 = vmatmul.mubr.bf16.gmra.mrb[0].mxu0 %v1235
      %v1305 = vpop.f32.mrb[0].mxu0
      %v1306 = vadd.f32 0.0, %v1305
      %v1307 = vpop.f32.mrb[0].mxu0
      %v1308 = vpop.f32.mrb[0].mxu0
      %v1309 = vadd.f32 0.0, %v1308
      %v1310 = vpop.f32.mrb[0].mxu0
      %1311 = vmatprep.mubr.bf16.mxu0 0
      %1312 = vmatmul.mubr.bf16.gmra.mrb[0].mxu0 %v1238
      %v1313 = vpop.f32.mrb[0].mxu0
      %v1314 = vadd.f32 0.0, %v1313
      %v1315 = vpop.f32.mrb[0].mxu0
      %v1316 = vpop.f32.mrb[0].mxu0
      %v1317 = vadd.f32 0.0, %v1316
      %v1318 = vpop.f32.mrb[0].mxu0
      %1319 = vmatprep.mubr.bf16.mxu0 0
      %1320 = vmatmul.mubr.bf16.gmra.mrb[0].mxu0 %v1241
      %v1321 = vpop.f32.mrb[0].mxu0
      %v1322 = vadd.f32 0.0, %v1321
      %v1323 = vpop.f32.mrb[0].mxu0
      %v1324 = vpop.f32.mrb[0].mxu0
      %v1325 = vadd.f32 0.0, %v1324
      %v1326 = vpop.f32.mrb[0].mxu0
      %1327 = vmatprep.mubr.bf16.mxu0 0
      %1328 = vmatmul.mubr.bf16.gmra.mrb[0].mxu0 %v1244
      %v1329 = vpop.f32.mrb[0].mxu0
      %v1330 = vadd.f32 0.0, %v1329
      %v1331 = vpop.f32.mrb[0].mxu0
      %v1332 = vpop.f32.mrb[0].mxu0
      %v1333 = vadd.f32 0.0, %v1332
      %v1334 = vpop.f32.mrb[0].mxu0
      %1335 = vmatprep.mubr.bf16.mxu0 0
      %1336 = vmatmul.mubr.bf16.gmra.mrb[0].mxu0 %v1247
      %v1337 = vpop.f32.mrb[0].mxu0
      %v1338 = vadd.f32 0.0, %v1337
      %v1339 = vpop.f32.mrb[0].mxu0
      %v1340 = vpop.f32.mrb[0].mxu0
      %v1341 = vadd.f32 0.0, %v1340
      %v1342 = vpop.f32.mrb[0].mxu0
      %1343 = vmatprep.mubr.bf16.mxu0 0
      %1344 = vmatmul.mubr.bf16.gmra.mrb[0].mxu0 %v1250
      %v1345 = vpop.f32.mrb[0].mxu0
      %v1346 = vadd.f32 0.0, %v1345
      %v1347 = vpop.f32.mrb[0].mxu0
      %v1348 = vpop.f32.mrb[0].mxu0
      %v1349 = vadd.f32 0.0, %v1348
      %v1350 = vpop.f32.mrb[0].mxu0
      %1351 = vdwg.mxu0
      %v1352 = vld [vmem:[#allocation2] sm:$0xff]
      %v1353 = vld [vmem:[#allocation2 + $0x8] sm:$0xff]
      %v1354 = vld [vmem:[#allocation2 + $0x10] sm:$0xff]
      %v1355 = vld [vmem:[#allocation2 + $0x18] sm:$0xff]
      %v1356 = vld [vmem:[#allocation2 + $0x20] sm:$0xff]
      %v1357 = vld [vmem:[#allocation2 + $0x28] sm:$0xff]
      %v1358 = vld [vmem:[#allocation2 + $0x30] sm:$0xff]
      %v1359 = vld [vmem:[#allocation2 + $0x38] sm:$0xff]
      %v1360 = vld [vmem:[#allocation2 + $0x40] sm:$0xff]
      %v1361 = vld [vmem:[#allocation2 + $0x48] sm:$0xff]
      %v1362 = vld [vmem:[#allocation2 + $0x50] sm:$0xff]
      %v1363 = vld [vmem:[#allocation2 + $0x58] sm:$0xff]
      %v1364 = vld [vmem:[#allocation2 + $0x60] sm:$0xff]
      %v1365 = vld [vmem:[#allocation2 + $0x68] sm:$0xff]
      %v1366 = vld [vmem:[#allocation2 + $0x70] sm:$0xff]
      %v1367 = vld [vmem:[#allocation2 + $0x78] sm:$0xff]
      %v1368 = vadd.f32 %v1352, %v1290
      %v1369 = vadd.f32 %v1353, %v1293
      %v1370 = vadd.f32 %v1354, %v1298
      %v1371 = vadd.f32 %v1355, %v1301
      %v1372 = vadd.f32 %v1356, %v1306
      %v1373 = vadd.f32 %v1357, %v1309
      %v1374 = vadd.f32 %v1358, %v1314
      %v1375 = vadd.f32 %v1359, %v1317
      %v1376 = vadd.f32 %v1360, %v1322
      %v1377 = vadd.f32 %v1361, %v1325
      %v1378 = vadd.f32 %v1362, %v1330
      %v1379 = vadd.f32 %v1363, %v1333
      %v1380 = vadd.f32 %v1364, %v1338
      %v1381 = vadd.f32 %v1365, %v1341
      %v1382 = vadd.f32 %v1366, %v1346
      %v1383 = vadd.f32 %v1367, %v1349
      %1384 = vst [vmem:[#allocation2] sm:$0xff] %v1368
      %1385 = vst [vmem:[#allocation2 + $0x8] sm:$0xff] %v1369
      %1386 = vst [vmem:[#allocation2 + $0x10] sm:$0xff] %v1370
      %1387 = vst [vmem:[#allocation2 + $0x18] sm:$0xff] %v1371
      %1388 = vst [vmem:[#allocation2 + $0x20] sm:$0xff] %v1372
      %1389 = vst [vmem:[#allocation2 + $0x28] sm:$0xff] %v1373
      %1390 = vst [vmem:[#allocation2 + $0x30] sm:$0xff] %v1374
      %1391 = vst [vmem:[#allocation2 + $0x38] sm:$0xff] %v1375
      %1392 = vst [vmem:[#allocation2 + $0x40] sm:$0xff] %v1376
      %1393 = vst [vmem:[#allocation2 + $0x48] sm:$0xff] %v1377
      %1394 = vst [vmem:[#allocation2 + $0x50] sm:$0xff] %v1378
      %1395 = vst [vmem:[#allocation2 + $0x58] sm:$0xff] %v1379
      %1396 = vst [vmem:[#allocation2 + $0x60] sm:$0xff] %v1380
      %1397 = vst [vmem:[#allocation2 + $0x68] sm:$0xff] %v1381
      %1398 = vst [vmem:[#allocation2 + $0x70] sm:$0xff] %v1382
      %1399 = vst [vmem:[#allocation2 + $0x78] sm:$0xff] %v1383
      %s1400 = sadd.s32 %s256, 80
      %s1401 = sshra.s32 %s1400, 3
      %s1402 = sand.u32 %s1400, 7
      %s1403 = smul.addr %s1401, 4
      %s1404 = scalar_lea.vmem %s232, %s1403
      %v1405 = vld [vmem:[%s1404] sm:$0xf]
      %v1406 = vld [vmem:[%s1404 + $0x4] sm:$0xf]
      %v1407 = vld [vmem:[%s1404 + $0x8] sm:$0xf]
      %v1408 = vld [vmem:[%s1404 + $0xc] sm:$0xf]
      %v1409 = vld [vmem:[%s1404 + $0x10] sm:$0xf]
      %v1410 = vld [vmem:[%s1404 + $0x14] sm:$0xf]
      %v1411 = vld [vmem:[%s1404 + $0x18] sm:$0xf]
      %v1412 = vld [vmem:[%s1404 + $0x1c] sm:$0xf]
      %v1413 = vld [vmem:[%s1404 + $0x20] sm:$0xf]
      %v1414 = vld [vmem:[%s1404 + $0x24] sm:$0xf]
      %v1415 = vld [vmem:[%s1404 + $0x28] sm:$0xf]
      %v1416 = vld [vmem:[%s1404 + $0x2c] sm:$0xf]
      %v1417 = vld [vmem:[%s1404 + $0x30] sm:$0xf]
      %v1418 = vld [vmem:[%s1404 + $0x34] sm:$0xf]
      %v1419 = vld [vmem:[%s1404 + $0x38] sm:$0xf]
      %v1420 = vld [vmem:[%s1404 + $0x3c] sm:$0xf]
      %s1421 = scalar_lea.vmem %s1, 10
      %v1422 = vld [vmem:[%s1421] sm:$0x3]
      %v1439 = vunpack.c.l.b16 %v1405
      %v1440 = vunpack.c.l.b16 %v1406
      %v1441 = vunpack.c.l.b16 %v1407
      %v1442 = vunpack.c.l.b16 %v1408
      %v1443 = vunpack.c.l.b16 %v1409
      %v1444 = vunpack.c.l.b16 %v1410
      %v1445 = vunpack.c.l.b16 %v1411
      %v1446 = vunpack.c.l.b16 %v1412
      %v1447 = vunpack.c.l.b16 %v1413
      %v1448 = vunpack.c.l.b16 %v1414
      %v1449 = vunpack.c.l.b16 %v1415
      %v1450 = vunpack.c.l.b16 %v1416
      %v1451 = vunpack.c.l.b16 %v1417
      %v1452 = vunpack.c.l.b16 %v1418
      %v1453 = vunpack.c.l.b16 %v1419
      %v1454 = vunpack.c.l.b16 %v1420
      %v1455 = vpack.c.b16 %v1440, %v1439
      %v1456 = vpack.c.b16 %v1442, %v1441
      %v1457 = vpack.c.b16 %v1444, %v1443
      %v1458 = vpack.c.b16 %v1446, %v1445
      %v1459 = vpack.c.b16 %v1448, %v1447
      %v1460 = vpack.c.b16 %v1450, %v1449
      %v1461 = vpack.c.b16 %v1452, %v1451
      %v1462 = vpack.c.b16 %v1454, %v1453
      %v1464 = vsel %vm318, %v1455, 0
      %v1467 = vsel %vm318, %v1456, 0
      %v1470 = vsel %vm318, %v1457, 0
      %v1473 = vsel %vm318, %v1458, 0
      %v1476 = vsel %vm318, %v1459, 0
      %v1479 = vsel %vm318, %v1460, 0
      %v1482 = vsel %vm318, %v1461, 0
      %v1485 = vsel %vm318, %v1462, 0
      %v1488 = vsel %vm343, %v1422, 0
      %1490 = vmatprep.subr.bf16.mxu0 0
      %1491 = vmatpush1.bf16.msra.mxu0 %v1488
      %1492 = vmatprep.subr.bf16.mxu0 0
      %1493 = vmatpush1.bf16.msra.mxu0 0
      %1494 = vmatprep.subr.bf16.mxu0 0
      %1495 = vmatpush1.bf16.msra.mxu0 0
      %1496 = vmatprep.subr.bf16.mxu0 0
      %1497 = vmatpush1.bf16.msra.mxu0 0
      %1498 = vmatprep.subr.bf16.mxu0 0
      %1499 = vmatpush1.bf16.msra.mxu0 0
      %1500 = vmatprep.subr.bf16.mxu0 0
      %1501 = vmatpush1.bf16.msra.mxu0 0
      %1502 = vmatprep.subr.bf16.mxu0 0
      %1503 = vmatpush1.bf16.msra.mxu0 0
      %1504 = vmatprep.subr.bf16.mxu0 0
      %1505 = vmatpush1.bf16.msra.mxu0 0
      %1506 = vmatprep.subr.bf16.mxu0 0
      %1507 = vmatpush1.bf16.msra.mxu0 0
      %1508 = vmatprep.subr.bf16.mxu0 0
      %1509 = vmatpush1.bf16.msra.mxu0 0
      %1510 = vmatprep.subr.bf16.mxu0 0
      %1511 = vmatpush1.bf16.msra.mxu0 0
      %1512 = vmatprep.subr.bf16.mxu0 0
      %1513 = vmatpush1.bf16.msra.mxu0 0
      %1514 = vmatprep.subr.bf16.mxu0 0
      %1515 = vmatpush1.bf16.msra.mxu0 0
      %1516 = vmatprep.subr.bf16.mxu0 0
      %1517 = vmatpush1.bf16.msra.mxu0 0
      %1518 = vmatprep.subr.bf16.mxu0 0
      %1519 = vmatpush1.bf16.msra.mxu0 0
      %1520 = vmatprep.subr.bf16.mxu0 0
      %1521 = vmatpush1.bf16.msra.mxu0 0
      %1522 = vmatprep.mubr.bf16.mxu0 0
      %1523 = vmatmul.mubr.bf16.gmra.mrb[0].mxu0 %v1464
      %v1524 = vpop.f32.mrb[0].mxu0
      %v1525 = vadd.f32 0.0, %v1524
      %v1526 = vpop.f32.mrb[0].mxu0
      %v1527 = vpop.f32.mrb[0].mxu0
      %v1528 = vadd.f32 0.0, %v1527
      %v1529 = vpop.f32.mrb[0].mxu0
      %1530 = vmatprep.mubr.bf16.mxu0 0
      %1531 = vmatmul.mubr.bf16.gmra.mrb[0].mxu0 %v1467
      %v1532 = vpop.f32.mrb[0].mxu0
      %v1533 = vadd.f32 0.0, %v1532
      %v1534 = vpop.f32.mrb[0].mxu0
      %v1535 = vpop.f32.mrb[0].mxu0
      %v1536 = vadd.f32 0.0, %v1535
      %v1537 = vpop.f32.mrb[0].mxu0
      %1538 = vmatprep.mubr.bf16.mxu0 0
      %1539 = vmatmul.mubr.bf16.gmra.mrb[0].mxu0 %v1470
      %v1540 = vpop.f32.mrb[0].mxu0
      %v1541 = vadd.f32 0.0, %v1540
      %v1542 = vpop.f32.mrb[0].mxu0
      %v1543 = vpop.f32.mrb[0].mxu0
      %v1544 = vadd.f32 0.0, %v1543
      %v1545 = vpop.f32.mrb[0].mxu0
      %1546 = vmatprep.mubr.bf16.mxu0 0
      %1547 = vmatmul.mubr.bf16.gmra.mrb[0].mxu0 %v1473
      %v1548 = vpop.f32.mrb[0].mxu0
      %v1549 = vadd.f32 0.0, %v1548
      %v1550 = vpop.f32.mrb[0].mxu0
      %v1551 = vpop.f32.mrb[0].mxu0
      %v1552 = vadd.f32 0.0, %v1551
      %v1553 = vpop.f32.mrb[0].mxu0
      %1554 = vmatprep.mubr.bf16.mxu0 0
      %1555 = vmatmul.mubr.bf16.gmra.mrb[0].mxu0 %v1476
      %v1556 = vpop.f32.mrb[0].mxu0
      %v1557 = vadd.f32 0.0, %v1556
      %v1558 = vpop.f32.mrb[0].mxu0
      %v1559 = vpop.f32.mrb[0].mxu0
      %v1560 = vadd.f32 0.0, %v1559
      %v1561 = vpop.f32.mrb[0].mxu0
      %1562 = vmatprep.mubr.bf16.mxu0 0
      %1563 = vmatmul.mubr.bf16.gmra.mrb[0].mxu0 %v1479
      %v1564 = vpop.f32.mrb[0].mxu0
      %v1565 = vadd.f32 0.0, %v1564
      %v1566 = vpop.f32.mrb[0].mxu0
      %v1567 = vpop.f32.mrb[0].mxu0
      %v1568 = vadd.f32 0.0, %v1567
      %v1569 = vpop.f32.mrb[0].mxu0
      %1570 = vmatprep.mubr.bf16.mxu0 0
      %1571 = vmatmul.mubr.bf16.gmra.mrb[0].mxu0 %v1482
      %v1572 = vpop.f32.mrb[0].mxu0
      %v1573 = vadd.f32 0.0, %v1572
      %v1574 = vpop.f32.mrb[0].mxu0
      %v1575 = vpop.f32.mrb[0].mxu0
      %v1576 = vadd.f32 0.0, %v1575
      %v1577 = vpop.f32.mrb[0].mxu0
      %1578 = vmatprep.mubr.bf16.mxu0 0
      %1579 = vmatmul.mubr.bf16.gmra.mrb[0].mxu0 %v1485
      %v1580 = vpop.f32.mrb[0].mxu0
      %v1581 = vadd.f32 0.0, %v1580
      %v1582 = vpop.f32.mrb[0].mxu0
      %v1583 = vpop.f32.mrb[0].mxu0
      %v1584 = vadd.f32 0.0, %v1583
      %v1585 = vpop.f32.mrb[0].mxu0
      %1586 = vdwg.mxu0
      %v1587 = vld [vmem:[#allocation2] sm:$0xff]
      %v1588 = vld [vmem:[#allocation2 + $0x8] sm:$0xff]
      %v1589 = vld [vmem:[#allocation2 + $0x10] sm:$0xff]
      %v1590 = vld [vmem:[#allocation2 + $0x18] sm:$0xff]
      %v1591 = vld [vmem:[#allocation2 + $0x20] sm:$0xff]
      %v1592 = vld [vmem:[#allocation2 + $0x28] sm:$0xff]
      %v1593 = vld [vmem:[#allocation2 + $0x30] sm:$0xff]
      %v1594 = vld [vmem:[#allocation2 + $0x38] sm:$0xff]
      %v1595 = vld [vmem:[#allocation2 + $0x40] sm:$0xff]
      %v1596 = vld [vmem:[#allocation2 + $0x48] sm:$0xff]
      %v1597 = vld [vmem:[#allocation2 + $0x50] sm:$0xff]
      %v1598 = vld [vmem:[#allocation2 + $0x58] sm:$0xff]
      %v1599 = vld [vmem:[#allocation2 + $0x60] sm:$0xff]
      %v1600 = vld [vmem:[#allocation2 + $0x68] sm:$0xff]
      %v1601 = vld [vmem:[#allocation2 + $0x70] sm:$0xff]
      %v1602 = vld [vmem:[#allocation2 + $0x78] sm:$0xff]
      %v1603 = vadd.f32 %v1587, %v1525
      %v1604 = vadd.f32 %v1588, %v1528
      %v1605 = vadd.f32 %v1589, %v1533
      %v1606 = vadd.f32 %v1590, %v1536
      %v1607 = vadd.f32 %v1591, %v1541
      %v1608 = vadd.f32 %v1592, %v1544
      %v1609 = vadd.f32 %v1593, %v1549
      %v1610 = vadd.f32 %v1594, %v1552
      %v1611 = vadd.f32 %v1595, %v1557
      %v1612 = vadd.f32 %v1596, %v1560
      %v1613 = vadd.f32 %v1597, %v1565
      %v1614 = vadd.f32 %v1598, %v1568
      %v1615 = vadd.f32 %v1599, %v1573
      %v1616 = vadd.f32 %v1600, %v1576
      %v1617 = vadd.f32 %v1601, %v1581
      %v1618 = vadd.f32 %v1602, %v1584
      %1619 = vst [vmem:[#allocation2] sm:$0xff] %v1603
      %1620 = vst [vmem:[#allocation2 + $0x8] sm:$0xff] %v1604
      %1621 = vst [vmem:[#allocation2 + $0x10] sm:$0xff] %v1605
      %1622 = vst [vmem:[#allocation2 + $0x18] sm:$0xff] %v1606
      %1623 = vst [vmem:[#allocation2 + $0x20] sm:$0xff] %v1607
      %1624 = vst [vmem:[#allocation2 + $0x28] sm:$0xff] %v1608
      %1625 = vst [vmem:[#allocation2 + $0x30] sm:$0xff] %v1609
      %1626 = vst [vmem:[#allocation2 + $0x38] sm:$0xff] %v1610
      %1627 = vst [vmem:[#allocation2 + $0x40] sm:$0xff] %v1611
      %1628 = vst [vmem:[#allocation2 + $0x48] sm:$0xff] %v1612
      %1629 = vst [vmem:[#allocation2 + $0x50] sm:$0xff] %v1613
      %1630 = vst [vmem:[#allocation2 + $0x58] sm:$0xff] %v1614
      %1631 = vst [vmem:[#allocation2 + $0x60] sm:$0xff] %v1615
      %1632 = vst [vmem:[#allocation2 + $0x68] sm:$0xff] %v1616
      %1633 = vst [vmem:[#allocation2 + $0x70] sm:$0xff] %v1617
      %1634 = vst [vmem:[#allocation2 + $0x78] sm:$0xff] %v1618
      %s1635 = sadd.s32 %s256, 96
      %s1636 = sshra.s32 %s1635, 3
      %s1637 = sand.u32 %s1635, 7
      %s1638 = smul.addr %s1636, 4
      %s1639 = scalar_lea.vmem %s232, %s1638
      %v1640 = vld [vmem:[%s1639] sm:$0xf]
      %v1641 = vld [vmem:[%s1639 + $0x4] sm:$0xf]
      %v1642 = vld [vmem:[%s1639 + $0x8] sm:$0xf]
      %v1643 = vld [vmem:[%s1639 + $0xc] sm:$0xf]
      %v1644 = vld [vmem:[%s1639 + $0x10] sm:$0xf]
      %v1645 = vld [vmem:[%s1639 + $0x14] sm:$0xf]
      %v1646 = vld [vmem:[%s1639 + $0x18] sm:$0xf]
      %v1647 = vld [vmem:[%s1639 + $0x1c] sm:$0xf]
      %v1648 = vld [vmem:[%s1639 + $0x20] sm:$0xf]
      %v1649 = vld [vmem:[%s1639 + $0x24] sm:$0xf]
      %v1650 = vld [vmem:[%s1639 + $0x28] sm:$0xf]
      %v1651 = vld [vmem:[%s1639 + $0x2c] sm:$0xf]
      %v1652 = vld [vmem:[%s1639 + $0x30] sm:$0xf]
      %v1653 = vld [vmem:[%s1639 + $0x34] sm:$0xf]
      %v1654 = vld [vmem:[%s1639 + $0x38] sm:$0xf]
      %v1655 = vld [vmem:[%s1639 + $0x3c] sm:$0xf]
      %s1656 = scalar_lea.vmem %s1, 12
      %v1657 = vld [vmem:[%s1656] sm:$0x3]
      %v1674 = vunpack.c.l.b16 %v1640
      %v1675 = vunpack.c.l.b16 %v1641
      %v1676 = vunpack.c.l.b16 %v1642
      %v1677 = vunpack.c.l.b16 %v1643
      %v1678 = vunpack.c.l.b16 %v1644
      %v1679 = vunpack.c.l.b16 %v1645
      %v1680 = vunpack.c.l.b16 %v1646
      %v1681 = vunpack.c.l.b16 %v1647
      %v1682 = vunpack.c.l.b16 %v1648
      %v1683 = vunpack.c.l.b16 %v1649
      %v1684 = vunpack.c.l.b16 %v1650
      %v1685 = vunpack.c.l.b16 %v1651
      %v1686 = vunpack.c.l.b16 %v1652
      %v1687 = vunpack.c.l.b16 %v1653
      %v1688 = vunpack.c.l.b16 %v1654
      %v1689 = vunpack.c.l.b16 %v1655
      %v1690 = vpack.c.b16 %v1675, %v1674
      %v1691 = vpack.c.b16 %v1677, %v1676
      %v1692 = vpack.c.b16 %v1679, %v1678
      %v1693 = vpack.c.b16 %v1681, %v1680
      %v1694 = vpack.c.b16 %v1683, %v1682
      %v1695 = vpack.c.b16 %v1685, %v1684
      %v1696 = vpack.c.b16 %v1687, %v1686
      %v1697 = vpack.c.b16 %v1689, %v1688
      %v1699 = vsel %vm318, %v1690, 0
      %v1702 = vsel %vm318, %v1691, 0
      %v1705 = vsel %vm318, %v1692, 0
      %v1708 = vsel %vm318, %v1693, 0
      %v1711 = vsel %vm318, %v1694, 0
      %v1714 = vsel %vm318, %v1695, 0
      %v1717 = vsel %vm318, %v1696, 0
      %v1720 = vsel %vm318, %v1697, 0
      %v1723 = vsel %vm343, %v1657, 0
      %1725 = vmatprep.subr.bf16.mxu0 0
      %1726 = vmatpush1.bf16.msra.mxu0 %v1723
      %1727 = vmatprep.subr.bf16.mxu0 0
      %1728 = vmatpush1.bf16.msra.mxu0 0
      %1729 = vmatprep.subr.bf16.mxu0 0
      %1730 = vmatpush1.bf16.msra.mxu0 0
      %1731 = vmatprep.subr.bf16.mxu0 0
      %1732 = vmatpush1.bf16.msra.mxu0 0
      %1733 = vmatprep.subr.bf16.mxu0 0
      %1734 = vmatpush1.bf16.msra.mxu0 0
      %1735 = vmatprep.subr.bf16.mxu0 0
      %1736 = vmatpush1.bf16.msra.mxu0 0
      %1737 = vmatprep.subr.bf16.mxu0 0
      %1738 = vmatpush1.bf16.msra.mxu0 0
      %1739 = vmatprep.subr.bf16.mxu0 0
      %1740 = vmatpush1.bf16.msra.mxu0 0
      %1741 = vmatprep.subr.bf16.mxu0 0
      %1742 = vmatpush1.bf16.msra.mxu0 0
      %1743 = vmatprep.subr.bf16.mxu0 0
      %1744 = vmatpush1.bf16.msra.mxu0 0
      %1745 = vmatprep.subr.bf16.mxu0 0
      %1746 = vmatpush1.bf16.msra.mxu0 0
      %1747 = vmatprep.subr.bf16.mxu0 0
      %1748 = vmatpush1.bf16.msra.mxu0 0
      %1749 = vmatprep.subr.bf16.mxu0 0
      %1750 = vmatpush1.bf16.msra.mxu0 0
      %1751 = vmatprep.subr.bf16.mxu0 0
      %1752 = vmatpush1.bf16.msra.mxu0 0
      %1753 = vmatprep.subr.bf16.mxu0 0
      %1754 = vmatpush1.bf16.msra.mxu0 0
      %1755 = vmatprep.subr.bf16.mxu0 0
      %1756 = vmatpush1.bf16.msra.mxu0 0
      %1757 = vmatprep.mubr.bf16.mxu0 0
      %1758 = vmatmul.mubr.bf16.gmra.mrb[0].mxu0 %v1699
      %v1759 = vpop.f32.mrb[0].mxu0
      %v1760 = vadd.f32 0.0, %v1759
      %v1761 = vpop.f32.mrb[0].mxu0
      %v1762 = vpop.f32.mrb[0].mxu0
      %v1763 = vadd.f32 0.0, %v1762
      %v1764 = vpop.f32.mrb[0].mxu0
      %1765 = vmatprep.mubr.bf16.mxu0 0
      %1766 = vmatmul.mubr.bf16.gmra.mrb[0].mxu0 %v1702
      %v1767 = vpop.f32.mrb[0].mxu0
      %v1768 = vadd.f32 0.0, %v1767
      %v1769 = vpop.f32.mrb[0].mxu0
      %v1770 = vpop.f32.mrb[0].mxu0
      %v1771 = vadd.f32 0.0, %v1770
      %v1772 = vpop.f32.mrb[0].mxu0
      %1773 = vmatprep.mubr.bf16.mxu0 0
      %1774 = vmatmul.mubr.bf16.gmra.mrb[0].mxu0 %v1705
      %v1775 = vpop.f32.mrb[0].mxu0
      %v1776 = vadd.f32 0.0, %v1775
      %v1777 = vpop.f32.mrb[0].mxu0
      %v1778 = vpop.f32.mrb[0].mxu0
      %v1779 = vadd.f32 0.0, %v1778
      %v1780 = vpop.f32.mrb[0].mxu0
      %1781 = vmatprep.mubr.bf16.mxu0 0
      %1782 = vmatmul.mubr.bf16.gmra.mrb[0].mxu0 %v1708
      %v1783 = vpop.f32.mrb[0].mxu0
      %v1784 = vadd.f32 0.0, %v1783
      %v1785 = vpop.f32.mrb[0].mxu0
      %v1786 = vpop.f32.mrb[0].mxu0
      %v1787 = vadd.f32 0.0, %v1786
      %v1788 = vpop.f32.mrb[0].mxu0
      %1789 = vmatprep.mubr.bf16.mxu0 0
      %1790 = vmatmul.mubr.bf16.gmra.mrb[0].mxu0 %v1711
      %v1791 = vpop.f32.mrb[0].mxu0
      %v1792 = vadd.f32 0.0, %v1791
      %v1793 = vpop.f32.mrb[0].mxu0
      %v1794 = vpop.f32.mrb[0].mxu0
      %v1795 = vadd.f32 0.0, %v1794
      %v1796 = vpop.f32.mrb[0].mxu0
      %1797 = vmatprep.mubr.bf16.mxu0 0
      %1798 = vmatmul.mubr.bf16.gmra.mrb[0].mxu0 %v1714
      %v1799 = vpop.f32.mrb[0].mxu0
      %v1800 = vadd.f32 0.0, %v1799
      %v1801 = vpop.f32.mrb[0].mxu0
      %v1802 = vpop.f32.mrb[0].mxu0
      %v1803 = vadd.f32 0.0, %v1802
      %v1804 = vpop.f32.mrb[0].mxu0
      %1805 = vmatprep.mubr.bf16.mxu0 0
      %1806 = vmatmul.mubr.bf16.gmra.mrb[0].mxu0 %v1717
      %v1807 = vpop.f32.mrb[0].mxu0
      %v1808 = vadd.f32 0.0, %v1807
      %v1809 = vpop.f32.mrb[0].mxu0
      %v1810 = vpop.f32.mrb[0].mxu0
      %v1811 = vadd.f32 0.0, %v1810
      %v1812 = vpop.f32.mrb[0].mxu0
      %1813 = vmatprep.mubr.bf16.mxu0 0
      %1814 = vmatmul.mubr.bf16.gmra.mrb[0].mxu0 %v1720
      %v1815 = vpop.f32.mrb[0].mxu0
      %v1816 = vadd.f32 0.0, %v1815
      %v1817 = vpop.f32.mrb[0].mxu0
      %v1818 = vpop.f32.mrb[0].mxu0
      %v1819 = vadd.f32 0.0, %v1818
      %v1820 = vpop.f32.mrb[0].mxu0
      %1821 = vdwg.mxu0
      %v1822 = vld [vmem:[#allocation2] sm:$0xff]
      %v1823 = vld [vmem:[#allocation2 + $0x8] sm:$0xff]
      %v1824 = vld [vmem:[#allocation2 + $0x10] sm:$0xff]
      %v1825 = vld [vmem:[#allocation2 + $0x18] sm:$0xff]
      %v1826 = vld [vmem:[#allocation2 + $0x20] sm:$0xff]
      %v1827 = vld [vmem:[#allocation2 + $0x28] sm:$0xff]
      %v1828 = vld [vmem:[#allocation2 + $0x30] sm:$0xff]
      %v1829 = vld [vmem:[#allocation2 + $0x38] sm:$0xff]
      %v1830 = vld [vmem:[#allocation2 + $0x40] sm:$0xff]
      %v1831 = vld [vmem:[#allocation2 + $0x48] sm:$0xff]
      %v1832 = vld [vmem:[#allocation2 + $0x50] sm:$0xff]
      %v1833 = vld [vmem:[#allocation2 + $0x58] sm:$0xff]
      %v1834 = vld [vmem:[#allocation2 + $0x60] sm:$0xff]
      %v1835 = vld [vmem:[#allocation2 + $0x68] sm:$0xff]
      %v1836 = vld [vmem:[#allocation2 + $0x70] sm:$0xff]
      %v1837 = vld [vmem:[#allocation2 + $0x78] sm:$0xff]
      %v1838 = vadd.f32 %v1822, %v1760
      %v1839 = vadd.f32 %v1823, %v1763
      %v1840 = vadd.f32 %v1824, %v1768
      %v1841 = vadd.f32 %v1825, %v1771
      %v1842 = vadd.f32 %v1826, %v1776
      %v1843 = vadd.f32 %v1827, %v1779
      %v1844 = vadd.f32 %v1828, %v1784
      %v1845 = vadd.f32 %v1829, %v1787
      %v1846 = vadd.f32 %v1830, %v1792
      %v1847 = vadd.f32 %v1831, %v1795
      %v1848 = vadd.f32 %v1832, %v1800
      %v1849 = vadd.f32 %v1833, %v1803
      %v1850 = vadd.f32 %v1834, %v1808
      %v1851 = vadd.f32 %v1835, %v1811
      %v1852 = vadd.f32 %v1836, %v1816
      %v1853 = vadd.f32 %v1837, %v1819
      %1854 = vst [vmem:[#allocation2] sm:$0xff] %v1838
      %1855 = vst [vmem:[#allocation2 + $0x8] sm:$0xff] %v1839
      %1856 = vst [vmem:[#allocation2 + $0x10] sm:$0xff] %v1840
      %1857 = vst [vmem:[#allocation2 + $0x18] sm:$0xff] %v1841
      %1858 = vst [vmem:[#allocation2 + $0x20] sm:$0xff] %v1842
      %1859 = vst [vmem:[#allocation2 + $0x28] sm:$0xff] %v1843
      %1860 = vst [vmem:[#allocation2 + $0x30] sm:$0xff] %v1844
      %1861 = vst [vmem:[#allocation2 + $0x38] sm:$0xff] %v1845
      %1862 = vst [vmem:[#allocation2 + $0x40] sm:$0xff] %v1846
      %1863 = vst [vmem:[#allocation2 + $0x48] sm:$0xff] %v1847
      %1864 = vst [vmem:[#allocation2 + $0x50] sm:$0xff] %v1848
      %1865 = vst [vmem:[#allocation2 + $0x58] sm:$0xff] %v1849
      %1866 = vst [vmem:[#allocation2 + $0x60] sm:$0xff] %v1850
      %1867 = vst [vmem:[#allocation2 + $0x68] sm:$0xff] %v1851
      %1868 = vst [vmem:[#allocation2 + $0x70] sm:$0xff] %v1852
      %1869 = vst [vmem:[#allocation2 + $0x78] sm:$0xff] %v1853
      %s1870 = sadd.s32 %s256, 112
      %s1871 = sshra.s32 %s1870, 3
      %s1872 = sand.u32 %s1870, 7
      %s1873 = smul.addr %s1871, 4
      %s1874 = scalar_lea.vmem %s232, %s1873
      %v1875 = vld [vmem:[%s1874] sm:$0xf]
      %v1876 = vld [vmem:[%s1874 + $0x4] sm:$0xf]
      %v1877 = vld [vmem:[%s1874 + $0x8] sm:$0xf]
      %v1878 = vld [vmem:[%s1874 + $0xc] sm:$0xf]
      %v1879 = vld [vmem:[%s1874 + $0x10] sm:$0xf]
      %v1880 = vld [vmem:[%s1874 + $0x14] sm:$0xf]
      %v1881 = vld [vmem:[%s1874 + $0x18] sm:$0xf]
      %v1882 = vld [vmem:[%s1874 + $0x1c] sm:$0xf]
      %v1883 = vld [vmem:[%s1874 + $0x20] sm:$0xf]
      %v1884 = vld [vmem:[%s1874 + $0x24] sm:$0xf]
      %v1885 = vld [vmem:[%s1874 + $0x28] sm:$0xf]
      %v1886 = vld [vmem:[%s1874 + $0x2c] sm:$0xf]
      %v1887 = vld [vmem:[%s1874 + $0x30] sm:$0xf]
      %v1888 = vld [vmem:[%s1874 + $0x34] sm:$0xf]
      %v1889 = vld [vmem:[%s1874 + $0x38] sm:$0xf]
      %v1890 = vld [vmem:[%s1874 + $0x3c] sm:$0xf]
      %s1891 = scalar_lea.vmem %s1, 14
      %v1892 = vld [vmem:[%s1891] sm:$0x3]
      %v1909 = vunpack.c.l.b16 %v1875
      %v1910 = vunpack.c.l.b16 %v1876
      %v1911 = vunpack.c.l.b16 %v1877
      %v1912 = vunpack.c.l.b16 %v1878
      %v1913 = vunpack.c.l.b16 %v1879
      %v1914 = vunpack.c.l.b16 %v1880
      %v1915 = vunpack.c.l.b16 %v1881
      %v1916 = vunpack.c.l.b16 %v1882
      %v1917 = vunpack.c.l.b16 %v1883
      %v1918 = vunpack.c.l.b16 %v1884
      %v1919 = vunpack.c.l.b16 %v1885
      %v1920 = vunpack.c.l.b16 %v1886
      %v1921 = vunpack.c.l.b16 %v1887
      %v1922 = vunpack.c.l.b16 %v1888
      %v1923 = vunpack.c.l.b16 %v1889
      %v1924 = vunpack.c.l.b16 %v1890
      %v1925 = vpack.c.b16 %v1910, %v1909
      %v1926 = vpack.c.b16 %v1912, %v1911
      %v1927 = vpack.c.b16 %v1914, %v1913
      %v1928 = vpack.c.b16 %v1916, %v1915
      %v1929 = vpack.c.b16 %v1918, %v1917
      %v1930 = vpack.c.b16 %v1920, %v1919
      %v1931 = vpack.c.b16 %v1922, %v1921
      %v1932 = vpack.c.b16 %v1924, %v1923
      %v1934 = vsel %vm318, %v1925, 0
      %v1937 = vsel %vm318, %v1926, 0
      %v1940 = vsel %vm318, %v1927, 0
      %v1943 = vsel %vm318, %v1928, 0
      %v1946 = vsel %vm318, %v1929, 0
      %v1949 = vsel %vm318, %v1930, 0
      %v1952 = vsel %vm318, %v1931, 0
      %v1955 = vsel %vm318, %v1932, 0
      %v1958 = vsel %vm343, %v1892, 0
      %1960 = vmatprep.subr.bf16.mxu0 0
      %1961 = vmatpush1.bf16.msra.mxu0 %v1958
      %1962 = vmatprep.subr.bf16.mxu0 0
      %1963 = vmatpush1.bf16.msra.mxu0 0
      %1964 = vmatprep.subr.bf16.mxu0 0
      %1965 = vmatpush1.bf16.msra.mxu0 0
      %1966 = vmatprep.subr.bf16.mxu0 0
      %1967 = vmatpush1.bf16.msra.mxu0 0
      %1968 = vmatprep.subr.bf16.mxu0 0
      %1969 = vmatpush1.bf16.msra.mxu0 0
      %1970 = vmatprep.subr.bf16.mxu0 0
      %1971 = vmatpush1.bf16.msra.mxu0 0
      %1972 = vmatprep.subr.bf16.mxu0 0
      %1973 = vmatpush1.bf16.msra.mxu0 0
      %1974 = vmatprep.subr.bf16.mxu0 0
      %1975 = vmatpush1.bf16.msra.mxu0 0
      %1976 = vmatprep.subr.bf16.mxu0 0
      %1977 = vmatpush1.bf16.msra.mxu0 0
      %1978 = vmatprep.subr.bf16.mxu0 0
      %1979 = vmatpush1.bf16.msra.mxu0 0
      %1980 = vmatprep.subr.bf16.mxu0 0
      %1981 = vmatpush1.bf16.msra.mxu0 0
      %1982 = vmatprep.subr.bf16.mxu0 0
      %1983 = vmatpush1.bf16.msra.mxu0 0
      %1984 = vmatprep.subr.bf16.mxu0 0
      %1985 = vmatpush1.bf16.msra.mxu0 0
      %1986 = vmatprep.subr.bf16.mxu0 0
      %1987 = vmatpush1.bf16.msra.mxu0 0
      %1988 = vmatprep.subr.bf16.mxu0 0
      %1989 = vmatpush1.bf16.msra.mxu0 0
      %1990 = vmatprep.subr.bf16.mxu0 0
      %1991 = vmatpush1.bf16.msra.mxu0 0
      %1992 = vmatprep.mubr.bf16.mxu0 0
      %1993 = vmatmul.mubr.bf16.gmra.mrb[0].mxu0 %v1934
      %v1994 = vpop.f32.mrb[0].mxu0
      %v1995 = vadd.f32 0.0, %v1994
      %v1996 = vpop.f32.mrb[0].mxu0
      %v1997 = vpop.f32.mrb[0].mxu0
      %v1998 = vadd.f32 0.0, %v1997
      %v1999 = vpop.f32.mrb[0].mxu0
      %2000 = vmatprep.mubr.bf16.mxu0 0
      %2001 = vmatmul.mubr.bf16.gmra.mrb[0].mxu0 %v1937
      %v2002 = vpop.f32.mrb[0].mxu0
      %v2003 = vadd.f32 0.0, %v2002
      %v2004 = vpop.f32.mrb[0].mxu0
      %v2005 = vpop.f32.mrb[0].mxu0
      %v2006 = vadd.f32 0.0, %v2005
      %v2007 = vpop.f32.mrb[0].mxu0
      %2008 = vmatprep.mubr.bf16.mxu0 0
      %2009 = vmatmul.mubr.bf16.gmra.mrb[0].mxu0 %v1940
      %v2010 = vpop.f32.mrb[0].mxu0
      %v2011 = vadd.f32 0.0, %v2010
      %v2012 = vpop.f32.mrb[0].mxu0
      %v2013 = vpop.f32.mrb[0].mxu0
      %v2014 = vadd.f32 0.0, %v2013
      %v2015 = vpop.f32.mrb[0].mxu0
      %2016 = vmatprep.mubr.bf16.mxu0 0
      %2017 = vmatmul.mubr.bf16.gmra.mrb[0].mxu0 %v1943
      %v2018 = vpop.f32.mrb[0].mxu0
      %v2019 = vadd.f32 0.0, %v2018
      %v2020 = vpop.f32.mrb[0].mxu0
      %v2021 = vpop.f32.mrb[0].mxu0
      %v2022 = vadd.f32 0.0, %v2021
      %v2023 = vpop.f32.mrb[0].mxu0
      %2024 = vmatprep.mubr.bf16.mxu0 0
      %2025 = vmatmul.mubr.bf16.gmra.mrb[0].mxu0 %v1946
      %v2026 = vpop.f32.mrb[0].mxu0
      %v2027 = vadd.f32 0.0, %v2026
      %v2028 = vpop.f32.mrb[0].mxu0
      %v2029 = vpop.f32.mrb[0].mxu0
      %v2030 = vadd.f32 0.0, %v2029
      %v2031 = vpop.f32.mrb[0].mxu0
      %2032 = vmatprep.mubr.bf16.mxu0 0
      %2033 = vmatmul.mubr.bf16.gmra.mrb[0].mxu0 %v1949
      %v2034 = vpop.f32.mrb[0].mxu0
      %v2035 = vadd.f32 0.0, %v2034
      %v2036 = vpop.f32.mrb[0].mxu0
      %v2037 = vpop.f32.mrb[0].mxu0
      %v2038 = vadd.f32 0.0, %v2037
      %v2039 = vpop.f32.mrb[0].mxu0
      %2040 = vmatprep.mubr.bf16.mxu0 0
      %2041 = vmatmul.mubr.bf16.gmra.mrb[0].mxu0 %v1952
      %v2042 = vpop.f32.mrb[0].mxu0
      %v2043 = vadd.f32 0.0, %v2042
      %v2044 = vpop.f32.mrb[0].mxu0
      %v2045 = vpop.f32.mrb[0].mxu0
      %v2046 = vadd.f32 0.0, %v2045
      %v2047 = vpop.f32.mrb[0].mxu0
      %2048 = vmatprep.mubr.bf16.mxu0 0
      %2049 = vmatmul.mubr.bf16.gmra.mrb[0].mxu0 %v1955
      %v2050 = vpop.f32.mrb[0].mxu0
      %v2051 = vadd.f32 0.0, %v2050
      %v2052 = vpop.f32.mrb[0].mxu0
      %v2053 = vpop.f32.mrb[0].mxu0
      %v2054 = vadd.f32 0.0, %v2053
      %v2055 = vpop.f32.mrb[0].mxu0
      %2056 = vdwg.mxu0
      %v2057 = vld [vmem:[#allocation2] sm:$0xff]
      %v2058 = vld [vmem:[#allocation2 + $0x8] sm:$0xff]
      %v2059 = vld [vmem:[#allocation2 + $0x10] sm:$0xff]
      %v2060 = vld [vmem:[#allocation2 + $0x18] sm:$0xff]
      %v2061 = vld [vmem:[#allocation2 + $0x20] sm:$0xff]
      %v2062 = vld [vmem:[#allocation2 + $0x28] sm:$0xff]
      %v2063 = vld [vmem:[#allocation2 + $0x30] sm:$0xff]
      %v2064 = vld [vmem:[#allocation2 + $0x38] sm:$0xff]
      %v2065 = vld [vmem:[#allocation2 + $0x40] sm:$0xff]
      %v2066 = vld [vmem:[#allocation2 + $0x48] sm:$0xff]
      %v2067 = vld [vmem:[#allocation2 + $0x50] sm:$0xff]
      %v2068 = vld [vmem:[#allocation2 + $0x58] sm:$0xff]
      %v2069 = vld [vmem:[#allocation2 + $0x60] sm:$0xff]
      %v2070 = vld [vmem:[#allocation2 + $0x68] sm:$0xff]
      %v2071 = vld [vmem:[#allocation2 + $0x70] sm:$0xff]
      %v2072 = vld [vmem:[#allocation2 + $0x78] sm:$0xff]
      %v2073 = vadd.f32 %v2057, %v1995
      %v2074 = vadd.f32 %v2058, %v1998
      %v2075 = vadd.f32 %v2059, %v2003
      %v2076 = vadd.f32 %v2060, %v2006
      %v2077 = vadd.f32 %v2061, %v2011
      %v2078 = vadd.f32 %v2062, %v2014
      %v2079 = vadd.f32 %v2063, %v2019
      %v2080 = vadd.f32 %v2064, %v2022
      %v2081 = vadd.f32 %v2065, %v2027
      %v2082 = vadd.f32 %v2066, %v2030
      %v2083 = vadd.f32 %v2067, %v2035
      %v2084 = vadd.f32 %v2068, %v2038
      %v2085 = vadd.f32 %v2069, %v2043
      %v2086 = vadd.f32 %v2070, %v2046
      %v2087 = vadd.f32 %v2071, %v2051
      %v2088 = vadd.f32 %v2072, %v2054
      %2089 = vst [vmem:[#allocation2] sm:$0xff] %v2073
      %2090 = vst [vmem:[#allocation2 + $0x8] sm:$0xff] %v2074
      %2091 = vst [vmem:[#allocation2 + $0x10] sm:$0xff] %v2075
      %2092 = vst [vmem:[#allocation2 + $0x18] sm:$0xff] %v2076
      %2093 = vst [vmem:[#allocation2 + $0x20] sm:$0xff] %v2077
      %2094 = vst [vmem:[#allocation2 + $0x28] sm:$0xff] %v2078
      %2095 = vst [vmem:[#allocation2 + $0x30] sm:$0xff] %v2079
      %2096 = vst [vmem:[#allocation2 + $0x38] sm:$0xff] %v2080
      %2097 = vst [vmem:[#allocation2 + $0x40] sm:$0xff] %v2081
      %2098 = vst [vmem:[#allocation2 + $0x48] sm:$0xff] %v2082
      %2099 = vst [vmem:[#allocation2 + $0x50] sm:$0xff] %v2083
      %2100 = vst [vmem:[#allocation2 + $0x58] sm:$0xff] %v2084
      %2101 = vst [vmem:[#allocation2 + $0x60] sm:$0xff] %v2085
      %2102 = vst [vmem:[#allocation2 + $0x68] sm:$0xff] %v2086
      %2103 = vst [vmem:[#allocation2 + $0x70] sm:$0xff] %v2087
      %2104 = vst [vmem:[#allocation2 + $0x78] sm:$0xff] %v2088
      %s2105 = sadd.s32 %s256, 128
      %s2106 = sshra.s32 %s2105, 3
      %s2107 = sand.u32 %s2105, 7
      %s2108 = smul.addr %s2106, 4
      %s2109 = scalar_lea.vmem %s232, %s2108
      %v2110 = vld [vmem:[%s2109] sm:$0xf]
      %v2111 = vld [vmem:[%s2109 + $0x4] sm:$0xf]
      %v2112 = vld [vmem:[%s2109 + $0x8] sm:$0xf]
      %v2113 = vld [vmem:[%s2109 + $0xc] sm:$0xf]
      %v2114 = vld [vmem:[%s2109 + $0x10] sm:$0xf]
      %v2115 = vld [vmem:[%s2109 + $0x14] sm:$0xf]
      %v2116 = vld [vmem:[%s2109 + $0x18] sm:$0xf]
      %v2117 = vld [vmem:[%s2109 + $0x1c] sm:$0xf]
      %v2118 = vld [vmem:[%s2109 + $0x20] sm:$0xf]
      %v2119 = vld [vmem:[%s2109 + $0x24] sm:$0xf]
      %v2120 = vld [vmem:[%s2109 + $0x28] sm:$0xf]
      %v2121 = vld [vmem:[%s2109 + $0x2c] sm:$0xf]
      %v2122 = vld [vmem:[%s2109 + $0x30] sm:$0xf]
      %v2123 = vld [vmem:[%s2109 + $0x34] sm:$0xf]
      %v2124 = vld [vmem:[%s2109 + $0x38] sm:$0xf]
      %v2125 = vld [vmem:[%s2109 + $0x3c] sm:$0xf]
      %s2126 = scalar_lea.vmem %s1, 16
      %v2127 = vld [vmem:[%s2126] sm:$0x3]
      %v2144 = vunpack.c.l.b16 %v2110
      %v2145 = vunpack.c.l.b16 %v2111
      %v2146 = vunpack.c.l.b16 %v2112
      %v2147 = vunpack.c.l.b16 %v2113
      %v2148 = vunpack.c.l.b16 %v2114
      %v2149 = vunpack.c.l.b16 %v2115
      %v2150 = vunpack.c.l.b16 %v2116
      %v2151 = vunpack.c.l.b16 %v2117
      %v2152 = vunpack.c.l.b16 %v2118
      %v2153 = vunpack.c.l.b16 %v2119
      %v2154 = vunpack.c.l.b16 %v2120
      %v2155 = vunpack.c.l.b16 %v2121
      %v2156 = vunpack.c.l.b16 %v2122
      %v2157 = vunpack.c.l.b16 %v2123
      %v2158 = vunpack.c.l.b16 %v2124
      %v2159 = vunpack.c.l.b16 %v2125
      %v2160 = vpack.c.b16 %v2145, %v2144
      %v2161 = vpack.c.b16 %v2147, %v2146
      %v2162 = vpack.c.b16 %v2149, %v2148
      %v2163 = vpack.c.b16 %v2151, %v2150
      %v2164 = vpack.c.b16 %v2153, %v2152
      %v2165 = vpack.c.b16 %v2155, %v2154
      %v2166 = vpack.c.b16 %v2157, %v2156
      %v2167 = vpack.c.b16 %v2159, %v2158
      %v2169 = vsel %vm318, %v2160, 0
      %v2172 = vsel %vm318, %v2161, 0
      %v2175 = vsel %vm318, %v2162, 0
      %v2178 = vsel %vm318, %v2163, 0
      %v2181 = vsel %vm318, %v2164, 0
      %v2184 = vsel %vm318, %v2165, 0
      %v2187 = vsel %vm318, %v2166, 0
      %v2190 = vsel %vm318, %v2167, 0
      %v2193 = vsel %vm343, %v2127, 0
      %2195 = vmatprep.subr.bf16.mxu0 0
      %2196 = vmatpush1.bf16.msra.mxu0 %v2193
      %2197 = vmatprep.subr.bf16.mxu0 0
      %2198 = vmatpush1.bf16.msra.mxu0 0
      %2199 = vmatprep.subr.bf16.mxu0 0
      %2200 = vmatpush1.bf16.msra.mxu0 0
      %2201 = vmatprep.subr.bf16.mxu0 0
      %2202 = vmatpush1.bf16.msra.mxu0 0
      %2203 = vmatprep.subr.bf16.mxu0 0
      %2204 = vmatpush1.bf16.msra.mxu0 0
      %2205 = vmatprep.subr.bf16.mxu0 0
      %2206 = vmatpush1.bf16.msra.mxu0 0
      %2207 = vmatprep.subr.bf16.mxu0 0
      %2208 = vmatpush1.bf16.msra.mxu0 0
      %2209 = vmatprep.subr.bf16.mxu0 0
      %2210 = vmatpush1.bf16.msra.mxu0 0
      %2211 = vmatprep.subr.bf16.mxu0 0
      %2212 = vmatpush1.bf16.msra.mxu0 0
      %2213 = vmatprep.subr.bf16.mxu0 0
      %2214 = vmatpush1.bf16.msra.mxu0 0
      %2215 = vmatprep.subr.bf16.mxu0 0
      %2216 = vmatpush1.bf16.msra.mxu0 0
      %2217 = vmatprep.subr.bf16.mxu0 0
      %2218 = vmatpush1.bf16.msra.mxu0 0
      %2219 = vmatprep.subr.bf16.mxu0 0
      %2220 = vmatpush1.bf16.msra.mxu0 0
      %2221 = vmatprep.subr.bf16.mxu0 0
      %2222 = vmatpush1.bf16.msra.mxu0 0
      %2223 = vmatprep.subr.bf16.mxu0 0
      %2224 = vmatpush1.bf16.msra.mxu0 0
      %2225 = vmatprep.subr.bf16.mxu0 0
      %2226 = vmatpush1.bf16.msra.mxu0 0
      %2227 = vmatprep.mubr.bf16.mxu0 0
      %2228 = vmatmul.mubr.bf16.gmra.mrb[0].mxu0 %v2169
      %v2229 = vpop.f32.mrb[0].mxu0
      %v2230 = vadd.f32 0.0, %v2229
      %v2231 = vpop.f32.mrb[0].mxu0
      %v2232 = vpop.f32.mrb[0].mxu0
      %v2233 = vadd.f32 0.0, %v2232
      %v2234 = vpop.f32.mrb[0].mxu0
      %2235 = vmatprep.mubr.bf16.mxu0 0
      %2236 = vmatmul.mubr.bf16.gmra.mrb[0].mxu0 %v2172
      %v2237 = vpop.f32.mrb[0].mxu0
      %v2238 = vadd.f32 0.0, %v2237
      %v2239 = vpop.f32.mrb[0].mxu0
      %v2240 = vpop.f32.mrb[0].mxu0
      %v2241 = vadd.f32 0.0, %v2240
      %v2242 = vpop.f32.mrb[0].mxu0
      %2243 = vmatprep.mubr.bf16.mxu0 0
      %2244 = vmatmul.mubr.bf16.gmra.mrb[0].mxu0 %v2175
      %v2245 = vpop.f32.mrb[0].mxu0
      %v2246 = vadd.f32 0.0, %v2245
      %v2247 = vpop.f32.mrb[0].mxu0
      %v2248 = vpop.f32.mrb[0].mxu0
      %v2249 = vadd.f32 0.0, %v2248
      %v2250 = vpop.f32.mrb[0].mxu0
      %2251 = vmatprep.mubr.bf16.mxu0 0
      %2252 = vmatmul.mubr.bf16.gmra.mrb[0].mxu0 %v2178
      %v2253 = vpop.f32.mrb[0].mxu0
      %v2254 = vadd.f32 0.0, %v2253
      %v2255 = vpop.f32.mrb[0].mxu0
      %v2256 = vpop.f32.mrb[0].mxu0
      %v2257 = vadd.f32 0.0, %v2256
      %v2258 = vpop.f32.mrb[0].mxu0
      %2259 = vmatprep.mubr.bf16.mxu0 0
      %2260 = vmatmul.mubr.bf16.gmra.mrb[0].mxu0 %v2181
      %v2261 = vpop.f32.mrb[0].mxu0
      %v2262 = vadd.f32 0.0, %v2261
      %v2263 = vpop.f32.mrb[0].mxu0
      %v2264 = vpop.f32.mrb[0].mxu0
      %v2265 = vadd.f32 0.0, %v2264
      %v2266 = vpop.f32.mrb[0].mxu0
      %2267 = vmatprep.mubr.bf16.mxu0 0
      %2268 = vmatmul.mubr.bf16.gmra.mrb[0].mxu0 %v2184
      %v2269 = vpop.f32.mrb[0].mxu0
      %v2270 = vadd.f32 0.0, %v2269
      %v2271 = vpop.f32.mrb[0].mxu0
      %v2272 = vpop.f32.mrb[0].mxu0
      %v2273 = vadd.f32 0.0, %v2272
      %v2274 = vpop.f32.mrb[0].mxu0
      %2275 = vmatprep.mubr.bf16.mxu0 0
      %2276 = vmatmul.mubr.bf16.gmra.mrb[0].mxu0 %v2187
      %v2277 = vpop.f32.mrb[0].mxu0
      %v2278 = vadd.f32 0.0, %v2277
      %v2279 = vpop.f32.mrb[0].mxu0
      %v2280 = vpop.f32.mrb[0].mxu0
      %v2281 = vadd.f32 0.0, %v2280
      %v2282 = vpop.f32.mrb[0].mxu0
      %2283 = vmatprep.mubr.bf16.mxu0 0
      %2284 = vmatmul.mubr.bf16.gmra.mrb[0].mxu0 %v2190
      %v2285 = vpop.f32.mrb[0].mxu0
      %v2286 = vadd.f32 0.0, %v2285
      %v2287 = vpop.f32.mrb[0].mxu0
      %v2288 = vpop.f32.mrb[0].mxu0
      %v2289 = vadd.f32 0.0, %v2288
      %v2290 = vpop.f32.mrb[0].mxu0
      %2291 = vdwg.mxu0
      %v2292 = vld [vmem:[#allocation2] sm:$0xff]
      %v2293 = vld [vmem:[#allocation2 + $0x8] sm:$0xff]
      %v2294 = vld [vmem:[#allocation2 + $0x10] sm:$0xff]
      %v2295 = vld [vmem:[#allocation2 + $0x18] sm:$0xff]
      %v2296 = vld [vmem:[#allocation2 + $0x20] sm:$0xff]
      %v2297 = vld [vmem:[#allocation2 + $0x28] sm:$0xff]
      %v2298 = vld [vmem:[#allocation2 + $0x30] sm:$0xff]
      %v2299 = vld [vmem:[#allocation2 + $0x38] sm:$0xff]
      %v2300 = vld [vmem:[#allocation2 + $0x40] sm:$0xff]
      %v2301 = vld [vmem:[#allocation2 + $0x48] sm:$0xff]
      %v2302 = vld [vmem:[#allocation2 + $0x50] sm:$0xff]
      %v2303 = vld [vmem:[#allocation2 + $0x58] sm:$0xff]
      %v2304 = vld [vmem:[#allocation2 + $0x60] sm:$0xff]
      %v2305 = vld [vmem:[#allocation2 + $0x68] sm:$0xff]
      %v2306 = vld [vmem:[#allocation2 + $0x70] sm:$0xff]
      %v2307 = vld [vmem:[#allocation2 + $0x78] sm:$0xff]
      %v2308 = vadd.f32 %v2292, %v2230
      %v2309 = vadd.f32 %v2293, %v2233
      %v2310 = vadd.f32 %v2294, %v2238
      %v2311 = vadd.f32 %v2295, %v2241
      %v2312 = vadd.f32 %v2296, %v2246
      %v2313 = vadd.f32 %v2297, %v2249
      %v2314 = vadd.f32 %v2298, %v2254
      %v2315 = vadd.f32 %v2299, %v2257
      %v2316 = vadd.f32 %v2300, %v2262
      %v2317 = vadd.f32 %v2301, %v2265
      %v2318 = vadd.f32 %v2302, %v2270
      %v2319 = vadd.f32 %v2303, %v2273
      %v2320 = vadd.f32 %v2304, %v2278
      %v2321 = vadd.f32 %v2305, %v2281
      %v2322 = vadd.f32 %v2306, %v2286
      %v2323 = vadd.f32 %v2307, %v2289
      %2324 = vst [vmem:[#allocation2] sm:$0xff] %v2308
      %2325 = vst [vmem:[#allocation2 + $0x8] sm:$0xff] %v2309
      %2326 = vst [vmem:[#allocation2 + $0x10] sm:$0xff] %v2310
      %2327 = vst [vmem:[#allocation2 + $0x18] sm:$0xff] %v2311
      %2328 = vst [vmem:[#allocation2 + $0x20] sm:$0xff] %v2312
      %2329 = vst [vmem:[#allocation2 + $0x28] sm:$0xff] %v2313
      %2330 = vst [vmem:[#allocation2 + $0x30] sm:$0xff] %v2314
      %2331 = vst [vmem:[#allocation2 + $0x38] sm:$0xff] %v2315
      %2332 = vst [vmem:[#allocation2 + $0x40] sm:$0xff] %v2316
      %2333 = vst [vmem:[#allocation2 + $0x48] sm:$0xff] %v2317
      %2334 = vst [vmem:[#allocation2 + $0x50] sm:$0xff] %v2318
      %2335 = vst [vmem:[#allocation2 + $0x58] sm:$0xff] %v2319
      %2336 = vst [vmem:[#allocation2 + $0x60] sm:$0xff] %v2320
      %2337 = vst [vmem:[#allocation2 + $0x68] sm:$0xff] %v2321
      %2338 = vst [vmem:[#allocation2 + $0x70] sm:$0xff] %v2322
      %2339 = vst [vmem:[#allocation2 + $0x78] sm:$0xff] %v2323
      %v2340 = vld [vmem:[#allocation2] sm:$0xff]
      %v2341 = vld [vmem:[#allocation2 + $0x8] sm:$0xff]
      %v2342 = vld [vmem:[#allocation2 + $0x10] sm:$0xff]
      %v2343 = vld [vmem:[#allocation2 + $0x18] sm:$0xff]
      %v2344 = vld [vmem:[#allocation2 + $0x20] sm:$0xff]
      %v2345 = vld [vmem:[#allocation2 + $0x28] sm:$0xff]
      %v2346 = vld [vmem:[#allocation2 + $0x30] sm:$0xff]
      %v2347 = vld [vmem:[#allocation2 + $0x38] sm:$0xff]
      %v2348 = vld [vmem:[#allocation2 + $0x40] sm:$0xff]
      %v2349 = vld [vmem:[#allocation2 + $0x48] sm:$0xff]
      %v2350 = vld [vmem:[#allocation2 + $0x50] sm:$0xff]
      %v2351 = vld [vmem:[#allocation2 + $0x58] sm:$0xff]
      %v2352 = vld [vmem:[#allocation2 + $0x60] sm:$0xff]
      %v2353 = vld [vmem:[#allocation2 + $0x68] sm:$0xff]
      %v2354 = vld [vmem:[#allocation2 + $0x70] sm:$0xff]
      %v2355 = vld [vmem:[#allocation2 + $0x78] sm:$0xff]
      %v2356 = vadd.f32 %v2340, %v2341
      %v2357 = vadd.f32 %v2356, %v2342
      %v2358 = vadd.f32 %v2357, %v2343
      %v2359 = vadd.f32 %v2358, %v2344
      %v2360 = vadd.f32 %v2359, %v2345
      %v2361 = vadd.f32 %v2360, %v2346
      %v2362 = vadd.f32 %v2361, %v2347
      %v2363 = vadd.f32 %v2362, %v2348
      %v2364 = vadd.f32 %v2363, %v2349
      %v2365 = vadd.f32 %v2364, %v2350
      %v2366 = vadd.f32 %v2365, %v2351
      %v2367 = vadd.f32 %v2366, %v2352
      %v2368 = vadd.f32 %v2367, %v2353
      %v2369 = vadd.f32 %v2368, %v2354
      %v2370 = vadd.f32 %v2369, %v2355
      %v2371 = vrot.slane %v2370, 4
      %v2372 = vadd.f32 %v2370, %v2371
      %v2373 = vrot.slane %v2372, 2
      %v2374 = vadd.f32 %v2372, %v2373
      %v2375 = vrot.slane %v2374, 1
      %v2376 = vadd.f32 %v2374, %v2375
      %2377 = vst [vmem:[%s247] sm:$0x1] %v2376
      %v2378 = vmul.f32 %v2340, %v2340
      %v2379 = vmul.f32 %v2341, %v2341
      %v2380 = vmul.f32 %v2342, %v2342
      %v2381 = vmul.f32 %v2343, %v2343
      %v2382 = vmul.f32 %v2344, %v2344
      %v2383 = vmul.f32 %v2345, %v2345
      %v2384 = vmul.f32 %v2346, %v2346
      %v2385 = vmul.f32 %v2347, %v2347
      %v2386 = vmul.f32 %v2348, %v2348
      %v2387 = vmul.f32 %v2349, %v2349
      %v2388 = vmul.f32 %v2350, %v2350
      %v2389 = vmul.f32 %v2351, %v2351
      %v2390 = vmul.f32 %v2352, %v2352
      %v2391 = vmul.f32 %v2353, %v2353
      %v2392 = vmul.f32 %v2354, %v2354
      %v2393 = vmul.f32 %v2355, %v2355
      %v2394 = vadd.f32 %v2378, %v2379
      %v2395 = vadd.f32 %v2394, %v2380
      %v2396 = vadd.f32 %v2395, %v2381
      %v2397 = vadd.f32 %v2396, %v2382
      %v2398 = vadd.f32 %v2397, %v2383
      %v2399 = vadd.f32 %v2398, %v2384
      %v2400 = vadd.f32 %v2399, %v2385
      %v2401 = vadd.f32 %v2400, %v2386
      %v2402 = vadd.f32 %v2401, %v2387
      %v2403 = vadd.f32 %v2402, %v2388
      %v2404 = vadd.f32 %v2403, %v2389
      %v2405 = vadd.f32 %v2404, %v2390
      %v2406 = vadd.f32 %v2405, %v2391
      %v2407 = vadd.f32 %v2406, %v2392
      %v2408 = vadd.f32 %v2407, %v2393
      %v2409 = vrot.slane %v2408, 4
      %v2410 = vadd.f32 %v2408, %v2409
      %v2411 = vrot.slane %v2410, 2
      %v2412 = vadd.f32 %v2410, %v2411
      %v2413 = vrot.slane %v2412, 1
      %v2414 = vadd.f32 %v2412, %v2413
      %2415 = vst [vmem:[%s254] sm:$0x1] %v2414
      %2416 = vxpose.xlu0.b32.start [1/16] %v2340, 128
      %2417 = vxpose.xlu0.b32.cont [2/16] %v2341, 128
      %2418 = vxpose.xlu0.b32.cont [3/16] %v2342, 128
      %2419 = vxpose.xlu0.b32.cont [4/16] %v2343, 128
      %2420 = vxpose.xlu0.b32.cont [5/16] %v2344, 128
      %2421 = vxpose.xlu0.b32.cont [6/16] %v2345, 128
      %2422 = vxpose.xlu0.b32.cont [7/16] %v2346, 128
      %2423 = vxpose.xlu0.b32.cont [8/16] %v2347, 128
      %2424 = vxpose.xlu0.b32.cont [9/16] %v2348, 128
      %2425 = vxpose.xlu0.b32.cont [10/16] %v2349, 128
      %2426 = vxpose.xlu0.b32.cont [11/16] %v2350, 128
      %2427 = vxpose.xlu0.b32.cont [12/16] %v2351, 128
      %2428 = vxpose.xlu0.b32.cont [13/16] %v2352, 128
      %2429 = vxpose.xlu0.b32.cont [14/16] %v2353, 128
      %2430 = vxpose.xlu0.b32.cont [15/16] %v2354, 128
      %2431 = vxpose.xlu0.b32.end [16/16] %v2355, 128
      %v2432 = vpop.trf.xlu0
      %v2433 = vpop.trf.xlu0
      %v2434 = vpop.trf.xlu0
      %v2435 = vpop.trf.xlu0
      %v2436 = vpop.trf.xlu0
      %v2437 = vpop.trf.xlu0
      %v2438 = vpop.trf.xlu0
      %v2439 = vpop.trf.xlu0
      %v2440 = vpop.trf.xlu0
      %v2441 = vpop.trf.xlu0
      %v2442 = vpop.trf.xlu0
      %v2443 = vpop.trf.xlu0
      %v2444 = vpop.trf.xlu0
      %v2445 = vpop.trf.xlu0
      %v2446 = vpop.trf.xlu0
      %v2447 = vpop.trf.xlu0
      %v2448 = vpack.c.bf16 %v2432, %v2432
      %2449 = vst [vmem:[%s240] sm:$0xf] %v2448
      %p2450 = scmp.lt.s32.totalorder %s20, 1
      %s2451 = scalar_select %p2450, %s20, 1
      %p2452 = scmp.lt.s32.totalorder %s21, 1
      %s2453 = scalar_select %p2452, %s21, 1
      %s2454 = smul.addr %s2451, 2
      %s2455 = sadd.s32 %s2453, %s2454
      %s2456 = smul.addr %s2455, 4
      %s2457 = scalar_lea.vmem %s2, %s2456
      %p2458 = scmp.lt.s32.totalorder %s20, 1
      %s2459 = scalar_select %p2458, %s20, 1
      %p2460 = scmp.lt.s32.totalorder %s21, 1
      %s2461 = scalar_select %p2460, %s21, 1
      %s2462 = smul.addr %s2459, 2
      %s2463 = sadd.s32 %s2461, %s2462
      %s2464 = scalar_lea.vmem %s3, %s2463
      %p2465 = scmp.lt.s32.totalorder %s20, 1
      %s2466 = scalar_select %p2465, %s20, 1
      %p2467 = scmp.lt.s32.totalorder %s21, 1
      %s2468 = scalar_select %p2467, %s21, 1
      %s2469 = smul.addr %s2466, 2
      %s2470 = sadd.s32 %s2468, %s2469
      %s2471 = scalar_lea.vmem %s4, %s2470
      // Predicated region
      $region29: #{unit_tcn_skip_forward.2} parent=27 // pred_check
        %p2472 = pneg %p95
      $region30: #{unit_tcn_skip_forward.2} parent=27 // pred_check_branch
        %2474 = sbr.rel (%p2472) target = $region32
      $region31: #{unit_tcn_skip_forward.2} parent=27 // pred_region
        _
      $region32: #{unit_tcn_skip_forward.2} parent=27 // pred_fallthru
        _
      // Predicated region
      $region33: #{unit_tcn_skip_forward.2} parent=27 // pred_check
        %p2475 = pneg %p123
      $region34: #{unit_tcn_skip_forward.2} parent=27 // pred_check_branch
        %2477 = sbr.rel (%p2475) target = $region36
      $region35: #{unit_tcn_skip_forward.2} parent=27 // pred_region
        _
      $region36: #{unit_tcn_skip_forward.2} parent=27 // pred_fallthru
        _
      // Predicated region
      $region37: #{unit_tcn_skip_forward.2} parent=27 // pred_check
        %p2478 = pneg %p151
      $region38: #{unit_tcn_skip_forward.2} parent=27 // pred_check_branch
        %2480 = sbr.rel (%p2478) target = $region40
      $region39: #{unit_tcn_skip_forward.2} parent=27 // pred_region
        _
      $region40: #{unit_tcn_skip_forward.2} parent=27 // pred_fallthru
        _
    $region28: #{unit_tcn_skip_forward.2} parent=5 // pred_fallthru
      _
    %p2481 = scmp.le.s32.totalorder 2, %s11
    // Predicated region
    $region41: #{unit_tcn_skip_forward.2} parent=5 // pred_check
      %p2482 = pneg %p2481
    $region42: #{unit_tcn_skip_forward.2} parent=5 // pred_check_branch
      %2484 = sbr.rel (%p2482) target = $region44
    $region43: #{unit_tcn_skip_forward.2} parent=5 // pred_region
      %s2485 = ssub.s32 %s11, 2
      // Predicated region
      $region45: #{unit_tcn_skip_forward.2} parent=43 // pred_check
        %p2486 = pneg %p101
      $region46: #{unit_tcn_skip_forward.2} parent=43 // pred_check_branch
        %2488 = sbr.rel (%p2486) target = $region48
      $region47: #{unit_tcn_skip_forward.2} parent=43 // pred_region
        %p2489 = scmp.lt.s32.totalorder %s22, 1
        %s2490 = scalar_select %p2489, %s22, 1
        %p2491 = scmp.lt.s32.totalorder %s23, 1
        %s2492 = scalar_select %p2491, %s23, 1
        %s2493 = smul.addr %s2490, 2
        %s2494 = sadd.s32 %s2492, %s2493
        %s2495 = smul.addr %s2494, 4
        %s2496 = scalar_lea.vmem %s2, %s2495
      $region48: #{unit_tcn_skip_forward.2} parent=43 // pred_fallthru
        _
      // Predicated region
      $region49: #{unit_tcn_skip_forward.2} parent=43 // pred_check
        %p2497 = pneg %p129
      $region50: #{unit_tcn_skip_forward.2} parent=43 // pred_check_branch
        %2499 = sbr.rel (%p2497) target = $region52
      $region51: #{unit_tcn_skip_forward.2} parent=43 // pred_region
        %p2500 = scmp.lt.s32.totalorder %s22, 1
        %s2501 = scalar_select %p2500, %s22, 1
        %p2502 = scmp.lt.s32.totalorder %s23, 1
        %s2503 = scalar_select %p2502, %s23, 1
        %s2504 = smul.addr %s2501, 2
        %s2505 = sadd.s32 %s2503, %s2504
        %s2506 = scalar_lea.vmem %s3, %s2505
      $region52: #{unit_tcn_skip_forward.2} parent=43 // pred_fallthru
        _
      // Predicated region
      $region53: #{unit_tcn_skip_forward.2} parent=43 // pred_check
        %p2507 = pneg %p157
      $region54: #{unit_tcn_skip_forward.2} parent=43 // pred_check_branch
        %2509 = sbr.rel (%p2507) target = $region56
      $region55: #{unit_tcn_skip_forward.2} parent=43 // pred_region
        %p2510 = scmp.lt.s32.totalorder %s22, 1
        %s2511 = scalar_select %p2510, %s22, 1
        %p2512 = scmp.lt.s32.totalorder %s23, 1
        %s2513 = scalar_select %p2512, %s23, 1
        %s2514 = smul.addr %s2511, 2
        %s2515 = sadd.s32 %s2513, %s2514
        %s2516 = scalar_lea.vmem %s4, %s2515
      $region56: #{unit_tcn_skip_forward.2} parent=43 // pred_fallthru
        _
    $region44: #{unit_tcn_skip_forward.2} parent=5 // pred_fallthru
      _
  $region6: #{unit_tcn_skip_forward.2} parent=0 // loop_footer
    %s15 = sadd.s32 1, %s11
  $region7: #{unit_tcn_skip_forward.2} parent=0 // loop_footer_branch
    %10 = sbr.rel target = $region3
  $region8: #{unit_tcn_skip_forward.2} parent=0 // loop_exit
    _

</llo_original>
